<compile_context>
chip_gen: v7x
topology: tpu7x:2x2x1
jax: 0.10.0
libtpu: 0.0.40
codegen_flags: <defaults>
</compile_context>

<pallas_src>
import jax
import jax.numpy as jnp
from jax.experimental import pallas as pl
from jax.experimental.pallas import tpu as pltpu

IN_F = 784     # 28 * 28
HID = 512


def autoencoder_kernel(x_ref, w1_ref, b1_ref, w2_ref, b2_ref,
                       w3_ref, b3_ref, w4_ref, b4_ref, o_ref):
    # Matmul operands are bf16 (MXU full-rate on v5e/v6e/v7x); accumulation and
    # the elementwise epilogue (bias / ReLU / sigmoid) stay in f32.
    x = x_ref[...]                                                     # (TB, 784) bf16

    h = jnp.dot(x, w1_ref[...], preferred_element_type=jnp.float32)   # (TB, 512) f32
    h = jnp.maximum(h + b1_ref[...], 0.0)                             # bias + ReLU

    z = jnp.dot(h.astype(jnp.bfloat16), w2_ref[...],
                preferred_element_type=jnp.float32)                   # (TB, latent) f32
    z = z + b2_ref[...]                                               # encoder out (no ReLU)

    d = jnp.dot(z.astype(jnp.bfloat16), w3_ref[...],
                preferred_element_type=jnp.float32)                   # (TB, 512) f32
    d = jnp.maximum(d + b3_ref[...], 0.0)

    y = jnp.dot(d.astype(jnp.bfloat16), w4_ref[...],
                preferred_element_type=jnp.float32)                   # (TB, 784) f32
    y = y + b4_ref[...]
    y = pl.reciprocal(1.0 + jnp.exp(-y), approx=True)                 # sigmoid (EUP exp + EUP rcp)

    o_ref[...] = y.astype(o_ref.dtype)                                # bf16, 784-wide store


def _round_up(x, m):
    return ((x + m - 1) // m) * m


def _choose_tile_b(B, tile_b_max):
    # Minimum 16 rows / multiple of 16 (bf16 sublane tile). Prefer >= 2 grid
    # steps when B allows it so the "parallel" batch axis lands on both
    # TensorCores on v7x.
    tb = _round_up(max(-(-B // 2), 16), 16)
    return min(tb, tile_b_max)


def prepare_params(w1, b1, w2, b2, w3, b3, w4, b4):
    """One-time cast of weights to bf16 (MXU) and biases to f32 (epilogue).
    Weights are expected pre-transposed to (in, out) layout."""
    return (w1.astype(jnp.bfloat16), b1.reshape(1, -1).astype(jnp.float32),
            w2.astype(jnp.bfloat16), b2.reshape(1, -1).astype(jnp.float32),
            w3.astype(jnp.bfloat16), b3.reshape(1, -1).astype(jnp.float32),
            w4.astype(jnp.bfloat16), b4.reshape(1, -1).astype(jnp.float32))


def autoencoder_forward(x_nchw, params, *, tile_b_max=512, out_dtype=jnp.float32):
    """x_nchw: (B, 1, 28, 28). params: output of prepare_params().
    Returns (B, 1, 28, 28) out_dtype — same semantics as Autoencoder.forward."""
    w1, b1, w2, b2, w3, b3, w4, b4 = params
    B = x_nchw.shape[0]
    latent = w2.shape[1]

    tile_b = _choose_tile_b(B, tile_b_max)
    b_pad = _round_up(B, tile_b)

    # Single fused flatten + bf16 cast; pad batch rows only if needed.
    x2d = x_nchw.reshape(B, IN_F).astype(jnp.bfloat16)
    if b_pad != B:
        x2d = jnp.pad(x2d, ((0, b_pad - B), (0, 0)))

    const = lambda i: (0, 0)   # weights/biases stay VMEM-resident across grid steps
    out = pl.pallas_call(
        autoencoder_kernel,
        out_shape=jax.ShapeDtypeStruct((b_pad, IN_F), jnp.bfloat16),
        grid=(b_pad // tile_b,),
        in_specs=[
            pl.BlockSpec((tile_b, IN_F), lambda i: (i, 0)),  # x tile
            pl.BlockSpec((IN_F, HID), const),                # w1
            pl.BlockSpec((1, HID), const),                   # b1
            pl.BlockSpec((HID, latent), const),              # w2
            pl.BlockSpec((1, latent), const),                # b2
            pl.BlockSpec((latent, HID), const),              # w3
            pl.BlockSpec((1, HID), const),                   # b3
            pl.BlockSpec((HID, IN_F), const),                # w4
            pl.BlockSpec((1, IN_F), const),                  # b4
        ],
        out_specs=pl.BlockSpec((tile_b, IN_F), lambda i: (i, 0)),
        compiler_params=pltpu.CompilerParams(
            dimension_semantics=("parallel",),               # megacore batch sharding (v7x)
            vmem_limit_bytes=40 << 20),                      # headroom for tile_b=512 on v5e
    )(x2d, w1, b1, w2, b2, w3, b3, w4, b4)

    out = out[:B].astype(out_dtype)
    return out.reshape(B, 1, 28, 28)


if __name__ == "__main__":
    latent_dims = 32
    B = 2

    key = jax.random.PRNGKey(0)
    k_x, k_w1, k_b1, k_w2, k_b2, k_w3, k_b3, k_w4, k_b4 = jax.random.split(key, 9)

    # Parameters generated directly in (in, out) layout (PyTorch Linear stores (out, in)).
    x = jax.random.normal(k_x, (B, 1, 28, 28), dtype=jnp.float32)
    w1 = jax.random.normal(k_w1, (IN_F, HID), dtype=jnp.float32) * 0.02
    b1 = jax.random.normal(k_b1, (HID,), dtype=jnp.float32) * 0.02
    w2 = jax.random.normal(k_w2, (HID, latent_dims), dtype=jnp.float32) * 0.02
    b2 = jax.random.normal(k_b2, (latent_dims,), dtype=jnp.float32) * 0.02
    w3 = jax.random.normal(k_w3, (latent_dims, HID), dtype=jnp.float32) * 0.02
    b3 = jax.random.normal(k_b3, (HID,), dtype=jnp.float32) * 0.02
    w4 = jax.random.normal(k_w4, (HID, IN_F), dtype=jnp.float32) * 0.02
    b4 = jax.random.normal(k_b4, (IN_F,), dtype=jnp.float32) * 0.02

    # One-time parameter prep (hoisted out of the per-call hot path).
    params = prepare_params(w1, b1, w2, b2, w3, b3, w4, b4)

    fwd = jax.jit(autoencoder_forward)
    out = jax.block_until_ready(fwd(x, params))

    # Pure-JAX f32 reference (tolerance loosened for bf16 matmuls / bf16 output).
    x2d = x.reshape(B, -1)
    h = jnp.maximum(x2d @ w1 + b1, 0.0)
    z = h @ w2 + b2
    d = jnp.maximum(z @ w3 + b3, 0.0)
    ref = jax.nn.sigmoid(d @ w4 + b4).reshape(B, 1, 28, 28)

    assert out.shape == (B, 1, 28, 28)
    assert out.dtype == jnp.float32
    assert jnp.allclose(out, ref, atol=2e-2, rtol=2e-2), float(jnp.max(jnp.abs(out - ref)))

    print("KERNEL_OK")
</pallas_src>

<mosaic_0001>
module attributes {stable_mosaic.version = 11 : i64} {
  func.func @autoencoder_kernel(%arg0: i32, %arg1: memref<16x784xbf16, #tpu.memory_space<vmem>>, %arg2: memref<784x512xbf16, #tpu.memory_space<vmem>>, %arg3: memref<1x512xf32, #tpu.memory_space<vmem>>, %arg4: memref<512x32xbf16, #tpu.memory_space<vmem>>, %arg5: memref<1x32xf32, #tpu.memory_space<vmem>>, %arg6: memref<32x512xbf16, #tpu.memory_space<vmem>>, %arg7: memref<1x512xf32, #tpu.memory_space<vmem>>, %arg8: memref<512x784xbf16, #tpu.memory_space<vmem>>, %arg9: memref<1x784xf32, #tpu.memory_space<vmem>>, %arg10: memref<16x784xbf16, #tpu.memory_space<vmem>>) attributes {dimension_semantics = [#tpu.dimension_semantics<parallel>], iteration_bounds = array<i64: 1>, scalar_prefetch = 0 : i64, scratch_operands = 0 : i64, tpu.core_type = #tpu.core_type<tc>, window_params = [{transform_indices = @transform_0, window_bounds = array<i64: 16, 784>}, {pipeline_mode = #tpu.pipeline_mode<synchronous>, transform_indices = @transform_1, window_bounds = array<i64: 784, 512>}, {pipeline_mode = #tpu.pipeline_mode<synchronous>, transform_indices = @transform_2, window_bounds = array<i64: 1, 512>}, {pipeline_mode = #tpu.pipeline_mode<synchronous>, transform_indices = @transform_3, window_bounds = array<i64: 512, 32>}, {pipeline_mode = #tpu.pipeline_mode<synchronous>, transform_indices = @transform_4, window_bounds = array<i64: 1, 32>}, {pipeline_mode = #tpu.pipeline_mode<synchronous>, transform_indices = @transform_5, window_bounds = array<i64: 32, 512>}, {pipeline_mode = #tpu.pipeline_mode<synchronous>, transform_indices = @transform_6, window_bounds = array<i64: 1, 512>}, {pipeline_mode = #tpu.pipeline_mode<synchronous>, transform_indices = @transform_7, window_bounds = array<i64: 512, 784>}, {pipeline_mode = #tpu.pipeline_mode<synchronous>, transform_indices = @transform_8, window_bounds = array<i64: 1, 784>}, {transform_indices = @transform_9, window_bounds = array<i64: 16, 784>}]} {
    %c0 = arith.constant 0 : index
    %c0_0 = arith.constant 0 : index
    %0 = vector.load %arg1[%c0, %c0_0] : memref<16x784xbf16, #tpu.memory_space<vmem>>, vector<16x784xbf16>
    %c0_1 = arith.constant 0 : index
    %c0_2 = arith.constant 0 : index
    %1 = vector.load %arg2[%c0_1, %c0_2] : memref<784x512xbf16, #tpu.memory_space<vmem>>, vector<784x512xbf16>
    %cst = arith.constant dense<0.000000e+00> : vector<16x512xf32>
    %2 = tpu.matmul %0, %1, %cst {dimension_numbers = #tpu.dot_dimension_numbers<[1], [0], [0], [1], [0, 0, 1, 1], [], []>} : vector<16x784xbf16>, vector<784x512xbf16>, vector<16x512xf32> -> vector<16x512xf32>
    %c0_3 = arith.constant 0 : index
    %c0_4 = arith.constant 0 : index
    %3 = vector.load %arg3[%c0_3, %c0_4] : memref<1x512xf32, #tpu.memory_space<vmem>>, vector<1x512xf32>
    %4 = vector.broadcast %3 : vector<1x512xf32> to vector<16x512xf32>
    %5 = arith.addf %2, %4 : vector<16x512xf32>
    %cst_5 = arith.constant 0.000000e+00 : f32
    %6 = vector.broadcast %cst_5 : f32 to vector<16x512xf32>
    %7 = arith.maximumf %5, %6 : vector<16x512xf32>
    %8 = arith.truncf %7 : vector<16x512xf32> to vector<16x512xbf16>
    %c0_6 = arith.constant 0 : index
    %c0_7 = arith.constant 0 : index
    %9 = vector.load %arg4[%c0_6, %c0_7] : memref<512x32xbf16, #tpu.memory_space<vmem>>, vector<512x32xbf16>
    %cst_8 = arith.constant dense<0.000000e+00> : vector<16x32xf32>
    %10 = tpu.matmul %8, %9, %cst_8 {dimension_numbers = #tpu.dot_dimension_numbers<[1], [0], [0], [1], [0, 0, 1, 1], [], []>} : vector<16x512xbf16>, vector<512x32xbf16>, vector<16x32xf32> -> vector<16x32xf32>
    %c0_9 = arith.constant 0 : index
    %c0_10 = arith.constant 0 : index
    %11 = vector.load %arg5[%c0_9, %c0_10] : memref<1x32xf32, #tpu.memory_space<vmem>>, vector<1x32xf32>
    %12 = vector.broadcast %11 : vector<1x32xf32> to vector<16x32xf32>
    %13 = arith.addf %10, %12 : vector<16x32xf32>
    %14 = arith.truncf %13 : vector<16x32xf32> to vector<16x32xbf16>
    %c0_11 = arith.constant 0 : index
    %c0_12 = arith.constant 0 : index
    %15 = vector.load %arg6[%c0_11, %c0_12] : memref<32x512xbf16, #tpu.memory_space<vmem>>, vector<32x512xbf16>
    %cst_13 = arith.constant dense<0.000000e+00> : vector<16x512xf32>
    %16 = tpu.matmul %14, %15, %cst_13 {dimension_numbers = #tpu.dot_dimension_numbers<[1], [0], [0], [1], [0, 0, 1, 1], [], []>} : vector<16x32xbf16>, vector<32x512xbf16>, vector<16x512xf32> -> vector<16x512xf32>
    %c0_14 = arith.constant 0 : index
    %c0_15 = arith.constant 0 : index
    %17 = vector.load %arg7[%c0_14, %c0_15] : memref<1x512xf32, #tpu.memory_space<vmem>>, vector<1x512xf32>
    %18 = vector.broadcast %17 : vector<1x512xf32> to vector<16x512xf32>
    %19 = arith.addf %16, %18 : vector<16x512xf32>
    %cst_16 = arith.constant 0.000000e+00 : f32
    %20 = vector.broadcast %cst_16 : f32 to vector<16x512xf32>
    %21 = arith.maximumf %19, %20 : vector<16x512xf32>
    %22 = arith.truncf %21 : vector<16x512xf32> to vector<16x512xbf16>
    %c0_17 = arith.constant 0 : index
    %c0_18 = arith.constant 0 : index
    %23 = vector.load %arg8[%c0_17, %c0_18] : memref<512x784xbf16, #tpu.memory_space<vmem>>, vector<512x784xbf16>
    %cst_19 = arith.constant dense<0.000000e+00> : vector<16x784xf32>
    %24 = tpu.matmul %22, %23, %cst_19 {dimension_numbers = #tpu.dot_dimension_numbers<[1], [0], [0], [1], [0, 0, 1, 1], [], []>} : vector<16x512xbf16>, vector<512x784xbf16>, vector<16x784xf32> -> vector<16x784xf32>
    %c0_20 = arith.constant 0 : index
    %c0_21 = arith.constant 0 : index
    %25 = vector.load %arg9[%c0_20, %c0_21] : memref<1x784xf32, #tpu.memory_space<vmem>>, vector<1x784xf32>
    %26 = vector.broadcast %25 : vector<1x784xf32> to vector<16x784xf32>
    %27 = arith.addf %24, %26 : vector<16x784xf32>
    %cst_22 = arith.constant 0.000000e+00 : f32
    %28 = vector.broadcast %cst_22 : f32 to vector<16x784xf32>
    %29 = arith.subf %28, %27 : vector<16x784xf32>
    %30 = math.exp %29 : vector<16x784xf32>
    %cst_23 = arith.constant 1.000000e+00 : f32
    %31 = vector.broadcast %cst_23 : f32 to vector<16x784xf32>
    %32 = arith.addf %31, %30 : vector<16x784xf32>
    %33 = tpu.reciprocal %32 {approx = true} : vector<16x784xf32> -> vector<16x784xf32>
    %34 = arith.truncf %33 : vector<16x784xf32> to vector<16x784xbf16>
    %c0_24 = arith.constant 0 : index
    %c0_25 = arith.constant 0 : index
    %35 = vector.load %arg10[%c0_24, %c0_25] : memref<16x784xbf16, #tpu.memory_space<vmem>>, vector<16x784xbf16>
    tpu.vector_store %arg10[%c0_24, %c0_25], %34 {strides = array<i32>} : memref<16x784xbf16, #tpu.memory_space<vmem>>, vector<16x784xbf16>,
    return
  }
  func.func @transform_0(%arg0: i32) -> (i32, i32) {
    %c0_i32 = arith.constant 0 : i32
    %c0_i32_0 = arith.constant 0 : i32
    return %arg0, %c0_i32 : i32, i32
  }
  func.func @transform_1(%arg0: i32) -> (i32, i32) {
    %c0_i32 = arith.constant 0 : i32
    %c0_i32_0 = arith.constant 0 : i32
    %c0_i32_1 = arith.constant 0 : i32
    return %c0_i32, %c0_i32_0 : i32, i32
  }
  func.func @transform_2(%arg0: i32) -> (i32, i32) {
    %c0_i32 = arith.constant 0 : i32
    %c0_i32_0 = arith.constant 0 : i32
    %c0_i32_1 = arith.constant 0 : i32
    return %c0_i32, %c0_i32_0 : i32, i32
  }
  func.func @transform_3(%arg0: i32) -> (i32, i32) {
    %c0_i32 = arith.constant 0 : i32
    %c0_i32_0 = arith.constant 0 : i32
    %c0_i32_1 = arith.constant 0 : i32
    return %c0_i32, %c0_i32_0 : i32, i32
  }
  func.func @transform_4(%arg0: i32) -> (i32, i32) {
    %c0_i32 = arith.constant 0 : i32
    %c0_i32_0 = arith.constant 0 : i32
    %c0_i32_1 = arith.constant 0 : i32
    return %c0_i32, %c0_i32_0 : i32, i32
  }
  func.func @transform_5(%arg0: i32) -> (i32, i32) {
    %c0_i32 = arith.constant 0 : i32
    %c0_i32_0 = arith.constant 0 : i32
    %c0_i32_1 = arith.constant 0 : i32
    return %c0_i32, %c0_i32_0 : i32, i32
  }
  func.func @transform_6(%arg0: i32) -> (i32, i32) {
    %c0_i32 = arith.constant 0 : i32
    %c0_i32_0 = arith.constant 0 : i32
    %c0_i32_1 = arith.constant 0 : i32
    return %c0_i32, %c0_i32_0 : i32, i32
  }
  func.func @transform_7(%arg0: i32) -> (i32, i32) {
    %c0_i32 = arith.constant 0 : i32
    %c0_i32_0 = arith.constant 0 : i32
    %c0_i32_1 = arith.constant 0 : i32
    return %c0_i32, %c0_i32_0 : i32, i32
  }
  func.func @transform_8(%arg0: i32) -> (i32, i32) {
    %c0_i32 = arith.constant 0 : i32
    %c0_i32_0 = arith.constant 0 : i32
    %c0_i32_1 = arith.constant 0 : i32
    return %c0_i32, %c0_i32_0 : i32, i32
  }
  func.func @transform_9(%arg0: i32) -> (i32, i32) {
    %c0_i32 = arith.constant 0 : i32
    %c0_i32_0 = arith.constant 0 : i32
    return %arg0, %c0_i32 : i32, i32
  }
}

</mosaic_0001>

<llo_original>
// kernel: autoencoder_forward.1
$region0: #{autoencoder_forward.1}
  #allocation0 [shape = 'u32[]', space=smem, size = 0x4, offset = 0x4, fixed_abs, tag = 'smem constant byte address 0x4 - core index']
  #allocation1 [shape = 'u32[144,128]{1,0:T(1,128)}', space=vmem, size = 0x12000, scoped, tag = 'internal scratch']
  %s0 = inlined_call_operand.vmem [shape: bf16[16,784], index: 0, kind: input, shape index: {}]
  %s1 = inlined_call_operand.vmem [shape: bf16[784,512], index: 1, kind: input, shape index: {}]
  %s2 = inlined_call_operand.vmem [shape: f32[1,512], index: 2, kind: input, shape index: {}]
  %s3 = inlined_call_operand.vmem [shape: bf16[512,32], index: 3, kind: input, shape index: {}]
  %s4 = inlined_call_operand.vmem [shape: f32[1,32], index: 4, kind: input, shape index: {}]
  %s5 = inlined_call_operand.vmem [shape: bf16[32,512], index: 5, kind: input, shape index: {}]
  %s6 = inlined_call_operand.vmem [shape: f32[1,512], index: 6, kind: input, shape index: {}]
  %s7 = inlined_call_operand.vmem [shape: bf16[512,784], index: 7, kind: input, shape index: {}]
  %s8 = inlined_call_operand.vmem [shape: f32[1,784], index: 8, kind: input, shape index: {}]
  %s9 = inlined_call_operand.vmem [shape: bf16[16,784], index: 9, kind: output, shape index: {}]
  %s10 = sld [smem:[#allocation0]]
  $region46: #{autoencoder_forward.1} parent=0
    _
  %s12 = ssub.s32 1, %s10
  %s13 = scalar_select 0, %s12, %s10
  // Predicated region
  $region2: #{autoencoder_forward.1} parent=0 // pred_check
    _
  $region3: #{autoencoder_forward.1} parent=0 // pred_check_branch
    %15 = sbr.rel (0) target = $region5
  $region4: #{autoencoder_forward.1} parent=0 // pred_region
    _
  $region5: #{autoencoder_forward.1} parent=0 // pred_fallthru
    _
  // Predicated region
  $region6: #{autoencoder_forward.1} parent=0 // pred_check
    _
  $region7: #{autoencoder_forward.1} parent=0 // pred_check_branch
    %17 = sbr.rel (0) target = $region9
  $region8: #{autoencoder_forward.1} parent=0 // pred_region
    _
  $region9: #{autoencoder_forward.1} parent=0 // pred_fallthru
    _
  // Predicated region
  $region10: #{autoencoder_forward.1} parent=0 // pred_check
    _
  $region11: #{autoencoder_forward.1} parent=0 // pred_check_branch
    %19 = sbr.rel (0) target = $region13
  $region12: #{autoencoder_forward.1} parent=0 // pred_region
    _
  $region13: #{autoencoder_forward.1} parent=0 // pred_fallthru
    _
  // Predicated region
  $region14: #{autoencoder_forward.1} parent=0 // pred_check
    _
  $region15: #{autoencoder_forward.1} parent=0 // pred_check_branch
    %21 = sbr.rel (0) target = $region17
  $region16: #{autoencoder_forward.1} parent=0 // pred_region
    _
  $region17: #{autoencoder_forward.1} parent=0 // pred_fallthru
    _
  // Predicated region
  $region18: #{autoencoder_forward.1} parent=0 // pred_check
    _
  $region19: #{autoencoder_forward.1} parent=0 // pred_check_branch
    %23 = sbr.rel (0) target = $region21
  $region20: #{autoencoder_forward.1} parent=0 // pred_region
    _
  $region21: #{autoencoder_forward.1} parent=0 // pred_fallthru
    _
  // Predicated region
  $region22: #{autoencoder_forward.1} parent=0 // pred_check
    _
  $region23: #{autoencoder_forward.1} parent=0 // pred_check_branch
    %25 = sbr.rel (0) target = $region25
  $region24: #{autoencoder_forward.1} parent=0 // pred_region
    _
  $region25: #{autoencoder_forward.1} parent=0 // pred_fallthru
    _
  // Predicated region
  $region26: #{autoencoder_forward.1} parent=0 // pred_check
    _
  $region27: #{autoencoder_forward.1} parent=0 // pred_check_branch
    %27 = sbr.rel (0) target = $region29
  $region28: #{autoencoder_forward.1} parent=0 // pred_region
    _
  $region29: #{autoencoder_forward.1} parent=0 // pred_fallthru
    _
  // Predicated region
  $region30: #{autoencoder_forward.1} parent=0 // pred_check
    _
  $region31: #{autoencoder_forward.1} parent=0 // pred_check_branch
    %29 = sbr.rel (0) target = $region33
  $region32: #{autoencoder_forward.1} parent=0 // pred_region
    _
  $region33: #{autoencoder_forward.1} parent=0 // pred_fallthru
    _
  // Predicated region
  $region34: #{autoencoder_forward.1} parent=0 // pred_check
    _
  $region35: #{autoencoder_forward.1} parent=0 // pred_check_branch
    %31 = sbr.rel (0) target = $region37
  $region36: #{autoencoder_forward.1} parent=0 // pred_region
    _
  $region37: #{autoencoder_forward.1} parent=0 // pred_fallthru
    _
  %v33 = vld [vmem:[%s0] sm:$0xff]
  %v34 = vld [vmem:[%s0 + $0x8] sm:$0xff]
  %v35 = vld [vmem:[%s0 + $0x10] sm:$0xff]
  %v36 = vld [vmem:[%s0 + $0x18] sm:$0xf]
  %v37 = vld [vmem:[%s0 + $0x1c] sm:$0xff]
  %v38 = vld [vmem:[%s0 + $0x24] sm:$0xff]
  %v39 = vld [vmem:[%s0 + $0x2c] sm:$0xff]
  %v40 = vld [vmem:[%s0 + $0x34] sm:$0xf]
  %v41 = vld [vmem:[%s1] sm:$0xff]
  %v42 = vld [vmem:[%s1 + $0x8] sm:$0xff]
  %v43 = vld [vmem:[%s1 + $0x10] sm:$0xff]
  %v44 = vld [vmem:[%s1 + $0x18] sm:$0xff]
  %v45 = vld [vmem:[%s1 + $0x20] sm:$0xff]
  %v46 = vld [vmem:[%s1 + $0x28] sm:$0xff]
  %v47 = vld [vmem:[%s1 + $0x30] sm:$0xff]
  %v48 = vld [vmem:[%s1 + $0x38] sm:$0xff]
  %v49 = vld [vmem:[%s1 + $0x40] sm:$0xff]
  %v50 = vld [vmem:[%s1 + $0x48] sm:$0xff]
  %v51 = vld [vmem:[%s1 + $0x50] sm:$0xff]
  %v52 = vld [vmem:[%s1 + $0x58] sm:$0xff]
  %v53 = vld [vmem:[%s1 + $0x60] sm:$0xff]
  %v54 = vld [vmem:[%s1 + $0x68] sm:$0xff]
  %v55 = vld [vmem:[%s1 + $0x70] sm:$0xff]
  %v56 = vld [vmem:[%s1 + $0x78] sm:$0xff]
  %v57 = vld [vmem:[%s1 + $0x80] sm:$0xff]
  %v58 = vld [vmem:[%s1 + $0x88] sm:$0xff]
  %v59 = vld [vmem:[%s1 + $0x90] sm:$0xff]
  %v60 = vld [vmem:[%s1 + $0x98] sm:$0xff]
  %v61 = vld [vmem:[%s1 + $0xa0] sm:$0xff]
  %v62 = vld [vmem:[%s1 + $0xa8] sm:$0xff]
  %v63 = vld [vmem:[%s1 + $0xb0] sm:$0xff]
  %v64 = vld [vmem:[%s1 + $0xb8] sm:$0xff]
  %v65 = vld [vmem:[%s1 + $0xc0] sm:$0xff]
  %v66 = vld [vmem:[%s1 + $0xc8] sm:$0xff]
  %v67 = vld [vmem:[%s1 + $0xd0] sm:$0xff]
  %v68 = vld [vmem:[%s1 + $0xd8] sm:$0xff]
  %v69 = vld [vmem:[%s1 + $0xe0] sm:$0xff]
  %v70 = vld [vmem:[%s1 + $0xe8] sm:$0xff]
  %v71 = vld [vmem:[%s1 + $0xf0] sm:$0xff]
  %v72 = vld [vmem:[%s1 + $0xf8] sm:$0xff]
  %v73 = vld [vmem:[%s1 + $0x100] sm:$0xff]
  %v74 = vld [vmem:[%s1 + $0x108] sm:$0xff]
  %v75 = vld [vmem:[%s1 + $0x110] sm:$0xff]
  %v76 = vld [vmem:[%s1 + $0x118] sm:$0xff]
  %v77 = vld [vmem:[%s1 + $0x120] sm:$0xff]
  %v78 = vld [vmem:[%s1 + $0x128] sm:$0xff]
  %v79 = vld [vmem:[%s1 + $0x130] sm:$0xff]
  %v80 = vld [vmem:[%s1 + $0x138] sm:$0xff]
  %v81 = vld [vmem:[%s1 + $0x140] sm:$0xff]
  %v82 = vld [vmem:[%s1 + $0x148] sm:$0xff]
  %v83 = vld [vmem:[%s1 + $0x150] sm:$0xff]
  %v84 = vld [vmem:[%s1 + $0x158] sm:$0xff]
  %v85 = vld [vmem:[%s1 + $0x160] sm:$0xff]
  %v86 = vld [vmem:[%s1 + $0x168] sm:$0xff]
  %v87 = vld [vmem:[%s1 + $0x170] sm:$0xff]
  %v88 = vld [vmem:[%s1 + $0x178] sm:$0xff]
  %v89 = vld [vmem:[%s1 + $0x180] sm:$0xff]
  %v90 = vld [vmem:[%s1 + $0x188] sm:$0xff]
  %v91 = vld [vmem:[%s1 + $0x190] sm:$0xff]
  %v92 = vld [vmem:[%s1 + $0x198] sm:$0xff]
  %v93 = vld [vmem:[%s1 + $0x1a0] sm:$0xff]
  %v94 = vld [vmem:[%s1 + $0x1a8] sm:$0xff]
  %v95 = vld [vmem:[%s1 + $0x1b0] sm:$0xff]
  %v96 = vld [vmem:[%s1 + $0x1b8] sm:$0xff]
  %v97 = vld [vmem:[%s1 + $0x1c0] sm:$0xff]
  %v98 = vld [vmem:[%s1 + $0x1c8] sm:$0xff]
  %v99 = vld [vmem:[%s1 + $0x1d0] sm:$0xff]
  %v100 = vld [vmem:[%s1 + $0x1d8] sm:$0xff]
  %v101 = vld [vmem:[%s1 + $0x1e0] sm:$0xff]
  %v102 = vld [vmem:[%s1 + $0x1e8] sm:$0xff]
  %v103 = vld [vmem:[%s1 + $0x1f0] sm:$0xff]
  %v104 = vld [vmem:[%s1 + $0x1f8] sm:$0xff]
  %v105 = vld [vmem:[%s1 + $0x200] sm:$0xff]
  %v106 = vld [vmem:[%s1 + $0x208] sm:$0xff]
  %v107 = vld [vmem:[%s1 + $0x210] sm:$0xff]
  %v108 = vld [vmem:[%s1 + $0x218] sm:$0xff]
  %v109 = vld [vmem:[%s1 + $0x220] sm:$0xff]
  %v110 = vld [vmem:[%s1 + $0x228] sm:$0xff]
  %v111 = vld [vmem:[%s1 + $0x230] sm:$0xff]
  %v112 = vld [vmem:[%s1 + $0x238] sm:$0xff]
  %v113 = vld [vmem:[%s1 + $0x240] sm:$0xff]
  %v114 = vld [vmem:[%s1 + $0x248] sm:$0xff]
  %v115 = vld [vmem:[%s1 + $0x250] sm:$0xff]
  %v116 = vld [vmem:[%s1 + $0x258] sm:$0xff]
  %v117 = vld [vmem:[%s1 + $0x260] sm:$0xff]
  %v118 = vld [vmem:[%s1 + $0x268] sm:$0xff]
  %v119 = vld [vmem:[%s1 + $0x270] sm:$0xff]
  %v120 = vld [vmem:[%s1 + $0x278] sm:$0xff]
  %v121 = vld [vmem:[%s1 + $0x280] sm:$0xff]
  %v122 = vld [vmem:[%s1 + $0x288] sm:$0xff]
  %v123 = vld [vmem:[%s1 + $0x290] sm:$0xff]
  %v124 = vld [vmem:[%s1 + $0x298] sm:$0xff]
  %v125 = vld [vmem:[%s1 + $0x2a0] sm:$0xff]
  %v126 = vld [vmem:[%s1 + $0x2a8] sm:$0xff]
  %v127 = vld [vmem:[%s1 + $0x2b0] sm:$0xff]
  %v128 = vld [vmem:[%s1 + $0x2b8] sm:$0xff]
  %v129 = vld [vmem:[%s1 + $0x2c0] sm:$0xff]
  %v130 = vld [vmem:[%s1 + $0x2c8] sm:$0xff]
  %v131 = vld [vmem:[%s1 + $0x2d0] sm:$0xff]
  %v132 = vld [vmem:[%s1 + $0x2d8] sm:$0xff]
  %v133 = vld [vmem:[%s1 + $0x2e0] sm:$0xff]
  %v134 = vld [vmem:[%s1 + $0x2e8] sm:$0xff]
  %v135 = vld [vmem:[%s1 + $0x2f0] sm:$0xff]
  %v136 = vld [vmem:[%s1 + $0x2f8] sm:$0xff]
  %v137 = vld [vmem:[%s1 + $0x300] sm:$0xff]
  %v138 = vld [vmem:[%s1 + $0x308] sm:$0xff]
  %v139 = vld [vmem:[%s1 + $0x310] sm:$0xff]
  %v140 = vld [vmem:[%s1 + $0x318] sm:$0xff]
  %v141 = vld [vmem:[%s1 + $0x320] sm:$0xff]
  %v142 = vld [vmem:[%s1 + $0x328] sm:$0xff]
  %v143 = vld [vmem:[%s1 + $0x330] sm:$0xff]
  %v144 = vld [vmem:[%s1 + $0x338] sm:$0xff]
  %v145 = vld [vmem:[%s1 + $0x340] sm:$0xff]
  %v146 = vld [vmem:[%s1 + $0x348] sm:$0xff]
  %v147 = vld [vmem:[%s1 + $0x350] sm:$0xff]
  %v148 = vld [vmem:[%s1 + $0x358] sm:$0xff]
  %v149 = vld [vmem:[%s1 + $0x360] sm:$0xff]
  %v150 = vld [vmem:[%s1 + $0x368] sm:$0xff]
  %v151 = vld [vmem:[%s1 + $0x370] sm:$0xff]
  %v152 = vld [vmem:[%s1 + $0x378] sm:$0xff]
  %v153 = vld [vmem:[%s1 + $0x380] sm:$0xff]
  %v154 = vld [vmem:[%s1 + $0x388] sm:$0xff]
  %v155 = vld [vmem:[%s1 + $0x390] sm:$0xff]
  %v156 = vld [vmem:[%s1 + $0x398] sm:$0xff]
  %v157 = vld [vmem:[%s1 + $0x3a0] sm:$0xff]
  %v158 = vld [vmem:[%s1 + $0x3a8] sm:$0xff]
  %v159 = vld [vmem:[%s1 + $0x3b0] sm:$0xff]
  %v160 = vld [vmem:[%s1 + $0x3b8] sm:$0xff]
  %v161 = vld [vmem:[%s1 + $0x3c0] sm:$0xff]
  %v162 = vld [vmem:[%s1 + $0x3c8] sm:$0xff]
  %v163 = vld [vmem:[%s1 + $0x3d0] sm:$0xff]
  %v164 = vld [vmem:[%s1 + $0x3d8] sm:$0xff]
  %v165 = vld [vmem:[%s1 + $0x3e0] sm:$0xff]
  %v166 = vld [vmem:[%s1 + $0x3e8] sm:$0xff]
  %v167 = vld [vmem:[%s1 + $0x3f0] sm:$0xff]
  %v168 = vld [vmem:[%s1 + $0x3f8] sm:$0xff]
  %v169 = vld [vmem:[%s1 + $0x400] sm:$0xff]
  %v170 = vld [vmem:[%s1 + $0x408] sm:$0xff]
  %v171 = vld [vmem:[%s1 + $0x410] sm:$0xff]
  %v172 = vld [vmem:[%s1 + $0x418] sm:$0xff]
  %v173 = vld [vmem:[%s1 + $0x420] sm:$0xff]
  %v174 = vld [vmem:[%s1 + $0x428] sm:$0xff]
  %v175 = vld [vmem:[%s1 + $0x430] sm:$0xff]
  %v176 = vld [vmem:[%s1 + $0x438] sm:$0xff]
  %v177 = vld [vmem:[%s1 + $0x440] sm:$0xff]
  %v178 = vld [vmem:[%s1 + $0x448] sm:$0xff]
  %v179 = vld [vmem:[%s1 + $0x450] sm:$0xff]
  %v180 = vld [vmem:[%s1 + $0x458] sm:$0xff]
  %v181 = vld [vmem:[%s1 + $0x460] sm:$0xff]
  %v182 = vld [vmem:[%s1 + $0x468] sm:$0xff]
  %v183 = vld [vmem:[%s1 + $0x470] sm:$0xff]
  %v184 = vld [vmem:[%s1 + $0x478] sm:$0xff]
  %v185 = vld [vmem:[%s1 + $0x480] sm:$0xff]
  %v186 = vld [vmem:[%s1 + $0x488] sm:$0xff]
  %v187 = vld [vmem:[%s1 + $0x490] sm:$0xff]
  %v188 = vld [vmem:[%s1 + $0x498] sm:$0xff]
  %v189 = vld [vmem:[%s1 + $0x4a0] sm:$0xff]
  %v190 = vld [vmem:[%s1 + $0x4a8] sm:$0xff]
  %v191 = vld [vmem:[%s1 + $0x4b0] sm:$0xff]
  %v192 = vld [vmem:[%s1 + $0x4b8] sm:$0xff]
  %v193 = vld [vmem:[%s1 + $0x4c0] sm:$0xff]
  %v194 = vld [vmem:[%s1 + $0x4c8] sm:$0xff]
  %v195 = vld [vmem:[%s1 + $0x4d0] sm:$0xff]
  %v196 = vld [vmem:[%s1 + $0x4d8] sm:$0xff]
  %v197 = vld [vmem:[%s1 + $0x4e0] sm:$0xff]
  %v198 = vld [vmem:[%s1 + $0x4e8] sm:$0xff]
  %v199 = vld [vmem:[%s1 + $0x4f0] sm:$0xff]
  %v200 = vld [vmem:[%s1 + $0x4f8] sm:$0xff]
  %v201 = vld [vmem:[%s1 + $0x500] sm:$0xff]
  %v202 = vld [vmem:[%s1 + $0x508] sm:$0xff]
  %v203 = vld [vmem:[%s1 + $0x510] sm:$0xff]
  %v204 = vld [vmem:[%s1 + $0x518] sm:$0xff]
  %v205 = vld [vmem:[%s1 + $0x520] sm:$0xff]
  %v206 = vld [vmem:[%s1 + $0x528] sm:$0xff]
  %v207 = vld [vmem:[%s1 + $0x530] sm:$0xff]
  %v208 = vld [vmem:[%s1 + $0x538] sm:$0xff]
  %v209 = vld [vmem:[%s1 + $0x540] sm:$0xff]
  %v210 = vld [vmem:[%s1 + $0x548] sm:$0xff]
  %v211 = vld [vmem:[%s1 + $0x550] sm:$0xff]
  %v212 = vld [vmem:[%s1 + $0x558] sm:$0xff]
  %v213 = vld [vmem:[%s1 + $0x560] sm:$0xff]
  %v214 = vld [vmem:[%s1 + $0x568] sm:$0xff]
  %v215 = vld [vmem:[%s1 + $0x570] sm:$0xff]
  %v216 = vld [vmem:[%s1 + $0x578] sm:$0xff]
  %v217 = vld [vmem:[%s1 + $0x580] sm:$0xff]
  %v218 = vld [vmem:[%s1 + $0x588] sm:$0xff]
  %v219 = vld [vmem:[%s1 + $0x590] sm:$0xff]
  %v220 = vld [vmem:[%s1 + $0x598] sm:$0xff]
  %v221 = vld [vmem:[%s1 + $0x5a0] sm:$0xff]
  %v222 = vld [vmem:[%s1 + $0x5a8] sm:$0xff]
  %v223 = vld [vmem:[%s1 + $0x5b0] sm:$0xff]
  %v224 = vld [vmem:[%s1 + $0x5b8] sm:$0xff]
  %v225 = vld [vmem:[%s1 + $0x5c0] sm:$0xff]
  %v226 = vld [vmem:[%s1 + $0x5c8] sm:$0xff]
  %v227 = vld [vmem:[%s1 + $0x5d0] sm:$0xff]
  %v228 = vld [vmem:[%s1 + $0x5d8] sm:$0xff]
  %v229 = vld [vmem:[%s1 + $0x5e0] sm:$0xff]
  %v230 = vld [vmem:[%s1 + $0x5e8] sm:$0xff]
  %v231 = vld [vmem:[%s1 + $0x5f0] sm:$0xff]
  %v232 = vld [vmem:[%s1 + $0x5f8] sm:$0xff]
  %v233 = vld [vmem:[%s1 + $0x600] sm:$0xff]
  %v234 = vld [vmem:[%s1 + $0x608] sm:$0xff]
  %v235 = vld [vmem:[%s1 + $0x610] sm:$0xff]
  %v236 = vld [vmem:[%s1 + $0x618] sm:$0xff]
  %v237 = vld [vmem:[%s2] sm:$0xf]
  %v239 = vlaneseq
  %v240 = vshrl.u32 %v239, 7
  %v241 = vsub.s32 0, %v240
  %v242 = vrot.slane %v237, %v241
  %v243 = vlaneseq
  %v244 = vshrl.u32 %v243, 7
  %v245 = vsub.s32 1, %v244
  %v246 = vrot.slane %v237, %v245
  %v247 = vlaneseq
  %v248 = vshrl.u32 %v247, 7
  %v249 = vsub.s32 2, %v248
  %v250 = vrot.slane %v237, %v249
  %v251 = vlaneseq
  %v252 = vshrl.u32 %v251, 7
  %v253 = vsub.s32 3, %v252
  %v254 = vrot.slane %v237, %v253
  %v267 = vunpack.c.l.b16 %v33
  %v268 = vunpack.c.h.b16 %v33
  %v269 = vunpack.c.l.b16 %v34
  %v270 = vunpack.c.h.b16 %v34
  %v271 = vunpack.c.l.b16 %v35
  %v272 = vunpack.c.h.b16 %v35
  %v273 = vunpack.c.l.b16 %v36
  %v274 = vunpack.c.l.b16 %v37
  %v275 = vunpack.c.h.b16 %v37
  %v276 = vunpack.c.l.b16 %v38
  %v277 = vunpack.c.h.b16 %v38
  %v278 = vunpack.c.l.b16 %v39
  %v279 = vunpack.c.h.b16 %v39
  %v280 = vunpack.c.l.b16 %v40
  %v281 = vpack.c.b16 %v274, %v267
  %v282 = vpack.c.b16 %v275, %v268
  %v283 = vpack.c.b16 %v276, %v269
  %v284 = vpack.c.b16 %v277, %v270
  %v285 = vpack.c.b16 %v278, %v271
  %v286 = vpack.c.b16 %v279, %v272
  %v287 = vpack.c.b16 %v280, %v273
  %v490 = vunpack.c.l.b16 %v41
  %v491 = vunpack.c.h.b16 %v41
  %v492 = vunpack.c.l.b16 %v42
  %v493 = vunpack.c.h.b16 %v42
  %v494 = vunpack.c.l.b16 %v43
  %v495 = vunpack.c.h.b16 %v43
  %v496 = vunpack.c.l.b16 %v44
  %v497 = vunpack.c.h.b16 %v44
  %v498 = vunpack.c.l.b16 %v45
  %v499 = vunpack.c.h.b16 %v45
  %v500 = vunpack.c.l.b16 %v46
  %v501 = vunpack.c.h.b16 %v46
  %v502 = vunpack.c.l.b16 %v47
  %v503 = vunpack.c.h.b16 %v47
  %v504 = vunpack.c.l.b16 %v48
  %v505 = vunpack.c.h.b16 %v48
  %v506 = vunpack.c.l.b16 %v49
  %v507 = vunpack.c.h.b16 %v49
  %v508 = vunpack.c.l.b16 %v50
  %v509 = vunpack.c.h.b16 %v50
  %v510 = vunpack.c.l.b16 %v51
  %v511 = vunpack.c.h.b16 %v51
  %v512 = vunpack.c.l.b16 %v52
  %v513 = vunpack.c.h.b16 %v52
  %v514 = vunpack.c.l.b16 %v53
  %v515 = vunpack.c.h.b16 %v53
  %v516 = vunpack.c.l.b16 %v54
  %v517 = vunpack.c.h.b16 %v54
  %v518 = vunpack.c.l.b16 %v55
  %v519 = vunpack.c.h.b16 %v55
  %v520 = vunpack.c.l.b16 %v56
  %v521 = vunpack.c.h.b16 %v56
  %v522 = vunpack.c.l.b16 %v57
  %v523 = vunpack.c.h.b16 %v57
  %v524 = vunpack.c.l.b16 %v58
  %v525 = vunpack.c.h.b16 %v58
  %v526 = vunpack.c.l.b16 %v59
  %v527 = vunpack.c.h.b16 %v59
  %v528 = vunpack.c.l.b16 %v60
  %v529 = vunpack.c.h.b16 %v60
  %v530 = vunpack.c.l.b16 %v61
  %v531 = vunpack.c.h.b16 %v61
  %v532 = vunpack.c.l.b16 %v62
  %v533 = vunpack.c.h.b16 %v62
  %v534 = vunpack.c.l.b16 %v63
  %v535 = vunpack.c.h.b16 %v63
  %v536 = vunpack.c.l.b16 %v64
  %v537 = vunpack.c.h.b16 %v64
  %v538 = vunpack.c.l.b16 %v65
  %v539 = vunpack.c.h.b16 %v65
  %v540 = vunpack.c.l.b16 %v66
  %v541 = vunpack.c.h.b16 %v66
  %v542 = vunpack.c.l.b16 %v67
  %v543 = vunpack.c.h.b16 %v67
  %v544 = vunpack.c.l.b16 %v68
  %v545 = vunpack.c.h.b16 %v68
  %v546 = vunpack.c.l.b16 %v69
  %v547 = vunpack.c.h.b16 %v69
  %v548 = vunpack.c.l.b16 %v70
  %v549 = vunpack.c.h.b16 %v70
  %v550 = vunpack.c.l.b16 %v71
  %v551 = vunpack.c.h.b16 %v71
  %v552 = vunpack.c.l.b16 %v72
  %v553 = vunpack.c.h.b16 %v72
  %v554 = vunpack.c.l.b16 %v73
  %v555 = vunpack.c.h.b16 %v73
  %v556 = vunpack.c.l.b16 %v74
  %v557 = vunpack.c.h.b16 %v74
  %v558 = vunpack.c.l.b16 %v75
  %v559 = vunpack.c.h.b16 %v75
  %v560 = vunpack.c.l.b16 %v76
  %v561 = vunpack.c.h.b16 %v76
  %v562 = vunpack.c.l.b16 %v77
  %v563 = vunpack.c.h.b16 %v77
  %v564 = vunpack.c.l.b16 %v78
  %v565 = vunpack.c.h.b16 %v78
  %v566 = vunpack.c.l.b16 %v79
  %v567 = vunpack.c.h.b16 %v79
  %v568 = vunpack.c.l.b16 %v80
  %v569 = vunpack.c.h.b16 %v80
  %v570 = vunpack.c.l.b16 %v81
  %v571 = vunpack.c.h.b16 %v81
  %v572 = vunpack.c.l.b16 %v82
  %v573 = vunpack.c.h.b16 %v82
  %v574 = vunpack.c.l.b16 %v83
  %v575 = vunpack.c.h.b16 %v83
  %v576 = vunpack.c.l.b16 %v84
  %v577 = vunpack.c.h.b16 %v84
  %v578 = vunpack.c.l.b16 %v85
  %v579 = vunpack.c.h.b16 %v85
  %v580 = vunpack.c.l.b16 %v86
  %v581 = vunpack.c.h.b16 %v86
  %v582 = vunpack.c.l.b16 %v87
  %v583 = vunpack.c.h.b16 %v87
  %v584 = vunpack.c.l.b16 %v88
  %v585 = vunpack.c.h.b16 %v88
  %v586 = vunpack.c.l.b16 %v89
  %v587 = vunpack.c.h.b16 %v89
  %v588 = vunpack.c.l.b16 %v90
  %v589 = vunpack.c.h.b16 %v90
  %v590 = vunpack.c.l.b16 %v91
  %v591 = vunpack.c.h.b16 %v91
  %v592 = vunpack.c.l.b16 %v92
  %v593 = vunpack.c.h.b16 %v92
  %v594 = vunpack.c.l.b16 %v93
  %v595 = vunpack.c.h.b16 %v93
  %v596 = vunpack.c.l.b16 %v94
  %v597 = vunpack.c.h.b16 %v94
  %v598 = vunpack.c.l.b16 %v95
  %v599 = vunpack.c.h.b16 %v95
  %v600 = vunpack.c.l.b16 %v96
  %v601 = vunpack.c.h.b16 %v96
  %v602 = vunpack.c.l.b16 %v97
  %v603 = vunpack.c.h.b16 %v97
  %v604 = vunpack.c.l.b16 %v98
  %v605 = vunpack.c.h.b16 %v98
  %v606 = vunpack.c.l.b16 %v99
  %v607 = vunpack.c.h.b16 %v99
  %v608 = vunpack.c.l.b16 %v100
  %v609 = vunpack.c.h.b16 %v100
  %v610 = vunpack.c.l.b16 %v101
  %v611 = vunpack.c.h.b16 %v101
  %v612 = vunpack.c.l.b16 %v102
  %v613 = vunpack.c.h.b16 %v102
  %v614 = vunpack.c.l.b16 %v103
  %v615 = vunpack.c.h.b16 %v103
  %v616 = vunpack.c.l.b16 %v104
  %v617 = vunpack.c.h.b16 %v104
  %v618 = vunpack.c.l.b16 %v105
  %v619 = vunpack.c.h.b16 %v105
  %v620 = vunpack.c.l.b16 %v106
  %v621 = vunpack.c.h.b16 %v106
  %v622 = vunpack.c.l.b16 %v107
  %v623 = vunpack.c.h.b16 %v107
  %v624 = vunpack.c.l.b16 %v108
  %v625 = vunpack.c.h.b16 %v108
  %v626 = vunpack.c.l.b16 %v109
  %v627 = vunpack.c.h.b16 %v109
  %v628 = vunpack.c.l.b16 %v110
  %v629 = vunpack.c.h.b16 %v110
  %v630 = vunpack.c.l.b16 %v111
  %v631 = vunpack.c.h.b16 %v111
  %v632 = vunpack.c.l.b16 %v112
  %v633 = vunpack.c.h.b16 %v112
  %v634 = vunpack.c.l.b16 %v113
  %v635 = vunpack.c.h.b16 %v113
  %v636 = vunpack.c.l.b16 %v114
  %v637 = vunpack.c.h.b16 %v114
  %v638 = vunpack.c.l.b16 %v115
  %v639 = vunpack.c.h.b16 %v115
  %v640 = vunpack.c.l.b16 %v116
  %v641 = vunpack.c.h.b16 %v116
  %v642 = vunpack.c.l.b16 %v117
  %v643 = vunpack.c.h.b16 %v117
  %v644 = vunpack.c.l.b16 %v118
  %v645 = vunpack.c.h.b16 %v118
  %v646 = vunpack.c.l.b16 %v119
  %v647 = vunpack.c.h.b16 %v119
  %v648 = vunpack.c.l.b16 %v120
  %v649 = vunpack.c.h.b16 %v120
  %v650 = vunpack.c.l.b16 %v121
  %v651 = vunpack.c.h.b16 %v121
  %v652 = vunpack.c.l.b16 %v122
  %v653 = vunpack.c.h.b16 %v122
  %v654 = vunpack.c.l.b16 %v123
  %v655 = vunpack.c.h.b16 %v123
  %v656 = vunpack.c.l.b16 %v124
  %v657 = vunpack.c.h.b16 %v124
  %v658 = vunpack.c.l.b16 %v125
  %v659 = vunpack.c.h.b16 %v125
  %v660 = vunpack.c.l.b16 %v126
  %v661 = vunpack.c.h.b16 %v126
  %v662 = vunpack.c.l.b16 %v127
  %v663 = vunpack.c.h.b16 %v127
  %v664 = vunpack.c.l.b16 %v128
  %v665 = vunpack.c.h.b16 %v128
  %v666 = vunpack.c.l.b16 %v129
  %v667 = vunpack.c.h.b16 %v129
  %v668 = vunpack.c.l.b16 %v130
  %v669 = vunpack.c.h.b16 %v130
  %v670 = vunpack.c.l.b16 %v131
  %v671 = vunpack.c.h.b16 %v131
  %v672 = vunpack.c.l.b16 %v132
  %v673 = vunpack.c.h.b16 %v132
  %v674 = vunpack.c.l.b16 %v133
  %v675 = vunpack.c.h.b16 %v133
  %v676 = vunpack.c.l.b16 %v134
  %v677 = vunpack.c.h.b16 %v134
  %v678 = vunpack.c.l.b16 %v135
  %v679 = vunpack.c.h.b16 %v135
  %v680 = vunpack.c.l.b16 %v136
  %v681 = vunpack.c.h.b16 %v136
  %v682 = vunpack.c.l.b16 %v137
  %v683 = vunpack.c.h.b16 %v137
  %v684 = vunpack.c.l.b16 %v138
  %v685 = vunpack.c.h.b16 %v138
  %v686 = vunpack.c.l.b16 %v139
  %v687 = vunpack.c.h.b16 %v139
  %v688 = vunpack.c.l.b16 %v140
  %v689 = vunpack.c.h.b16 %v140
  %v690 = vunpack.c.l.b16 %v141
  %v691 = vunpack.c.h.b16 %v141
  %v692 = vunpack.c.l.b16 %v142
  %v693 = vunpack.c.h.b16 %v142
  %v694 = vunpack.c.l.b16 %v143
  %v695 = vunpack.c.h.b16 %v143
  %v696 = vunpack.c.l.b16 %v144
  %v697 = vunpack.c.h.b16 %v144
  %v698 = vunpack.c.l.b16 %v145
  %v699 = vunpack.c.h.b16 %v145
  %v700 = vunpack.c.l.b16 %v146
  %v701 = vunpack.c.h.b16 %v146
  %v702 = vunpack.c.l.b16 %v147
  %v703 = vunpack.c.h.b16 %v147
  %v704 = vunpack.c.l.b16 %v148
  %v705 = vunpack.c.h.b16 %v148
  %v706 = vunpack.c.l.b16 %v149
  %v707 = vunpack.c.h.b16 %v149
  %v708 = vunpack.c.l.b16 %v150
  %v709 = vunpack.c.h.b16 %v150
  %v710 = vunpack.c.l.b16 %v151
  %v711 = vunpack.c.h.b16 %v151
  %v712 = vunpack.c.l.b16 %v152
  %v713 = vunpack.c.h.b16 %v152
  %v714 = vunpack.c.l.b16 %v153
  %v715 = vunpack.c.h.b16 %v153
  %v716 = vunpack.c.l.b16 %v154
  %v717 = vunpack.c.h.b16 %v154
  %v718 = vunpack.c.l.b16 %v155
  %v719 = vunpack.c.h.b16 %v155
  %v720 = vunpack.c.l.b16 %v156
  %v721 = vunpack.c.h.b16 %v156
  %v722 = vunpack.c.l.b16 %v157
  %v723 = vunpack.c.h.b16 %v157
  %v724 = vunpack.c.l.b16 %v158
  %v725 = vunpack.c.h.b16 %v158
  %v726 = vunpack.c.l.b16 %v159
  %v727 = vunpack.c.h.b16 %v159
  %v728 = vunpack.c.l.b16 %v160
  %v729 = vunpack.c.h.b16 %v160
  %v730 = vunpack.c.l.b16 %v161
  %v731 = vunpack.c.h.b16 %v161
  %v732 = vunpack.c.l.b16 %v162
  %v733 = vunpack.c.h.b16 %v162
  %v734 = vunpack.c.l.b16 %v163
  %v735 = vunpack.c.h.b16 %v163
  %v736 = vunpack.c.l.b16 %v164
  %v737 = vunpack.c.h.b16 %v164
  %v738 = vunpack.c.l.b16 %v165
  %v739 = vunpack.c.h.b16 %v165
  %v740 = vunpack.c.l.b16 %v166
  %v741 = vunpack.c.h.b16 %v166
  %v742 = vunpack.c.l.b16 %v167
  %v743 = vunpack.c.h.b16 %v167
  %v744 = vunpack.c.l.b16 %v168
  %v745 = vunpack.c.h.b16 %v168
  %v746 = vunpack.c.l.b16 %v169
  %v747 = vunpack.c.h.b16 %v169
  %v748 = vunpack.c.l.b16 %v170
  %v749 = vunpack.c.h.b16 %v170
  %v750 = vunpack.c.l.b16 %v171
  %v751 = vunpack.c.h.b16 %v171
  %v752 = vunpack.c.l.b16 %v172
  %v753 = vunpack.c.h.b16 %v172
  %v754 = vunpack.c.l.b16 %v173
  %v755 = vunpack.c.h.b16 %v173
  %v756 = vunpack.c.l.b16 %v174
  %v757 = vunpack.c.h.b16 %v174
  %v758 = vunpack.c.l.b16 %v175
  %v759 = vunpack.c.h.b16 %v175
  %v760 = vunpack.c.l.b16 %v176
  %v761 = vunpack.c.h.b16 %v176
  %v762 = vunpack.c.l.b16 %v177
  %v763 = vunpack.c.h.b16 %v177
  %v764 = vunpack.c.l.b16 %v178
  %v765 = vunpack.c.h.b16 %v178
  %v766 = vunpack.c.l.b16 %v179
  %v767 = vunpack.c.h.b16 %v179
  %v768 = vunpack.c.l.b16 %v180
  %v769 = vunpack.c.h.b16 %v180
  %v770 = vunpack.c.l.b16 %v181
  %v771 = vunpack.c.h.b16 %v181
  %v772 = vunpack.c.l.b16 %v182
  %v773 = vunpack.c.h.b16 %v182
  %v774 = vunpack.c.l.b16 %v183
  %v775 = vunpack.c.h.b16 %v183
  %v776 = vunpack.c.l.b16 %v184
  %v777 = vunpack.c.h.b16 %v184
  %v778 = vunpack.c.l.b16 %v185
  %v779 = vunpack.c.h.b16 %v185
  %v780 = vunpack.c.l.b16 %v186
  %v781 = vunpack.c.h.b16 %v186
  %v782 = vunpack.c.l.b16 %v187
  %v783 = vunpack.c.h.b16 %v187
  %v784 = vunpack.c.l.b16 %v188
  %v785 = vunpack.c.h.b16 %v188
  %v786 = vunpack.c.l.b16 %v189
  %v787 = vunpack.c.h.b16 %v189
  %v788 = vunpack.c.l.b16 %v190
  %v789 = vunpack.c.h.b16 %v190
  %v790 = vunpack.c.l.b16 %v191
  %v791 = vunpack.c.h.b16 %v191
  %v792 = vunpack.c.l.b16 %v192
  %v793 = vunpack.c.h.b16 %v192
  %v794 = vunpack.c.l.b16 %v193
  %v795 = vunpack.c.h.b16 %v193
  %v796 = vunpack.c.l.b16 %v194
  %v797 = vunpack.c.h.b16 %v194
  %v798 = vunpack.c.l.b16 %v195
  %v799 = vunpack.c.h.b16 %v195
  %v800 = vunpack.c.l.b16 %v196
  %v801 = vunpack.c.h.b16 %v196
  %v802 = vunpack.c.l.b16 %v197
  %v803 = vunpack.c.h.b16 %v197
  %v804 = vunpack.c.l.b16 %v198
  %v805 = vunpack.c.h.b16 %v198
  %v806 = vunpack.c.l.b16 %v199
  %v807 = vunpack.c.h.b16 %v199
  %v808 = vunpack.c.l.b16 %v200
  %v809 = vunpack.c.h.b16 %v200
  %v810 = vunpack.c.l.b16 %v201
  %v811 = vunpack.c.h.b16 %v201
  %v812 = vunpack.c.l.b16 %v202
  %v813 = vunpack.c.h.b16 %v202
  %v814 = vunpack.c.l.b16 %v203
  %v815 = vunpack.c.h.b16 %v203
  %v816 = vunpack.c.l.b16 %v204
  %v817 = vunpack.c.h.b16 %v204
  %v818 = vunpack.c.l.b16 %v205
  %v819 = vunpack.c.h.b16 %v205
  %v820 = vunpack.c.l.b16 %v206
  %v821 = vunpack.c.h.b16 %v206
  %v822 = vunpack.c.l.b16 %v207
  %v823 = vunpack.c.h.b16 %v207
  %v824 = vunpack.c.l.b16 %v208
  %v825 = vunpack.c.h.b16 %v208
  %v826 = vunpack.c.l.b16 %v209
  %v827 = vunpack.c.h.b16 %v209
  %v828 = vunpack.c.l.b16 %v210
  %v829 = vunpack.c.h.b16 %v210
  %v830 = vunpack.c.l.b16 %v211
  %v831 = vunpack.c.h.b16 %v211
  %v832 = vunpack.c.l.b16 %v212
  %v833 = vunpack.c.h.b16 %v212
  %v834 = vunpack.c.l.b16 %v213
  %v835 = vunpack.c.h.b16 %v213
  %v836 = vunpack.c.l.b16 %v214
  %v837 = vunpack.c.h.b16 %v214
  %v838 = vunpack.c.l.b16 %v215
  %v839 = vunpack.c.h.b16 %v215
  %v840 = vunpack.c.l.b16 %v216
  %v841 = vunpack.c.h.b16 %v216
  %v842 = vunpack.c.l.b16 %v217
  %v843 = vunpack.c.h.b16 %v217
  %v844 = vunpack.c.l.b16 %v218
  %v845 = vunpack.c.h.b16 %v218
  %v846 = vunpack.c.l.b16 %v219
  %v847 = vunpack.c.h.b16 %v219
  %v848 = vunpack.c.l.b16 %v220
  %v849 = vunpack.c.h.b16 %v220
  %v850 = vunpack.c.l.b16 %v221
  %v851 = vunpack.c.h.b16 %v221
  %v852 = vunpack.c.l.b16 %v222
  %v853 = vunpack.c.h.b16 %v222
  %v854 = vunpack.c.l.b16 %v223
  %v855 = vunpack.c.h.b16 %v223
  %v856 = vunpack.c.l.b16 %v224
  %v857 = vunpack.c.h.b16 %v224
  %v858 = vunpack.c.l.b16 %v225
  %v859 = vunpack.c.h.b16 %v225
  %v860 = vunpack.c.l.b16 %v226
  %v861 = vunpack.c.h.b16 %v226
  %v862 = vunpack.c.l.b16 %v227
  %v863 = vunpack.c.h.b16 %v227
  %v864 = vunpack.c.l.b16 %v228
  %v865 = vunpack.c.h.b16 %v228
  %v866 = vunpack.c.l.b16 %v229
  %v867 = vunpack.c.h.b16 %v229
  %v868 = vunpack.c.l.b16 %v230
  %v869 = vunpack.c.h.b16 %v230
  %v870 = vunpack.c.l.b16 %v231
  %v871 = vunpack.c.h.b16 %v231
  %v872 = vunpack.c.l.b16 %v232
  %v873 = vunpack.c.h.b16 %v232
  %v874 = vunpack.c.l.b16 %v233
  %v875 = vunpack.c.h.b16 %v233
  %v876 = vunpack.c.l.b16 %v234
  %v877 = vunpack.c.h.b16 %v234
  %v878 = vunpack.c.l.b16 %v235
  %v879 = vunpack.c.h.b16 %v235
  %v880 = vunpack.c.l.b16 %v236
  %v881 = vunpack.c.h.b16 %v236
  %v882 = vpack.c.b16 %v494, %v490
  %v883 = vpack.c.b16 %v495, %v491
  %v884 = vpack.c.b16 %v496, %v492
  %v885 = vpack.c.b16 %v497, %v493
  %v886 = vpack.c.b16 %v502, %v498
  %v887 = vpack.c.b16 %v503, %v499
  %v888 = vpack.c.b16 %v504, %v500
  %v889 = vpack.c.b16 %v505, %v501
  %v890 = vpack.c.b16 %v510, %v506
  %v891 = vpack.c.b16 %v511, %v507
  %v892 = vpack.c.b16 %v512, %v508
  %v893 = vpack.c.b16 %v513, %v509
  %v894 = vpack.c.b16 %v518, %v514
  %v895 = vpack.c.b16 %v519, %v515
  %v896 = vpack.c.b16 %v520, %v516
  %v897 = vpack.c.b16 %v521, %v517
  %v898 = vpack.c.b16 %v526, %v522
  %v899 = vpack.c.b16 %v527, %v523
  %v900 = vpack.c.b16 %v528, %v524
  %v901 = vpack.c.b16 %v529, %v525
  %v902 = vpack.c.b16 %v534, %v530
  %v903 = vpack.c.b16 %v535, %v531
  %v904 = vpack.c.b16 %v536, %v532
  %v905 = vpack.c.b16 %v537, %v533
  %v906 = vpack.c.b16 %v542, %v538
  %v907 = vpack.c.b16 %v543, %v539
  %v908 = vpack.c.b16 %v544, %v540
  %v909 = vpack.c.b16 %v545, %v541
  %v910 = vpack.c.b16 %v550, %v546
  %v911 = vpack.c.b16 %v551, %v547
  %v912 = vpack.c.b16 %v552, %v548
  %v913 = vpack.c.b16 %v553, %v549
  %v914 = vpack.c.b16 %v558, %v554
  %v915 = vpack.c.b16 %v559, %v555
  %v916 = vpack.c.b16 %v560, %v556
  %v917 = vpack.c.b16 %v561, %v557
  %v918 = vpack.c.b16 %v566, %v562
  %v919 = vpack.c.b16 %v567, %v563
  %v920 = vpack.c.b16 %v568, %v564
  %v921 = vpack.c.b16 %v569, %v565
  %v922 = vpack.c.b16 %v574, %v570
  %v923 = vpack.c.b16 %v575, %v571
  %v924 = vpack.c.b16 %v576, %v572
  %v925 = vpack.c.b16 %v577, %v573
  %v926 = vpack.c.b16 %v582, %v578
  %v927 = vpack.c.b16 %v583, %v579
  %v928 = vpack.c.b16 %v584, %v580
  %v929 = vpack.c.b16 %v585, %v581
  %v930 = vpack.c.b16 %v590, %v586
  %v931 = vpack.c.b16 %v591, %v587
  %v932 = vpack.c.b16 %v592, %v588
  %v933 = vpack.c.b16 %v593, %v589
  %v934 = vpack.c.b16 %v598, %v594
  %v935 = vpack.c.b16 %v599, %v595
  %v936 = vpack.c.b16 %v600, %v596
  %v937 = vpack.c.b16 %v601, %v597
  %v938 = vpack.c.b16 %v606, %v602
  %v939 = vpack.c.b16 %v607, %v603
  %v940 = vpack.c.b16 %v608, %v604
  %v941 = vpack.c.b16 %v609, %v605
  %v942 = vpack.c.b16 %v614, %v610
  %v943 = vpack.c.b16 %v615, %v611
  %v944 = vpack.c.b16 %v616, %v612
  %v945 = vpack.c.b16 %v617, %v613
  %v946 = vpack.c.b16 %v622, %v618
  %v947 = vpack.c.b16 %v623, %v619
  %v948 = vpack.c.b16 %v624, %v620
  %v949 = vpack.c.b16 %v625, %v621
  %v950 = vpack.c.b16 %v630, %v626
  %v951 = vpack.c.b16 %v631, %v627
  %v952 = vpack.c.b16 %v632, %v628
  %v953 = vpack.c.b16 %v633, %v629
  %v954 = vpack.c.b16 %v638, %v634
  %v955 = vpack.c.b16 %v639, %v635
  %v956 = vpack.c.b16 %v640, %v636
  %v957 = vpack.c.b16 %v641, %v637
  %v958 = vpack.c.b16 %v646, %v642
  %v959 = vpack.c.b16 %v647, %v643
  %v960 = vpack.c.b16 %v648, %v644
  %v961 = vpack.c.b16 %v649, %v645
  %v962 = vpack.c.b16 %v654, %v650
  %v963 = vpack.c.b16 %v655, %v651
  %v964 = vpack.c.b16 %v656, %v652
  %v965 = vpack.c.b16 %v657, %v653
  %v966 = vpack.c.b16 %v662, %v658
  %v967 = vpack.c.b16 %v663, %v659
  %v968 = vpack.c.b16 %v664, %v660
  %v969 = vpack.c.b16 %v665, %v661
  %v970 = vpack.c.b16 %v670, %v666
  %v971 = vpack.c.b16 %v671, %v667
  %v972 = vpack.c.b16 %v672, %v668
  %v973 = vpack.c.b16 %v673, %v669
  %v974 = vpack.c.b16 %v678, %v674
  %v975 = vpack.c.b16 %v679, %v675
  %v976 = vpack.c.b16 %v680, %v676
  %v977 = vpack.c.b16 %v681, %v677
  %v978 = vpack.c.b16 %v686, %v682
  %v979 = vpack.c.b16 %v687, %v683
  %v980 = vpack.c.b16 %v688, %v684
  %v981 = vpack.c.b16 %v689, %v685
  %v982 = vpack.c.b16 %v694, %v690
  %v983 = vpack.c.b16 %v695, %v691
  %v984 = vpack.c.b16 %v696, %v692
  %v985 = vpack.c.b16 %v697, %v693
  %v986 = vpack.c.b16 %v702, %v698
  %v987 = vpack.c.b16 %v703, %v699
  %v988 = vpack.c.b16 %v704, %v700
  %v989 = vpack.c.b16 %v705, %v701
  %v990 = vpack.c.b16 %v710, %v706
  %v991 = vpack.c.b16 %v711, %v707
  %v992 = vpack.c.b16 %v712, %v708
  %v993 = vpack.c.b16 %v713, %v709
  %v994 = vpack.c.b16 %v718, %v714
  %v995 = vpack.c.b16 %v719, %v715
  %v996 = vpack.c.b16 %v720, %v716
  %v997 = vpack.c.b16 %v721, %v717
  %v998 = vpack.c.b16 %v726, %v722
  %v999 = vpack.c.b16 %v727, %v723
  %v1000 = vpack.c.b16 %v728, %v724
  %v1001 = vpack.c.b16 %v729, %v725
  %v1002 = vpack.c.b16 %v734, %v730
  %v1003 = vpack.c.b16 %v735, %v731
  %v1004 = vpack.c.b16 %v736, %v732
  %v1005 = vpack.c.b16 %v737, %v733
  %v1006 = vpack.c.b16 %v742, %v738
  %v1007 = vpack.c.b16 %v743, %v739
  %v1008 = vpack.c.b16 %v744, %v740
  %v1009 = vpack.c.b16 %v745, %v741
  %v1010 = vpack.c.b16 %v750, %v746
  %v1011 = vpack.c.b16 %v751, %v747
  %v1012 = vpack.c.b16 %v752, %v748
  %v1013 = vpack.c.b16 %v753, %v749
  %v1014 = vpack.c.b16 %v758, %v754
  %v1015 = vpack.c.b16 %v759, %v755
  %v1016 = vpack.c.b16 %v760, %v756
  %v1017 = vpack.c.b16 %v761, %v757
  %v1018 = vpack.c.b16 %v766, %v762
  %v1019 = vpack.c.b16 %v767, %v763
  %v1020 = vpack.c.b16 %v768, %v764
  %v1021 = vpack.c.b16 %v769, %v765
  %v1022 = vpack.c.b16 %v774, %v770
  %v1023 = vpack.c.b16 %v775, %v771
  %v1024 = vpack.c.b16 %v776, %v772
  %v1025 = vpack.c.b16 %v777, %v773
  %v1026 = vpack.c.b16 %v782, %v778
  %v1027 = vpack.c.b16 %v783, %v779
  %v1028 = vpack.c.b16 %v784, %v780
  %v1029 = vpack.c.b16 %v785, %v781
  %v1030 = vpack.c.b16 %v790, %v786
  %v1031 = vpack.c.b16 %v791, %v787
  %v1032 = vpack.c.b16 %v792, %v788
  %v1033 = vpack.c.b16 %v793, %v789
  %v1034 = vpack.c.b16 %v798, %v794
  %v1035 = vpack.c.b16 %v799, %v795
  %v1036 = vpack.c.b16 %v800, %v796
  %v1037 = vpack.c.b16 %v801, %v797
  %v1038 = vpack.c.b16 %v806, %v802
  %v1039 = vpack.c.b16 %v807, %v803
  %v1040 = vpack.c.b16 %v808, %v804
  %v1041 = vpack.c.b16 %v809, %v805
  %v1042 = vpack.c.b16 %v814, %v810
  %v1043 = vpack.c.b16 %v815, %v811
  %v1044 = vpack.c.b16 %v816, %v812
  %v1045 = vpack.c.b16 %v817, %v813
  %v1046 = vpack.c.b16 %v822, %v818
  %v1047 = vpack.c.b16 %v823, %v819
  %v1048 = vpack.c.b16 %v824, %v820
  %v1049 = vpack.c.b16 %v825, %v821
  %v1050 = vpack.c.b16 %v830, %v826
  %v1051 = vpack.c.b16 %v831, %v827
  %v1052 = vpack.c.b16 %v832, %v828
  %v1053 = vpack.c.b16 %v833, %v829
  %v1054 = vpack.c.b16 %v838, %v834
  %v1055 = vpack.c.b16 %v839, %v835
  %v1056 = vpack.c.b16 %v840, %v836
  %v1057 = vpack.c.b16 %v841, %v837
  %v1058 = vpack.c.b16 %v846, %v842
  %v1059 = vpack.c.b16 %v847, %v843
  %v1060 = vpack.c.b16 %v848, %v844
  %v1061 = vpack.c.b16 %v849, %v845
  %v1062 = vpack.c.b16 %v854, %v850
  %v1063 = vpack.c.b16 %v855, %v851
  %v1064 = vpack.c.b16 %v856, %v852
  %v1065 = vpack.c.b16 %v857, %v853
  %v1066 = vpack.c.b16 %v862, %v858
  %v1067 = vpack.c.b16 %v863, %v859
  %v1068 = vpack.c.b16 %v864, %v860
  %v1069 = vpack.c.b16 %v865, %v861
  %v1070 = vpack.c.b16 %v870, %v866
  %v1071 = vpack.c.b16 %v871, %v867
  %v1072 = vpack.c.b16 %v872, %v868
  %v1073 = vpack.c.b16 %v873, %v869
  %v1074 = vpack.c.b16 %v878, %v874
  %v1075 = vpack.c.b16 %v879, %v875
  %v1076 = vpack.c.b16 %v880, %v876
  %v1077 = vpack.c.b16 %v881, %v877
  %vm1274 = vcmask 130048
  %v1276 = vsel %vm1274, %v287, 0
  %1278 = vmatprep.subr.bf16.mxu0 %v883
  %1279 = vmatpush1.bf16.msra.mxu0 %v882
  %1280 = vmatprep.subr.bf16.mxu0 %v887
  %1281 = vmatpush1.bf16.msra.mxu0 %v886
  %1282 = vmatprep.subr.bf16.mxu0 %v891
  %1283 = vmatpush1.bf16.msra.mxu0 %v890
  %1284 = vmatprep.subr.bf16.mxu0 %v895
  %1285 = vmatpush1.bf16.msra.mxu0 %v894
  %1286 = vmatprep.subr.bf16.mxu0 %v899
  %1287 = vmatpush1.bf16.msra.mxu0 %v898
  %1288 = vmatprep.subr.bf16.mxu0 %v903
  %1289 = vmatpush1.bf16.msra.mxu0 %v902
  %1290 = vmatprep.subr.bf16.mxu0 %v907
  %1291 = vmatpush1.bf16.msra.mxu0 %v906
  %1292 = vmatprep.subr.bf16.mxu0 %v911
  %1293 = vmatpush1.bf16.msra.mxu0 %v910
  %1294 = vmatprep.subr.bf16.mxu0 %v915
  %1295 = vmatpush1.bf16.msra.mxu0 %v914
  %1296 = vmatprep.subr.bf16.mxu0 %v919
  %1297 = vmatpush1.bf16.msra.mxu0 %v918
  %1298 = vmatprep.subr.bf16.mxu0 %v923
  %1299 = vmatpush1.bf16.msra.mxu0 %v922
  %1300 = vmatprep.subr.bf16.mxu0 %v927
  %1301 = vmatpush1.bf16.msra.mxu0 %v926
  %1302 = vmatprep.subr.bf16.mxu0 %v931
  %1303 = vmatpush1.bf16.msra.mxu0 %v930
  %1304 = vmatprep.subr.bf16.mxu0 %v935
  %1305 = vmatpush1.bf16.msra.mxu0 %v934
  %1306 = vmatprep.subr.bf16.mxu0 %v939
  %1307 = vmatpush1.bf16.msra.mxu0 %v938
  %1308 = vmatprep.subr.bf16.mxu0 %v943
  %1309 = vmatpush1.bf16.msra.mxu0 %v942
  %1310 = vmatprep.mubr.bf16.mxu0 %v282
  %1311 = vmatmul.mubr.bf16.gmra.mrb[0].mxu0 %v281
  %v1312 = vpop.f32.mrb[0].mxu0
  %v1313 = vadd.f32 %v242, %v1312
  %v1314 = vpop.f32.mrb[0].mxu0
  %v1315 = vadd.f32 %v246, %v1314
  %v1316 = vpop.f32.mrb[0].mxu0
  %v1317 = vadd.f32 %v242, %v1316
  %v1318 = vpop.f32.mrb[0].mxu0
  %v1319 = vadd.f32 %v246, %v1318
  %1320 = vdwg.mxu0
  %1321 = vmatprep.subr.bf16.mxu0 %v947
  %1322 = vmatpush1.bf16.msra.mxu0 %v946
  %1323 = vmatprep.subr.bf16.mxu0 %v951
  %1324 = vmatpush1.bf16.msra.mxu0 %v950
  %1325 = vmatprep.subr.bf16.mxu0 %v955
  %1326 = vmatpush1.bf16.msra.mxu0 %v954
  %1327 = vmatprep.subr.bf16.mxu0 %v959
  %1328 = vmatpush1.bf16.msra.mxu0 %v958
  %1329 = vmatprep.subr.bf16.mxu0 %v963
  %1330 = vmatpush1.bf16.msra.mxu0 %v962
  %1331 = vmatprep.subr.bf16.mxu0 %v967
  %1332 = vmatpush1.bf16.msra.mxu0 %v966
  %1333 = vmatprep.subr.bf16.mxu0 %v971
  %1334 = vmatpush1.bf16.msra.mxu0 %v970
  %1335 = vmatprep.subr.bf16.mxu0 %v975
  %1336 = vmatpush1.bf16.msra.mxu0 %v974
  %1337 = vmatprep.subr.bf16.mxu0 %v979
  %1338 = vmatpush1.bf16.msra.mxu0 %v978
  %1339 = vmatprep.subr.bf16.mxu0 %v983
  %1340 = vmatpush1.bf16.msra.mxu0 %v982
  %1341 = vmatprep.subr.bf16.mxu0 %v987
  %1342 = vmatpush1.bf16.msra.mxu0 %v986
  %1343 = vmatprep.subr.bf16.mxu0 %v991
  %1344 = vmatpush1.bf16.msra.mxu0 %v990
  %1345 = vmatprep.subr.bf16.mxu0 %v995
  %1346 = vmatpush1.bf16.msra.mxu0 %v994
  %1347 = vmatprep.subr.bf16.mxu0 %v999
  %1348 = vmatpush1.bf16.msra.mxu0 %v998
  %1349 = vmatprep.subr.bf16.mxu0 %v1003
  %1350 = vmatpush1.bf16.msra.mxu0 %v1002
  %1351 = vmatprep.subr.bf16.mxu0 %v1007
  %1352 = vmatpush1.bf16.msra.mxu0 %v1006
  %1353 = vmatprep.mubr.bf16.mxu0 %v284
  %1354 = vmatmul.mubr.bf16.gmra.mrb[0].mxu0 %v283
  %v1355 = vpop.f32.mrb[0].mxu0
  %v1356 = vadd.f32 %v1313, %v1355
  %v1357 = vpop.f32.mrb[0].mxu0
  %v1358 = vadd.f32 %v1315, %v1357
  %v1359 = vpop.f32.mrb[0].mxu0
  %v1360 = vadd.f32 %v1317, %v1359
  %v1361 = vpop.f32.mrb[0].mxu0
  %v1362 = vadd.f32 %v1319, %v1361
  %1363 = vdwg.mxu0
  %1364 = vmatprep.subr.bf16.mxu0 %v1011
  %1365 = vmatpush1.bf16.msra.mxu0 %v1010
  %1366 = vmatprep.subr.bf16.mxu0 %v1015
  %1367 = vmatpush1.bf16.msra.mxu0 %v1014
  %1368 = vmatprep.subr.bf16.mxu0 %v1019
  %1369 = vmatpush1.bf16.msra.mxu0 %v1018
  %1370 = vmatprep.subr.bf16.mxu0 %v1023
  %1371 = vmatpush1.bf16.msra.mxu0 %v1022
  %1372 = vmatprep.subr.bf16.mxu0 %v1027
  %1373 = vmatpush1.bf16.msra.mxu0 %v1026
  %1374 = vmatprep.subr.bf16.mxu0 %v1031
  %1375 = vmatpush1.bf16.msra.mxu0 %v1030
  %1376 = vmatprep.subr.bf16.mxu0 %v1035
  %1377 = vmatpush1.bf16.msra.mxu0 %v1034
  %1378 = vmatprep.subr.bf16.mxu0 %v1039
  %1379 = vmatpush1.bf16.msra.mxu0 %v1038
  %1380 = vmatprep.subr.bf16.mxu0 %v1043
  %1381 = vmatpush1.bf16.msra.mxu0 %v1042
  %1382 = vmatprep.subr.bf16.mxu0 %v1047
  %1383 = vmatpush1.bf16.msra.mxu0 %v1046
  %1384 = vmatprep.subr.bf16.mxu0 %v1051
  %1385 = vmatpush1.bf16.msra.mxu0 %v1050
  %1386 = vmatprep.subr.bf16.mxu0 %v1055
  %1387 = vmatpush1.bf16.msra.mxu0 %v1054
  %1388 = vmatprep.subr.bf16.mxu0 %v1059
  %1389 = vmatpush1.bf16.msra.mxu0 %v1058
  %1390 = vmatprep.subr.bf16.mxu0 %v1063
  %1391 = vmatpush1.bf16.msra.mxu0 %v1062
  %1392 = vmatprep.subr.bf16.mxu0 %v1067
  %1393 = vmatpush1.bf16.msra.mxu0 %v1066
  %1394 = vmatprep.subr.bf16.mxu0 %v1071
  %1395 = vmatpush1.bf16.msra.mxu0 %v1070
  %1396 = vmatprep.mubr.bf16.mxu0 %v286
  %1397 = vmatmul.mubr.bf16.gmra.mrb[0].mxu0 %v285
  %v1398 = vpop.f32.mrb[0].mxu0
  %v1399 = vadd.f32 %v1356, %v1398
  %v1400 = vpop.f32.mrb[0].mxu0
  %v1401 = vadd.f32 %v1358, %v1400
  %v1402 = vpop.f32.mrb[0].mxu0
  %v1403 = vadd.f32 %v1360, %v1402
  %v1404 = vpop.f32.mrb[0].mxu0
  %v1405 = vadd.f32 %v1362, %v1404
  %1406 = vdwg.mxu0
  %1407 = vmatprep.subr.bf16.mxu0 %v1075
  %1408 = vmatpush1.bf16.msra.mxu0 %v1074
  %1409 = vmatprep.subr.bf16.mxu0 0
  %1410 = vmatpush1.bf16.msra.mxu0 0
  %1411 = vmatprep.subr.bf16.mxu0 0
  %1412 = vmatpush1.bf16.msra.mxu0 0
  %1413 = vmatprep.subr.bf16.mxu0 0
  %1414 = vmatpush1.bf16.msra.mxu0 0
  %1415 = vmatprep.subr.bf16.mxu0 0
  %1416 = vmatpush1.bf16.msra.mxu0 0
  %1417 = vmatprep.subr.bf16.mxu0 0
  %1418 = vmatpush1.bf16.msra.mxu0 0
  %1419 = vmatprep.subr.bf16.mxu0 0
  %1420 = vmatpush1.bf16.msra.mxu0 0
  %1421 = vmatprep.subr.bf16.mxu0 0
  %1422 = vmatpush1.bf16.msra.mxu0 0
  %1423 = vmatprep.subr.bf16.mxu0 0
  %1424 = vmatpush1.bf16.msra.mxu0 0
  %1425 = vmatprep.subr.bf16.mxu0 0
  %1426 = vmatpush1.bf16.msra.mxu0 0
  %1427 = vmatprep.subr.bf16.mxu0 0
  %1428 = vmatpush1.bf16.msra.mxu0 0
  %1429 = vmatprep.subr.bf16.mxu0 0
  %1430 = vmatpush1.bf16.msra.mxu0 0
  %1431 = vmatprep.subr.bf16.mxu0 0
  %1432 = vmatpush1.bf16.msra.mxu0 0
  %1433 = vmatprep.subr.bf16.mxu0 0
  %1434 = vmatpush1.bf16.msra.mxu0 0
  %1435 = vmatprep.subr.bf16.mxu0 0
  %1436 = vmatpush1.bf16.msra.mxu0 0
  %1437 = vmatprep.subr.bf16.mxu0 0
  %1438 = vmatpush1.bf16.msra.mxu0 0
  %1439 = vmatprep.mubr.bf16.mxu0 0
  %1440 = vmatmul.mubr.bf16.gmra.mrb[0].mxu0 %v1276
  %v1441 = vpop.f32.mrb[0].mxu0
  %v1442 = vadd.f32 %v1399, %v1441
  %v1443 = vpop.f32.mrb[0].mxu0
  %v1444 = vadd.f32 %v1401, %v1443
  %v1445 = vpop.f32.mrb[0].mxu0
  %v1446 = vadd.f32 %v1403, %v1445
  %v1447 = vpop.f32.mrb[0].mxu0
  %v1448 = vadd.f32 %v1405, %v1447
  %1449 = vdwg.mxu0
  %1450 = vmatprep.subr.bf16.mxu0 %v885
  %1451 = vmatpush1.bf16.msra.mxu0 %v884
  %1452 = vmatprep.subr.bf16.mxu0 %v889
  %1453 = vmatpush1.bf16.msra.mxu0 %v888
  %1454 = vmatprep.subr.bf16.mxu0 %v893
  %1455 = vmatpush1.bf16.msra.mxu0 %v892
  %1456 = vmatprep.subr.bf16.mxu0 %v897
  %1457 = vmatpush1.bf16.msra.mxu0 %v896
  %1458 = vmatprep.subr.bf16.mxu0 %v901
  %1459 = vmatpush1.bf16.msra.mxu0 %v900
  %1460 = vmatprep.subr.bf16.mxu0 %v905
  %1461 = vmatpush1.bf16.msra.mxu0 %v904
  %1462 = vmatprep.subr.bf16.mxu0 %v909
  %1463 = vmatpush1.bf16.msra.mxu0 %v908
  %1464 = vmatprep.subr.bf16.mxu0 %v913
  %1465 = vmatpush1.bf16.msra.mxu0 %v912
  %1466 = vmatprep.subr.bf16.mxu0 %v917
  %1467 = vmatpush1.bf16.msra.mxu0 %v916
  %1468 = vmatprep.subr.bf16.mxu0 %v921
  %1469 = vmatpush1.bf16.msra.mxu0 %v920
  %1470 = vmatprep.subr.bf16.mxu0 %v925
  %1471 = vmatpush1.bf16.msra.mxu0 %v924
  %1472 = vmatprep.subr.bf16.mxu0 %v929
  %1473 = vmatpush1.bf16.msra.mxu0 %v928
  %1474 = vmatprep.subr.bf16.mxu0 %v933
  %1475 = vmatpush1.bf16.msra.mxu0 %v932
  %1476 = vmatprep.subr.bf16.mxu0 %v937
  %1477 = vmatpush1.bf16.msra.mxu0 %v936
  %1478 = vmatprep.subr.bf16.mxu0 %v941
  %1479 = vmatpush1.bf16.msra.mxu0 %v940
  %1480 = vmatprep.subr.bf16.mxu0 %v945
  %1481 = vmatpush1.bf16.msra.mxu0 %v944
  %1482 = vmatprep.mubr.bf16.mxu0 %v282
  %1483 = vmatmul.mubr.bf16.gmra.mrb[0].mxu0 %v281
  %v1484 = vpop.f32.mrb[0].mxu0
  %v1485 = vadd.f32 %v250, %v1484
  %v1486 = vpop.f32.mrb[0].mxu0
  %v1487 = vadd.f32 %v254, %v1486
  %v1488 = vpop.f32.mrb[0].mxu0
  %v1489 = vadd.f32 %v250, %v1488
  %v1490 = vpop.f32.mrb[0].mxu0
  %v1491 = vadd.f32 %v254, %v1490
  %1492 = vdwg.mxu0
  %1493 = vmatprep.subr.bf16.mxu0 %v949
  %1494 = vmatpush1.bf16.msra.mxu0 %v948
  %1495 = vmatprep.subr.bf16.mxu0 %v953
  %1496 = vmatpush1.bf16.msra.mxu0 %v952
  %1497 = vmatprep.subr.bf16.mxu0 %v957
  %1498 = vmatpush1.bf16.msra.mxu0 %v956
  %1499 = vmatprep.subr.bf16.mxu0 %v961
  %1500 = vmatpush1.bf16.msra.mxu0 %v960
  %1501 = vmatprep.subr.bf16.mxu0 %v965
  %1502 = vmatpush1.bf16.msra.mxu0 %v964
  %1503 = vmatprep.subr.bf16.mxu0 %v969
  %1504 = vmatpush1.bf16.msra.mxu0 %v968
  %1505 = vmatprep.subr.bf16.mxu0 %v973
  %1506 = vmatpush1.bf16.msra.mxu0 %v972
  %1507 = vmatprep.subr.bf16.mxu0 %v977
  %1508 = vmatpush1.bf16.msra.mxu0 %v976
  %1509 = vmatprep.subr.bf16.mxu0 %v981
  %1510 = vmatpush1.bf16.msra.mxu0 %v980
  %1511 = vmatprep.subr.bf16.mxu0 %v985
  %1512 = vmatpush1.bf16.msra.mxu0 %v984
  %1513 = vmatprep.subr.bf16.mxu0 %v989
  %1514 = vmatpush1.bf16.msra.mxu0 %v988
  %1515 = vmatprep.subr.bf16.mxu0 %v993
  %1516 = vmatpush1.bf16.msra.mxu0 %v992
  %1517 = vmatprep.subr.bf16.mxu0 %v997
  %1518 = vmatpush1.bf16.msra.mxu0 %v996
  %1519 = vmatprep.subr.bf16.mxu0 %v1001
  %1520 = vmatpush1.bf16.msra.mxu0 %v1000
  %1521 = vmatprep.subr.bf16.mxu0 %v1005
  %1522 = vmatpush1.bf16.msra.mxu0 %v1004
  %1523 = vmatprep.subr.bf16.mxu0 %v1009
  %1524 = vmatpush1.bf16.msra.mxu0 %v1008
  %1525 = vmatprep.mubr.bf16.mxu0 %v284
  %1526 = vmatmul.mubr.bf16.gmra.mrb[0].mxu0 %v283
  %v1527 = vpop.f32.mrb[0].mxu0
  %v1528 = vadd.f32 %v1485, %v1527
  %v1529 = vpop.f32.mrb[0].mxu0
  %v1530 = vadd.f32 %v1487, %v1529
  %v1531 = vpop.f32.mrb[0].mxu0
  %v1532 = vadd.f32 %v1489, %v1531
  %v1533 = vpop.f32.mrb[0].mxu0
  %v1534 = vadd.f32 %v1491, %v1533
  %1535 = vdwg.mxu0
  %1536 = vmatprep.subr.bf16.mxu0 %v1013
  %1537 = vmatpush1.bf16.msra.mxu0 %v1012
  %1538 = vmatprep.subr.bf16.mxu0 %v1017
  %1539 = vmatpush1.bf16.msra.mxu0 %v1016
  %1540 = vmatprep.subr.bf16.mxu0 %v1021
  %1541 = vmatpush1.bf16.msra.mxu0 %v1020
  %1542 = vmatprep.subr.bf16.mxu0 %v1025
  %1543 = vmatpush1.bf16.msra.mxu0 %v1024
  %1544 = vmatprep.subr.bf16.mxu0 %v1029
  %1545 = vmatpush1.bf16.msra.mxu0 %v1028
  %1546 = vmatprep.subr.bf16.mxu0 %v1033
  %1547 = vmatpush1.bf16.msra.mxu0 %v1032
  %1548 = vmatprep.subr.bf16.mxu0 %v1037
  %1549 = vmatpush1.bf16.msra.mxu0 %v1036
  %1550 = vmatprep.subr.bf16.mxu0 %v1041
  %1551 = vmatpush1.bf16.msra.mxu0 %v1040
  %1552 = vmatprep.subr.bf16.mxu0 %v1045
  %1553 = vmatpush1.bf16.msra.mxu0 %v1044
  %1554 = vmatprep.subr.bf16.mxu0 %v1049
  %1555 = vmatpush1.bf16.msra.mxu0 %v1048
  %1556 = vmatprep.subr.bf16.mxu0 %v1053
  %1557 = vmatpush1.bf16.msra.mxu0 %v1052
  %1558 = vmatprep.subr.bf16.mxu0 %v1057
  %1559 = vmatpush1.bf16.msra.mxu0 %v1056
  %1560 = vmatprep.subr.bf16.mxu0 %v1061
  %1561 = vmatpush1.bf16.msra.mxu0 %v1060
  %1562 = vmatprep.subr.bf16.mxu0 %v1065
  %1563 = vmatpush1.bf16.msra.mxu0 %v1064
  %1564 = vmatprep.subr.bf16.mxu0 %v1069
  %1565 = vmatpush1.bf16.msra.mxu0 %v1068
  %1566 = vmatprep.subr.bf16.mxu0 %v1073
  %1567 = vmatpush1.bf16.msra.mxu0 %v1072
  %1568 = vmatprep.mubr.bf16.mxu0 %v286
  %1569 = vmatmul.mubr.bf16.gmra.mrb[0].mxu0 %v285
  %v1570 = vpop.f32.mrb[0].mxu0
  %v1571 = vadd.f32 %v1528, %v1570
  %v1572 = vpop.f32.mrb[0].mxu0
  %v1573 = vadd.f32 %v1530, %v1572
  %v1574 = vpop.f32.mrb[0].mxu0
  %v1575 = vadd.f32 %v1532, %v1574
  %v1576 = vpop.f32.mrb[0].mxu0
  %v1577 = vadd.f32 %v1534, %v1576
  %1578 = vdwg.mxu0
  %1579 = vmatprep.subr.bf16.mxu0 %v1077
  %1580 = vmatpush1.bf16.msra.mxu0 %v1076
  %1581 = vmatprep.subr.bf16.mxu0 0
  %1582 = vmatpush1.bf16.msra.mxu0 0
  %1583 = vmatprep.subr.bf16.mxu0 0
  %1584 = vmatpush1.bf16.msra.mxu0 0
  %1585 = vmatprep.subr.bf16.mxu0 0
  %1586 = vmatpush1.bf16.msra.mxu0 0
  %1587 = vmatprep.subr.bf16.mxu0 0
  %1588 = vmatpush1.bf16.msra.mxu0 0
  %1589 = vmatprep.subr.bf16.mxu0 0
  %1590 = vmatpush1.bf16.msra.mxu0 0
  %1591 = vmatprep.subr.bf16.mxu0 0
  %1592 = vmatpush1.bf16.msra.mxu0 0
  %1593 = vmatprep.subr.bf16.mxu0 0
  %1594 = vmatpush1.bf16.msra.mxu0 0
  %1595 = vmatprep.subr.bf16.mxu0 0
  %1596 = vmatpush1.bf16.msra.mxu0 0
  %1597 = vmatprep.subr.bf16.mxu0 0
  %1598 = vmatpush1.bf16.msra.mxu0 0
  %1599 = vmatprep.subr.bf16.mxu0 0
  %1600 = vmatpush1.bf16.msra.mxu0 0
  %1601 = vmatprep.subr.bf16.mxu0 0
  %1602 = vmatpush1.bf16.msra.mxu0 0
  %1603 = vmatprep.subr.bf16.mxu0 0
  %1604 = vmatpush1.bf16.msra.mxu0 0
  %1605 = vmatprep.subr.bf16.mxu0 0
  %1606 = vmatpush1.bf16.msra.mxu0 0
  %1607 = vmatprep.subr.bf16.mxu0 0
  %1608 = vmatpush1.bf16.msra.mxu0 0
  %1609 = vmatprep.subr.bf16.mxu0 0
  %1610 = vmatpush1.bf16.msra.mxu0 0
  %1611 = vmatprep.mubr.bf16.mxu0 0
  %1612 = vmatmul.mubr.bf16.gmra.mrb[0].mxu0 %v1276
  %v1613 = vpop.f32.mrb[0].mxu0
  %v1614 = vadd.f32 %v1571, %v1613
  %v1615 = vpop.f32.mrb[0].mxu0
  %v1616 = vadd.f32 %v1573, %v1615
  %v1617 = vpop.f32.mrb[0].mxu0
  %v1618 = vadd.f32 %v1575, %v1617
  %v1619 = vpop.f32.mrb[0].mxu0
  %v1620 = vadd.f32 %v1577, %v1619
  %1621 = vdwg.mxu0
  %v1622 = vmax.f32 %v1442, 0.0
  %v1623 = vmax.f32 %v1444, 0.0
  %v1624 = vmax.f32 %v1614, 0.0
  %v1625 = vmax.f32 %v1616, 0.0
  %v1626 = vmax.f32 %v1446, 0.0
  %v1627 = vmax.f32 %v1448, 0.0
  %v1628 = vmax.f32 %v1618, 0.0
  %v1629 = vmax.f32 %v1620, 0.0
  %v1630 = vpack.c.bf16 %v1626, %v1622
  %v1631 = vpack.c.bf16 %v1627, %v1623
  %v1632 = vpack.c.bf16 %v1628, %v1624
  %v1633 = vpack.c.bf16 %v1629, %v1625
  %v1634 = vld [vmem:[%s3] sm:$0xf]
  %v1635 = vld [vmem:[%s3 + $0x4] sm:$0xf]
  %v1636 = vld [vmem:[%s3 + $0x8] sm:$0xf]
  %v1637 = vld [vmem:[%s3 + $0xc] sm:$0xf]
  %v1638 = vld [vmem:[%s3 + $0x10] sm:$0xf]
  %v1639 = vld [vmem:[%s3 + $0x14] sm:$0xf]
  %v1640 = vld [vmem:[%s3 + $0x18] sm:$0xf]
  %v1641 = vld [vmem:[%s3 + $0x1c] sm:$0xf]
  %v1642 = vld [vmem:[%s3 + $0x20] sm:$0xf]
  %v1643 = vld [vmem:[%s3 + $0x24] sm:$0xf]
  %v1644 = vld [vmem:[%s3 + $0x28] sm:$0xf]
  %v1645 = vld [vmem:[%s3 + $0x2c] sm:$0xf]
  %v1646 = vld [vmem:[%s3 + $0x30] sm:$0xf]
  %v1647 = vld [vmem:[%s3 + $0x34] sm:$0xf]
  %v1648 = vld [vmem:[%s3 + $0x38] sm:$0xf]
  %v1649 = vld [vmem:[%s3 + $0x3c] sm:$0xf]
  %v1650 = vld [vmem:[%s3 + $0x40] sm:$0xf]
  %v1651 = vld [vmem:[%s3 + $0x44] sm:$0xf]
  %v1652 = vld [vmem:[%s3 + $0x48] sm:$0xf]
  %v1653 = vld [vmem:[%s3 + $0x4c] sm:$0xf]
  %v1654 = vld [vmem:[%s3 + $0x50] sm:$0xf]
  %v1655 = vld [vmem:[%s3 + $0x54] sm:$0xf]
  %v1656 = vld [vmem:[%s3 + $0x58] sm:$0xf]
  %v1657 = vld [vmem:[%s3 + $0x5c] sm:$0xf]
  %v1658 = vld [vmem:[%s3 + $0x60] sm:$0xf]
  %v1659 = vld [vmem:[%s3 + $0x64] sm:$0xf]
  %v1660 = vld [vmem:[%s3 + $0x68] sm:$0xf]
  %v1661 = vld [vmem:[%s3 + $0x6c] sm:$0xf]
  %v1662 = vld [vmem:[%s3 + $0x70] sm:$0xf]
  %v1663 = vld [vmem:[%s3 + $0x74] sm:$0xf]
  %v1664 = vld [vmem:[%s3 + $0x78] sm:$0xf]
  %v1665 = vld [vmem:[%s3 + $0x7c] sm:$0xf]
  %v1666 = vld [vmem:[%s3 + $0x80] sm:$0xf]
  %v1667 = vld [vmem:[%s3 + $0x84] sm:$0xf]
  %v1668 = vld [vmem:[%s3 + $0x88] sm:$0xf]
  %v1669 = vld [vmem:[%s3 + $0x8c] sm:$0xf]
  %v1670 = vld [vmem:[%s3 + $0x90] sm:$0xf]
  %v1671 = vld [vmem:[%s3 + $0x94] sm:$0xf]
  %v1672 = vld [vmem:[%s3 + $0x98] sm:$0xf]
  %v1673 = vld [vmem:[%s3 + $0x9c] sm:$0xf]
  %v1674 = vld [vmem:[%s3 + $0xa0] sm:$0xf]
  %v1675 = vld [vmem:[%s3 + $0xa4] sm:$0xf]
  %v1676 = vld [vmem:[%s3 + $0xa8] sm:$0xf]
  %v1677 = vld [vmem:[%s3 + $0xac] sm:$0xf]
  %v1678 = vld [vmem:[%s3 + $0xb0] sm:$0xf]
  %v1679 = vld [vmem:[%s3 + $0xb4] sm:$0xf]
  %v1680 = vld [vmem:[%s3 + $0xb8] sm:$0xf]
  %v1681 = vld [vmem:[%s3 + $0xbc] sm:$0xf]
  %v1682 = vld [vmem:[%s3 + $0xc0] sm:$0xf]
  %v1683 = vld [vmem:[%s3 + $0xc4] sm:$0xf]
  %v1684 = vld [vmem:[%s3 + $0xc8] sm:$0xf]
  %v1685 = vld [vmem:[%s3 + $0xcc] sm:$0xf]
  %v1686 = vld [vmem:[%s3 + $0xd0] sm:$0xf]
  %v1687 = vld [vmem:[%s3 + $0xd4] sm:$0xf]
  %v1688 = vld [vmem:[%s3 + $0xd8] sm:$0xf]
  %v1689 = vld [vmem:[%s3 + $0xdc] sm:$0xf]
  %v1690 = vld [vmem:[%s3 + $0xe0] sm:$0xf]
  %v1691 = vld [vmem:[%s3 + $0xe4] sm:$0xf]
  %v1692 = vld [vmem:[%s3 + $0xe8] sm:$0xf]
  %v1693 = vld [vmem:[%s3 + $0xec] sm:$0xf]
  %v1694 = vld [vmem:[%s3 + $0xf0] sm:$0xf]
  %v1695 = vld [vmem:[%s3 + $0xf4] sm:$0xf]
  %v1696 = vld [vmem:[%s3 + $0xf8] sm:$0xf]
  %v1697 = vld [vmem:[%s3 + $0xfc] sm:$0xf]
  %v1698 = vld [vmem:[%s4] sm:$0x1]
  %v1700 = vlaneseq
  %v1701 = vshrl.u32 %v1700, 7
  %v1702 = vsub.s32 0, %v1701
  %v1703 = vrot.slane %v1698, %v1702
  %v1769 = vunpack.c.l.b16 %v1634
  %v1770 = vunpack.c.l.b16 %v1635
  %v1771 = vunpack.c.l.b16 %v1636
  %v1772 = vunpack.c.l.b16 %v1637
  %v1773 = vunpack.c.l.b16 %v1638
  %v1774 = vunpack.c.l.b16 %v1639
  %v1775 = vunpack.c.l.b16 %v1640
  %v1776 = vunpack.c.l.b16 %v1641
  %v1777 = vunpack.c.l.b16 %v1642
  %v1778 = vunpack.c.l.b16 %v1643
  %v1779 = vunpack.c.l.b16 %v1644
  %v1780 = vunpack.c.l.b16 %v1645
  %v1781 = vunpack.c.l.b16 %v1646
  %v1782 = vunpack.c.l.b16 %v1647
  %v1783 = vunpack.c.l.b16 %v1648
  %v1784 = vunpack.c.l.b16 %v1649
  %v1785 = vunpack.c.l.b16 %v1650
  %v1786 = vunpack.c.l.b16 %v1651
  %v1787 = vunpack.c.l.b16 %v1652
  %v1788 = vunpack.c.l.b16 %v1653
  %v1789 = vunpack.c.l.b16 %v1654
  %v1790 = vunpack.c.l.b16 %v1655
  %v1791 = vunpack.c.l.b16 %v1656
  %v1792 = vunpack.c.l.b16 %v1657
  %v1793 = vunpack.c.l.b16 %v1658
  %v1794 = vunpack.c.l.b16 %v1659
  %v1795 = vunpack.c.l.b16 %v1660
  %v1796 = vunpack.c.l.b16 %v1661
  %v1797 = vunpack.c.l.b16 %v1662
  %v1798 = vunpack.c.l.b16 %v1663
  %v1799 = vunpack.c.l.b16 %v1664
  %v1800 = vunpack.c.l.b16 %v1665
  %v1801 = vunpack.c.l.b16 %v1666
  %v1802 = vunpack.c.l.b16 %v1667
  %v1803 = vunpack.c.l.b16 %v1668
  %v1804 = vunpack.c.l.b16 %v1669
  %v1805 = vunpack.c.l.b16 %v1670
  %v1806 = vunpack.c.l.b16 %v1671
  %v1807 = vunpack.c.l.b16 %v1672
  %v1808 = vunpack.c.l.b16 %v1673
  %v1809 = vunpack.c.l.b16 %v1674
  %v1810 = vunpack.c.l.b16 %v1675
  %v1811 = vunpack.c.l.b16 %v1676
  %v1812 = vunpack.c.l.b16 %v1677
  %v1813 = vunpack.c.l.b16 %v1678
  %v1814 = vunpack.c.l.b16 %v1679
  %v1815 = vunpack.c.l.b16 %v1680
  %v1816 = vunpack.c.l.b16 %v1681
  %v1817 = vunpack.c.l.b16 %v1682
  %v1818 = vunpack.c.l.b16 %v1683
  %v1819 = vunpack.c.l.b16 %v1684
  %v1820 = vunpack.c.l.b16 %v1685
  %v1821 = vunpack.c.l.b16 %v1686
  %v1822 = vunpack.c.l.b16 %v1687
  %v1823 = vunpack.c.l.b16 %v1688
  %v1824 = vunpack.c.l.b16 %v1689
  %v1825 = vunpack.c.l.b16 %v1690
  %v1826 = vunpack.c.l.b16 %v1691
  %v1827 = vunpack.c.l.b16 %v1692
  %v1828 = vunpack.c.l.b16 %v1693
  %v1829 = vunpack.c.l.b16 %v1694
  %v1830 = vunpack.c.l.b16 %v1695
  %v1831 = vunpack.c.l.b16 %v1696
  %v1832 = vunpack.c.l.b16 %v1697
  %v1833 = vpack.c.b16 %v1770, %v1769
  %v1834 = vpack.c.b16 %v1772, %v1771
  %v1835 = vpack.c.b16 %v1774, %v1773
  %v1836 = vpack.c.b16 %v1776, %v1775
  %v1837 = vpack.c.b16 %v1778, %v1777
  %v1838 = vpack.c.b16 %v1780, %v1779
  %v1839 = vpack.c.b16 %v1782, %v1781
  %v1840 = vpack.c.b16 %v1784, %v1783
  %v1841 = vpack.c.b16 %v1786, %v1785
  %v1842 = vpack.c.b16 %v1788, %v1787
  %v1843 = vpack.c.b16 %v1790, %v1789
  %v1844 = vpack.c.b16 %v1792, %v1791
  %v1845 = vpack.c.b16 %v1794, %v1793
  %v1846 = vpack.c.b16 %v1796, %v1795
  %v1847 = vpack.c.b16 %v1798, %v1797
  %v1848 = vpack.c.b16 %v1800, %v1799
  %v1849 = vpack.c.b16 %v1802, %v1801
  %v1850 = vpack.c.b16 %v1804, %v1803
  %v1851 = vpack.c.b16 %v1806, %v1805
  %v1852 = vpack.c.b16 %v1808, %v1807
  %v1853 = vpack.c.b16 %v1810, %v1809
  %v1854 = vpack.c.b16 %v1812, %v1811
  %v1855 = vpack.c.b16 %v1814, %v1813
  %v1856 = vpack.c.b16 %v1816, %v1815
  %v1857 = vpack.c.b16 %v1818, %v1817
  %v1858 = vpack.c.b16 %v1820, %v1819
  %v1859 = vpack.c.b16 %v1822, %v1821
  %v1860 = vpack.c.b16 %v1824, %v1823
  %v1861 = vpack.c.b16 %v1826, %v1825
  %v1862 = vpack.c.b16 %v1828, %v1827
  %v1863 = vpack.c.b16 %v1830, %v1829
  %v1864 = vpack.c.b16 %v1832, %v1831
  %1897 = vmatprep.subr.bf16.mxu0 0
  %1898 = vmatpush1.bf16.msra.mxu0 %v1833
  %1899 = vmatprep.subr.bf16.mxu0 0
  %1900 = vmatpush1.bf16.msra.mxu0 %v1834
  %1901 = vmatprep.subr.bf16.mxu0 0
  %1902 = vmatpush1.bf16.msra.mxu0 %v1835
  %1903 = vmatprep.subr.bf16.mxu0 0
  %1904 = vmatpush1.bf16.msra.mxu0 %v1836
  %1905 = vmatprep.subr.bf16.mxu0 0
  %1906 = vmatpush1.bf16.msra.mxu0 %v1837
  %1907 = vmatprep.subr.bf16.mxu0 0
  %1908 = vmatpush1.bf16.msra.mxu0 %v1838
  %1909 = vmatprep.subr.bf16.mxu0 0
  %1910 = vmatpush1.bf16.msra.mxu0 %v1839
  %1911 = vmatprep.subr.bf16.mxu0 0
  %1912 = vmatpush1.bf16.msra.mxu0 %v1840
  %1913 = vmatprep.subr.bf16.mxu0 0
  %1914 = vmatpush1.bf16.msra.mxu0 %v1841
  %1915 = vmatprep.subr.bf16.mxu0 0
  %1916 = vmatpush1.bf16.msra.mxu0 %v1842
  %1917 = vmatprep.subr.bf16.mxu0 0
  %1918 = vmatpush1.bf16.msra.mxu0 %v1843
  %1919 = vmatprep.subr.bf16.mxu0 0
  %1920 = vmatpush1.bf16.msra.mxu0 %v1844
  %1921 = vmatprep.subr.bf16.mxu0 0
  %1922 = vmatpush1.bf16.msra.mxu0 %v1845
  %1923 = vmatprep.subr.bf16.mxu0 0
  %1924 = vmatpush1.bf16.msra.mxu0 %v1846
  %1925 = vmatprep.subr.bf16.mxu0 0
  %1926 = vmatpush1.bf16.msra.mxu0 %v1847
  %1927 = vmatprep.subr.bf16.mxu0 0
  %1928 = vmatpush1.bf16.msra.mxu0 %v1848
  %1929 = vmatprep.mubr.bf16.mxu0 %v1631
  %1930 = vmatmul.mubr.bf16.gmra.mrb[0].mxu0 %v1630
  %v1931 = vpop.f32.mrb[0].mxu0
  %v1932 = vadd.f32 %v1703, %v1931
  %v1933 = vpop.f32.mrb[0].mxu0
  %v1934 = vpop.f32.mrb[0].mxu0
  %v1935 = vadd.f32 %v1703, %v1934
  %v1936 = vpop.f32.mrb[0].mxu0
  %1937 = vdwg.mxu0
  %1938 = vmatprep.subr.bf16.mxu0 0
  %1939 = vmatpush1.bf16.msra.mxu0 %v1849
  %1940 = vmatprep.subr.bf16.mxu0 0
  %1941 = vmatpush1.bf16.msra.mxu0 %v1850
  %1942 = vmatprep.subr.bf16.mxu0 0
  %1943 = vmatpush1.bf16.msra.mxu0 %v1851
  %1944 = vmatprep.subr.bf16.mxu0 0
  %1945 = vmatpush1.bf16.msra.mxu0 %v1852
  %1946 = vmatprep.subr.bf16.mxu0 0
  %1947 = vmatpush1.bf16.msra.mxu0 %v1853
  %1948 = vmatprep.subr.bf16.mxu0 0
  %1949 = vmatpush1.bf16.msra.mxu0 %v1854
  %1950 = vmatprep.subr.bf16.mxu0 0
  %1951 = vmatpush1.bf16.msra.mxu0 %v1855
  %1952 = vmatprep.subr.bf16.mxu0 0
  %1953 = vmatpush1.bf16.msra.mxu0 %v1856
  %1954 = vmatprep.subr.bf16.mxu0 0
  %1955 = vmatpush1.bf16.msra.mxu0 %v1857
  %1956 = vmatprep.subr.bf16.mxu0 0
  %1957 = vmatpush1.bf16.msra.mxu0 %v1858
  %1958 = vmatprep.subr.bf16.mxu0 0
  %1959 = vmatpush1.bf16.msra.mxu0 %v1859
  %1960 = vmatprep.subr.bf16.mxu0 0
  %1961 = vmatpush1.bf16.msra.mxu0 %v1860
  %1962 = vmatprep.subr.bf16.mxu0 0
  %1963 = vmatpush1.bf16.msra.mxu0 %v1861
  %1964 = vmatprep.subr.bf16.mxu0 0
  %1965 = vmatpush1.bf16.msra.mxu0 %v1862
  %1966 = vmatprep.subr.bf16.mxu0 0
  %1967 = vmatpush1.bf16.msra.mxu0 %v1863
  %1968 = vmatprep.subr.bf16.mxu0 0
  %1969 = vmatpush1.bf16.msra.mxu0 %v1864
  %1970 = vmatprep.mubr.bf16.mxu0 %v1633
  %1971 = vmatmul.mubr.bf16.gmra.mrb[0].mxu0 %v1632
  %v1972 = vpop.f32.mrb[0].mxu0
  %v1973 = vadd.f32 %v1932, %v1972
  %v1974 = vpop.f32.mrb[0].mxu0
  %v1975 = vpop.f32.mrb[0].mxu0
  %v1976 = vadd.f32 %v1935, %v1975
  %v1977 = vpop.f32.mrb[0].mxu0
  %1978 = vdwg.mxu0
  %v1979 = vpack.c.bf16 %v1976, %v1973
  %v1980 = vld [vmem:[%s5] sm:$0xff]
  %v1981 = vld [vmem:[%s5 + $0x8] sm:$0xff]
  %v1982 = vld [vmem:[%s5 + $0x10] sm:$0xff]
  %v1983 = vld [vmem:[%s5 + $0x18] sm:$0xff]
  %v1984 = vld [vmem:[%s5 + $0x20] sm:$0xff]
  %v1985 = vld [vmem:[%s5 + $0x28] sm:$0xff]
  %v1986 = vld [vmem:[%s5 + $0x30] sm:$0xff]
  %v1987 = vld [vmem:[%s5 + $0x38] sm:$0xff]
  %v1988 = vld [vmem:[%s6] sm:$0xf]
  %v1990 = vlaneseq
  %v1991 = vshrl.u32 %v1990, 7
  %v1992 = vsub.s32 0, %v1991
  %v1993 = vrot.slane %v1988, %v1992
  %v1994 = vlaneseq
  %v1995 = vshrl.u32 %v1994, 7
  %v1996 = vsub.s32 1, %v1995
  %v1997 = vrot.slane %v1988, %v1996
  %v1998 = vlaneseq
  %v1999 = vshrl.u32 %v1998, 7
  %v2000 = vsub.s32 2, %v1999
  %v2001 = vrot.slane %v1988, %v2000
  %v2002 = vlaneseq
  %v2003 = vshrl.u32 %v2002, 7
  %v2004 = vsub.s32 3, %v2003
  %v2005 = vrot.slane %v1988, %v2004
  %v2018 = vunpack.c.l.b16 %v1980
  %v2019 = vunpack.c.h.b16 %v1980
  %v2020 = vunpack.c.l.b16 %v1981
  %v2021 = vunpack.c.h.b16 %v1981
  %v2022 = vunpack.c.l.b16 %v1982
  %v2023 = vunpack.c.h.b16 %v1982
  %v2024 = vunpack.c.l.b16 %v1983
  %v2025 = vunpack.c.h.b16 %v1983
  %v2026 = vunpack.c.l.b16 %v1984
  %v2027 = vunpack.c.h.b16 %v1984
  %v2028 = vunpack.c.l.b16 %v1985
  %v2029 = vunpack.c.h.b16 %v1985
  %v2030 = vunpack.c.l.b16 %v1986
  %v2031 = vunpack.c.h.b16 %v1986
  %v2032 = vunpack.c.l.b16 %v1987
  %v2033 = vunpack.c.h.b16 %v1987
  %v2034 = vpack.c.b16 %v2022, %v2018
  %v2035 = vpack.c.b16 %v2023, %v2019
  %v2036 = vpack.c.b16 %v2024, %v2020
  %v2037 = vpack.c.b16 %v2025, %v2021
  %v2038 = vpack.c.b16 %v2030, %v2026
  %v2039 = vpack.c.b16 %v2031, %v2027
  %v2040 = vpack.c.b16 %v2032, %v2028
  %v2041 = vpack.c.b16 %v2033, %v2029
  %vm2050 = vcmask 261120
  %v2052 = vsel %vm2050, %v1979, 0
  %2054 = vmatprep.subr.bf16.mxu0 %v2035
  %2055 = vmatpush1.bf16.msra.mxu0 %v2034
  %2056 = vmatprep.subr.bf16.mxu0 %v2039
  %2057 = vmatpush1.bf16.msra.mxu0 %v2038
  %2058 = vmatprep.subr.bf16.mxu0 0
  %2059 = vmatpush1.bf16.msra.mxu0 0
  %2060 = vmatprep.subr.bf16.mxu0 0
  %2061 = vmatpush1.bf16.msra.mxu0 0
  %2062 = vmatprep.subr.bf16.mxu0 0
  %2063 = vmatpush1.bf16.msra.mxu0 0
  %2064 = vmatprep.subr.bf16.mxu0 0
  %2065 = vmatpush1.bf16.msra.mxu0 0
  %2066 = vmatprep.subr.bf16.mxu0 0
  %2067 = vmatpush1.bf16.msra.mxu0 0
  %2068 = vmatprep.subr.bf16.mxu0 0
  %2069 = vmatpush1.bf16.msra.mxu0 0
  %2070 = vmatprep.subr.bf16.mxu0 0
  %2071 = vmatpush1.bf16.msra.mxu0 0
  %2072 = vmatprep.subr.bf16.mxu0 0
  %2073 = vmatpush1.bf16.msra.mxu0 0
  %2074 = vmatprep.subr.bf16.mxu0 0
  %2075 = vmatpush1.bf16.msra.mxu0 0
  %2076 = vmatprep.subr.bf16.mxu0 0
  %2077 = vmatpush1.bf16.msra.mxu0 0
  %2078 = vmatprep.subr.bf16.mxu0 0
  %2079 = vmatpush1.bf16.msra.mxu0 0
  %2080 = vmatprep.subr.bf16.mxu0 0
  %2081 = vmatpush1.bf16.msra.mxu0 0
  %2082 = vmatprep.subr.bf16.mxu0 0
  %2083 = vmatpush1.bf16.msra.mxu0 0
  %2084 = vmatprep.subr.bf16.mxu0 0
  %2085 = vmatpush1.bf16.msra.mxu0 0
  %2086 = vmatprep.mubr.bf16.mxu0 0
  %2087 = vmatmul.mubr.bf16.gmra.mrb[0].mxu0 %v2052
  %v2088 = vpop.f32.mrb[0].mxu0
  %v2089 = vadd.f32 %v1993, %v2088
  %v2090 = vpop.f32.mrb[0].mxu0
  %v2091 = vadd.f32 %v1997, %v2090
  %v2092 = vpop.f32.mrb[0].mxu0
  %v2093 = vadd.f32 %v1993, %v2092
  %v2094 = vpop.f32.mrb[0].mxu0
  %v2095 = vadd.f32 %v1997, %v2094
  %2096 = vdwg.mxu0
  %2097 = vmatprep.subr.bf16.mxu0 %v2037
  %2098 = vmatpush1.bf16.msra.mxu0 %v2036
  %2099 = vmatprep.subr.bf16.mxu0 %v2041
  %2100 = vmatpush1.bf16.msra.mxu0 %v2040
  %2101 = vmatprep.subr.bf16.mxu0 0
  %2102 = vmatpush1.bf16.msra.mxu0 0
  %2103 = vmatprep.subr.bf16.mxu0 0
  %2104 = vmatpush1.bf16.msra.mxu0 0
  %2105 = vmatprep.subr.bf16.mxu0 0
  %2106 = vmatpush1.bf16.msra.mxu0 0
  %2107 = vmatprep.subr.bf16.mxu0 0
  %2108 = vmatpush1.bf16.msra.mxu0 0
  %2109 = vmatprep.subr.bf16.mxu0 0
  %2110 = vmatpush1.bf16.msra.mxu0 0
  %2111 = vmatprep.subr.bf16.mxu0 0
  %2112 = vmatpush1.bf16.msra.mxu0 0
  %2113 = vmatprep.subr.bf16.mxu0 0
  %2114 = vmatpush1.bf16.msra.mxu0 0
  %2115 = vmatprep.subr.bf16.mxu0 0
  %2116 = vmatpush1.bf16.msra.mxu0 0
  %2117 = vmatprep.subr.bf16.mxu0 0
  %2118 = vmatpush1.bf16.msra.mxu0 0
  %2119 = vmatprep.subr.bf16.mxu0 0
  %2120 = vmatpush1.bf16.msra.mxu0 0
  %2121 = vmatprep.subr.bf16.mxu0 0
  %2122 = vmatpush1.bf16.msra.mxu0 0
  %2123 = vmatprep.subr.bf16.mxu0 0
  %2124 = vmatpush1.bf16.msra.mxu0 0
  %2125 = vmatprep.subr.bf16.mxu0 0
  %2126 = vmatpush1.bf16.msra.mxu0 0
  %2127 = vmatprep.subr.bf16.mxu0 0
  %2128 = vmatpush1.bf16.msra.mxu0 0
  %2129 = vmatprep.mubr.bf16.mxu0 0
  %2130 = vmatmul.mubr.bf16.gmra.mrb[0].mxu0 %v2052
  %v2131 = vpop.f32.mrb[0].mxu0
  %v2132 = vadd.f32 %v2001, %v2131
  %v2133 = vpop.f32.mrb[0].mxu0
  %v2134 = vadd.f32 %v2005, %v2133
  %v2135 = vpop.f32.mrb[0].mxu0
  %v2136 = vadd.f32 %v2001, %v2135
  %v2137 = vpop.f32.mrb[0].mxu0
  %v2138 = vadd.f32 %v2005, %v2137
  %2139 = vdwg.mxu0
  %v2140 = vmax.f32 %v2089, 0.0
  %v2141 = vmax.f32 %v2091, 0.0
  %v2142 = vmax.f32 %v2132, 0.0
  %v2143 = vmax.f32 %v2134, 0.0
  %v2144 = vmax.f32 %v2093, 0.0
  %v2145 = vmax.f32 %v2095, 0.0
  %v2146 = vmax.f32 %v2136, 0.0
  %v2147 = vmax.f32 %v2138, 0.0
  %v2148 = vpack.c.bf16 %v2144, %v2140
  %v2149 = vpack.c.bf16 %v2145, %v2141
  %v2150 = vpack.c.bf16 %v2146, %v2142
  %v2151 = vpack.c.bf16 %v2147, %v2143
  %v2152 = vld [vmem:[%s7] sm:$0xff]
  %v2153 = vld [vmem:[%s7 + $0x8] sm:$0xff]
  %v2154 = vld [vmem:[%s7 + $0x10] sm:$0xff]
  %v2155 = vld [vmem:[%s7 + $0x18] sm:$0xf]
  %v2156 = vld [vmem:[%s7 + $0x1c] sm:$0xff]
  %v2157 = vld [vmem:[%s7 + $0x24] sm:$0xff]
  %v2158 = vld [vmem:[%s7 + $0x2c] sm:$0xff]
  %v2159 = vld [vmem:[%s7 + $0x34] sm:$0xf]
  %v2160 = vld [vmem:[%s7 + $0x38] sm:$0xff]
  %v2161 = vld [vmem:[%s7 + $0x40] sm:$0xff]
  %v2162 = vld [vmem:[%s7 + $0x48] sm:$0xff]
  %v2163 = vld [vmem:[%s7 + $0x50] sm:$0xf]
  %v2164 = vld [vmem:[%s7 + $0x54] sm:$0xff]
  %v2165 = vld [vmem:[%s7 + $0x5c] sm:$0xff]
  %v2166 = vld [vmem:[%s7 + $0x64] sm:$0xff]
  %v2167 = vld [vmem:[%s7 + $0x6c] sm:$0xf]
  %v2168 = vld [vmem:[%s7 + $0x70] sm:$0xff]
  %v2169 = vld [vmem:[%s7 + $0x78] sm:$0xff]
  %v2170 = vld [vmem:[%s7 + $0x80] sm:$0xff]
  %v2171 = vld [vmem:[%s7 + $0x88] sm:$0xf]
  %v2172 = vld [vmem:[%s7 + $0x8c] sm:$0xff]
  %v2173 = vld [vmem:[%s7 + $0x94] sm:$0xff]
  %v2174 = vld [vmem:[%s7 + $0x9c] sm:$0xff]
  %v2175 = vld [vmem:[%s7 + $0xa4] sm:$0xf]
  %v2176 = vld [vmem:[%s7 + $0xa8] sm:$0xff]
  %v2177 = vld [vmem:[%s7 + $0xb0] sm:$0xff]
  %v2178 = vld [vmem:[%s7 + $0xb8] sm:$0xff]
  %v2179 = vld [vmem:[%s7 + $0xc0] sm:$0xf]
  %v2180 = vld [vmem:[%s7 + $0xc4] sm:$0xff]
  %v2181 = vld [vmem:[%s7 + $0xcc] sm:$0xff]
  %v2182 = vld [vmem:[%s7 + $0xd4] sm:$0xff]
  %v2183 = vld [vmem:[%s7 + $0xdc] sm:$0xf]
  %v2184 = vld [vmem:[%s7 + $0xe0] sm:$0xff]
  %v2185 = vld [vmem:[%s7 + $0xe8] sm:$0xff]
  %v2186 = vld [vmem:[%s7 + $0xf0] sm:$0xff]
  %v2187 = vld [vmem:[%s7 + $0xf8] sm:$0xf]
  %v2188 = vld [vmem:[%s7 + $0xfc] sm:$0xff]
  %v2189 = vld [vmem:[%s7 + $0x104] sm:$0xff]
  %v2190 = vld [vmem:[%s7 + $0x10c] sm:$0xff]
  %v2191 = vld [vmem:[%s7 + $0x114] sm:$0xf]
  %v2192 = vld [vmem:[%s7 + $0x118] sm:$0xff]
  %v2193 = vld [vmem:[%s7 + $0x120] sm:$0xff]
  %v2194 = vld [vmem:[%s7 + $0x128] sm:$0xff]
  %v2195 = vld [vmem:[%s7 + $0x130] sm:$0xf]
  %v2196 = vld [vmem:[%s7 + $0x134] sm:$0xff]
  %v2197 = vld [vmem:[%s7 + $0x13c] sm:$0xff]
  %v2198 = vld [vmem:[%s7 + $0x144] sm:$0xff]
  %v2199 = vld [vmem:[%s7 + $0x14c] sm:$0xf]
  %v2200 = vld [vmem:[%s7 + $0x150] sm:$0xff]
  %v2201 = vld [vmem:[%s7 + $0x158] sm:$0xff]
  %v2202 = vld [vmem:[%s7 + $0x160] sm:$0xff]
  %v2203 = vld [vmem:[%s7 + $0x168] sm:$0xf]
  %v2204 = vld [vmem:[%s7 + $0x16c] sm:$0xff]
  %v2205 = vld [vmem:[%s7 + $0x174] sm:$0xff]
  %v2206 = vld [vmem:[%s7 + $0x17c] sm:$0xff]
  %v2207 = vld [vmem:[%s7 + $0x184] sm:$0xf]
  %v2208 = vld [vmem:[%s7 + $0x188] sm:$0xff]
  %v2209 = vld [vmem:[%s7 + $0x190] sm:$0xff]
  %v2210 = vld [vmem:[%s7 + $0x198] sm:$0xff]
  %v2211 = vld [vmem:[%s7 + $0x1a0] sm:$0xf]
  %v2212 = vld [vmem:[%s7 + $0x1a4] sm:$0xff]
  %v2213 = vld [vmem:[%s7 + $0x1ac] sm:$0xff]
  %v2214 = vld [vmem:[%s7 + $0x1b4] sm:$0xff]
  %v2215 = vld [vmem:[%s7 + $0x1bc] sm:$0xf]
  %v2216 = vld [vmem:[%s7 + $0x1c0] sm:$0xff]
  %v2217 = vld [vmem:[%s7 + $0x1c8] sm:$0xff]
  %v2218 = vld [vmem:[%s7 + $0x1d0] sm:$0xff]
  %v2219 = vld [vmem:[%s7 + $0x1d8] sm:$0xf]
  %v2220 = vld [vmem:[%s7 + $0x1dc] sm:$0xff]
  %v2221 = vld [vmem:[%s7 + $0x1e4] sm:$0xff]
  %v2222 = vld [vmem:[%s7 + $0x1ec] sm:$0xff]
  %v2223 = vld [vmem:[%s7 + $0x1f4] sm:$0xf]
  %v2224 = vld [vmem:[%s7 + $0x1f8] sm:$0xff]
  %v2225 = vld [vmem:[%s7 + $0x200] sm:$0xff]
  %v2226 = vld [vmem:[%s7 + $0x208] sm:$0xff]
  %v2227 = vld [vmem:[%s7 + $0x210] sm:$0xf]
  %v2228 = vld [vmem:[%s7 + $0x214] sm:$0xff]
  %v2229 = vld [vmem:[%s7 + $0x21c] sm:$0xff]
  %v2230 = vld [vmem:[%s7 + $0x224] sm:$0xff]
  %v2231 = vld [vmem:[%s7 + $0x22c] sm:$0xf]
  %v2232 = vld [vmem:[%s7 + $0x230] sm:$0xff]
  %v2233 = vld [vmem:[%s7 + $0x238] sm:$0xff]
  %v2234 = vld [vmem:[%s7 + $0x240] sm:$0xff]
  %v2235 = vld [vmem:[%s7 + $0x248] sm:$0xf]
  %v2236 = vld [vmem:[%s7 + $0x24c] sm:$0xff]
  %v2237 = vld [vmem:[%s7 + $0x254] sm:$0xff]
  %v2238 = vld [vmem:[%s7 + $0x25c] sm:$0xff]
  %v2239 = vld [vmem:[%s7 + $0x264] sm:$0xf]
  %v2240 = vld [vmem:[%s7 + $0x268] sm:$0xff]
  %v2241 = vld [vmem:[%s7 + $0x270] sm:$0xff]
  %v2242 = vld [vmem:[%s7 + $0x278] sm:$0xff]
  %v2243 = vld [vmem:[%s7 + $0x280] sm:$0xf]
  %v2244 = vld [vmem:[%s7 + $0x284] sm:$0xff]
  %v2245 = vld [vmem:[%s7 + $0x28c] sm:$0xff]
  %v2246 = vld [vmem:[%s7 + $0x294] sm:$0xff]
  %v2247 = vld [vmem:[%s7 + $0x29c] sm:$0xf]
  %v2248 = vld [vmem:[%s7 + $0x2a0] sm:$0xff]
  %v2249 = vld [vmem:[%s7 + $0x2a8] sm:$0xff]
  %v2250 = vld [vmem:[%s7 + $0x2b0] sm:$0xff]
  %v2251 = vld [vmem:[%s7 + $0x2b8] sm:$0xf]
  %v2252 = vld [vmem:[%s7 + $0x2bc] sm:$0xff]
  %v2253 = vld [vmem:[%s7 + $0x2c4] sm:$0xff]
  %v2254 = vld [vmem:[%s7 + $0x2cc] sm:$0xff]
  %v2255 = vld [vmem:[%s7 + $0x2d4] sm:$0xf]
  %v2256 = vld [vmem:[%s7 + $0x2d8] sm:$0xff]
  %v2257 = vld [vmem:[%s7 + $0x2e0] sm:$0xff]
  %v2258 = vld [vmem:[%s7 + $0x2e8] sm:$0xff]
  %v2259 = vld [vmem:[%s7 + $0x2f0] sm:$0xf]
  %v2260 = vld [vmem:[%s7 + $0x2f4] sm:$0xff]
  %v2261 = vld [vmem:[%s7 + $0x2fc] sm:$0xff]
  %v2262 = vld [vmem:[%s7 + $0x304] sm:$0xff]
  %v2263 = vld [vmem:[%s7 + $0x30c] sm:$0xf]
  %v2264 = vld [vmem:[%s7 + $0x310] sm:$0xff]
  %v2265 = vld [vmem:[%s7 + $0x318] sm:$0xff]
  %v2266 = vld [vmem:[%s7 + $0x320] sm:$0xff]
  %v2267 = vld [vmem:[%s7 + $0x328] sm:$0xf]
  %v2268 = vld [vmem:[%s7 + $0x32c] sm:$0xff]
  %v2269 = vld [vmem:[%s7 + $0x334] sm:$0xff]
  %v2270 = vld [vmem:[%s7 + $0x33c] sm:$0xff]
  %v2271 = vld [vmem:[%s7 + $0x344] sm:$0xf]
  %v2272 = vld [vmem:[%s7 + $0x348] sm:$0xff]
  %v2273 = vld [vmem:[%s7 + $0x350] sm:$0xff]
  %v2274 = vld [vmem:[%s7 + $0x358] sm:$0xff]
  %v2275 = vld [vmem:[%s7 + $0x360] sm:$0xf]
  %v2276 = vld [vmem:[%s7 + $0x364] sm:$0xff]
  %v2277 = vld [vmem:[%s7 + $0x36c] sm:$0xff]
  %v2278 = vld [vmem:[%s7 + $0x374] sm:$0xff]
  %v2279 = vld [vmem:[%s7 + $0x37c] sm:$0xf]
  %v2280 = vld [vmem:[%s7 + $0x380] sm:$0xff]
  %v2281 = vld [vmem:[%s7 + $0x388] sm:$0xff]
  %v2282 = vld [vmem:[%s7 + $0x390] sm:$0xff]
  %v2283 = vld [vmem:[%s7 + $0x398] sm:$0xf]
  %v2284 = vld [vmem:[%s7 + $0x39c] sm:$0xff]
  %v2285 = vld [vmem:[%s7 + $0x3a4] sm:$0xff]
  %v2286 = vld [vmem:[%s7 + $0x3ac] sm:$0xff]
  %v2287 = vld [vmem:[%s7 + $0x3b4] sm:$0xf]
  %v2288 = vld [vmem:[%s7 + $0x3b8] sm:$0xff]
  %v2289 = vld [vmem:[%s7 + $0x3c0] sm:$0xff]
  %v2290 = vld [vmem:[%s7 + $0x3c8] sm:$0xff]
  %v2291 = vld [vmem:[%s7 + $0x3d0] sm:$0xf]
  %v2292 = vld [vmem:[%s7 + $0x3d4] sm:$0xff]
  %v2293 = vld [vmem:[%s7 + $0x3dc] sm:$0xff]
  %v2294 = vld [vmem:[%s7 + $0x3e4] sm:$0xff]
  %v2295 = vld [vmem:[%s7 + $0x3ec] sm:$0xf]
  %v2296 = vld [vmem:[%s7 + $0x3f0] sm:$0xff]
  %v2297 = vld [vmem:[%s7 + $0x3f8] sm:$0xff]
  %v2298 = vld [vmem:[%s7 + $0x400] sm:$0xff]
  %v2299 = vld [vmem:[%s7 + $0x408] sm:$0xf]
  %v2300 = vld [vmem:[%s7 + $0x40c] sm:$0xff]
  %v2301 = vld [vmem:[%s7 + $0x414] sm:$0xff]
  %v2302 = vld [vmem:[%s7 + $0x41c] sm:$0xff]
  %v2303 = vld [vmem:[%s7 + $0x424] sm:$0xf]
  %v2304 = vld [vmem:[%s7 + $0x428] sm:$0xff]
  %v2305 = vld [vmem:[%s7 + $0x430] sm:$0xff]
  %v2306 = vld [vmem:[%s7 + $0x438] sm:$0xff]
  %v2307 = vld [vmem:[%s7 + $0x440] sm:$0xf]
  %v2308 = vld [vmem:[%s7 + $0x444] sm:$0xff]
  %v2309 = vld [vmem:[%s7 + $0x44c] sm:$0xff]
  %v2310 = vld [vmem:[%s7 + $0x454] sm:$0xff]
  %v2311 = vld [vmem:[%s7 + $0x45c] sm:$0xf]
  %v2312 = vld [vmem:[%s7 + $0x460] sm:$0xff]
  %v2313 = vld [vmem:[%s7 + $0x468] sm:$0xff]
  %v2314 = vld [vmem:[%s7 + $0x470] sm:$0xff]
  %v2315 = vld [vmem:[%s7 + $0x478] sm:$0xf]
  %v2316 = vld [vmem:[%s7 + $0x47c] sm:$0xff]
  %v2317 = vld [vmem:[%s7 + $0x484] sm:$0xff]
  %v2318 = vld [vmem:[%s7 + $0x48c] sm:$0xff]
  %v2319 = vld [vmem:[%s7 + $0x494] sm:$0xf]
  %v2320 = vld [vmem:[%s7 + $0x498] sm:$0xff]
  %v2321 = vld [vmem:[%s7 + $0x4a0] sm:$0xff]
  %v2322 = vld [vmem:[%s7 + $0x4a8] sm:$0xff]
  %v2323 = vld [vmem:[%s7 + $0x4b0] sm:$0xf]
  %v2324 = vld [vmem:[%s7 + $0x4b4] sm:$0xff]
  %v2325 = vld [vmem:[%s7 + $0x4bc] sm:$0xff]
  %v2326 = vld [vmem:[%s7 + $0x4c4] sm:$0xff]
  %v2327 = vld [vmem:[%s7 + $0x4cc] sm:$0xf]
  %v2328 = vld [vmem:[%s7 + $0x4d0] sm:$0xff]
  %v2329 = vld [vmem:[%s7 + $0x4d8] sm:$0xff]
  %v2330 = vld [vmem:[%s7 + $0x4e0] sm:$0xff]
  %v2331 = vld [vmem:[%s7 + $0x4e8] sm:$0xf]
  %v2332 = vld [vmem:[%s7 + $0x4ec] sm:$0xff]
  %v2333 = vld [vmem:[%s7 + $0x4f4] sm:$0xff]
  %v2334 = vld [vmem:[%s7 + $0x4fc] sm:$0xff]
  %v2335 = vld [vmem:[%s7 + $0x504] sm:$0xf]
  %v2336 = vld [vmem:[%s7 + $0x508] sm:$0xff]
  %v2337 = vld [vmem:[%s7 + $0x510] sm:$0xff]
  %v2338 = vld [vmem:[%s7 + $0x518] sm:$0xff]
  %v2339 = vld [vmem:[%s7 + $0x520] sm:$0xf]
  %v2340 = vld [vmem:[%s7 + $0x524] sm:$0xff]
  %v2341 = vld [vmem:[%s7 + $0x52c] sm:$0xff]
  %v2342 = vld [vmem:[%s7 + $0x534] sm:$0xff]
  %v2343 = vld [vmem:[%s7 + $0x53c] sm:$0xf]
  %v2344 = vld [vmem:[%s7 + $0x540] sm:$0xff]
  %v2345 = vld [vmem:[%s7 + $0x548] sm:$0xff]
  %v2346 = vld [vmem:[%s7 + $0x550] sm:$0xff]
  %v2347 = vld [vmem:[%s7 + $0x558] sm:$0xf]
  %v2348 = vld [vmem:[%s7 + $0x55c] sm:$0xff]
  %v2349 = vld [vmem:[%s7 + $0x564] sm:$0xff]
  %v2350 = vld [vmem:[%s7 + $0x56c] sm:$0xff]
  %v2351 = vld [vmem:[%s7 + $0x574] sm:$0xf]
  %v2352 = vld [vmem:[%s7 + $0x578] sm:$0xff]
  %v2353 = vld [vmem:[%s7 + $0x580] sm:$0xff]
  %v2354 = vld [vmem:[%s7 + $0x588] sm:$0xff]
  %v2355 = vld [vmem:[%s7 + $0x590] sm:$0xf]
  %v2356 = vld [vmem:[%s7 + $0x594] sm:$0xff]
  %v2357 = vld [vmem:[%s7 + $0x59c] sm:$0xff]
  %v2358 = vld [vmem:[%s7 + $0x5a4] sm:$0xff]
  %v2359 = vld [vmem:[%s7 + $0x5ac] sm:$0xf]
  %v2360 = vld [vmem:[%s7 + $0x5b0] sm:$0xff]
  %v2361 = vld [vmem:[%s7 + $0x5b8] sm:$0xff]
  %v2362 = vld [vmem:[%s7 + $0x5c0] sm:$0xff]
  %v2363 = vld [vmem:[%s7 + $0x5c8] sm:$0xf]
  %v2364 = vld [vmem:[%s7 + $0x5cc] sm:$0xff]
  %v2365 = vld [vmem:[%s7 + $0x5d4] sm:$0xff]
  %v2366 = vld [vmem:[%s7 + $0x5dc] sm:$0xff]
  %v2367 = vld [vmem:[%s7 + $0x5e4] sm:$0xf]
  %v2368 = vld [vmem:[%s7 + $0x5e8] sm:$0xff]
  %v2369 = vld [vmem:[%s7 + $0x5f0] sm:$0xff]
  %v2370 = vld [vmem:[%s7 + $0x5f8] sm:$0xff]
  %v2371 = vld [vmem:[%s7 + $0x600] sm:$0xf]
  %v2372 = vld [vmem:[%s7 + $0x604] sm:$0xff]
  %v2373 = vld [vmem:[%s7 + $0x60c] sm:$0xff]
  %v2374 = vld [vmem:[%s7 + $0x614] sm:$0xff]
  %v2375 = vld [vmem:[%s7 + $0x61c] sm:$0xf]
  %v2376 = vld [vmem:[%s7 + $0x620] sm:$0xff]
  %v2377 = vld [vmem:[%s7 + $0x628] sm:$0xff]
  %v2378 = vld [vmem:[%s7 + $0x630] sm:$0xff]
  %v2379 = vld [vmem:[%s7 + $0x638] sm:$0xf]
  %v2380 = vld [vmem:[%s7 + $0x63c] sm:$0xff]
  %v2381 = vld [vmem:[%s7 + $0x644] sm:$0xff]
  %v2382 = vld [vmem:[%s7 + $0x64c] sm:$0xff]
  %v2383 = vld [vmem:[%s7 + $0x654] sm:$0xf]
  %v2384 = vld [vmem:[%s7 + $0x658] sm:$0xff]
  %v2385 = vld [vmem:[%s7 + $0x660] sm:$0xff]
  %v2386 = vld [vmem:[%s7 + $0x668] sm:$0xff]
  %v2387 = vld [vmem:[%s7 + $0x670] sm:$0xf]
  %v2388 = vld [vmem:[%s7 + $0x674] sm:$0xff]
  %v2389 = vld [vmem:[%s7 + $0x67c] sm:$0xff]
  %v2390 = vld [vmem:[%s7 + $0x684] sm:$0xff]
  %v2391 = vld [vmem:[%s7 + $0x68c] sm:$0xf]
  %v2392 = vld [vmem:[%s7 + $0x690] sm:$0xff]
  %v2393 = vld [vmem:[%s7 + $0x698] sm:$0xff]
  %v2394 = vld [vmem:[%s7 + $0x6a0] sm:$0xff]
  %v2395 = vld [vmem:[%s7 + $0x6a8] sm:$0xf]
  %v2396 = vld [vmem:[%s7 + $0x6ac] sm:$0xff]
  %v2397 = vld [vmem:[%s7 + $0x6b4] sm:$0xff]
  %v2398 = vld [vmem:[%s7 + $0x6bc] sm:$0xff]
  %v2399 = vld [vmem:[%s7 + $0x6c4] sm:$0xf]
  %v2400 = vld [vmem:[%s7 + $0x6c8] sm:$0xff]
  %v2401 = vld [vmem:[%s7 + $0x6d0] sm:$0xff]
  %v2402 = vld [vmem:[%s7 + $0x6d8] sm:$0xff]
  %v2403 = vld [vmem:[%s7 + $0x6e0] sm:$0xf]
  %v2404 = vld [vmem:[%s7 + $0x6e4] sm:$0xff]
  %v2405 = vld [vmem:[%s7 + $0x6ec] sm:$0xff]
  %v2406 = vld [vmem:[%s7 + $0x6f4] sm:$0xff]
  %v2407 = vld [vmem:[%s7 + $0x6fc] sm:$0xf]
  %v2408 = vld [vmem:[%s8] sm:$0x7f]
  %v2410 = vlaneseq
  %v2411 = vshrl.u32 %v2410, 7
  %v2412 = vsub.s32 0, %v2411
  %v2413 = vrot.slane %v2408, %v2412
  %v2414 = vlaneseq
  %v2415 = vshrl.u32 %v2414, 7
  %v2416 = vsub.s32 1, %v2415
  %v2417 = vrot.slane %v2408, %v2416
  %v2418 = vlaneseq
  %v2419 = vshrl.u32 %v2418, 7
  %v2420 = vsub.s32 2, %v2419
  %v2421 = vrot.slane %v2408, %v2420
  %v2422 = vlaneseq
  %v2423 = vshrl.u32 %v2422, 7
  %v2424 = vsub.s32 3, %v2423
  %v2425 = vrot.slane %v2408, %v2424
  %v2426 = vlaneseq
  %v2427 = vshrl.u32 %v2426, 7
  %v2428 = vsub.s32 4, %v2427
  %v2429 = vrot.slane %v2408, %v2428
  %v2430 = vlaneseq
  %v2431 = vshrl.u32 %v2430, 7
  %v2432 = vsub.s32 5, %v2431
  %v2433 = vrot.slane %v2408, %v2432
  %v2434 = vlaneseq
  %v2435 = vshrl.u32 %v2434, 7
  %v2436 = vsub.s32 6, %v2435
  %v2437 = vrot.slane %v2408, %v2436
  %v2701 = vunpack.c.l.b16 %v2152
  %v2702 = vunpack.c.h.b16 %v2152
  %v2703 = vunpack.c.l.b16 %v2153
  %v2704 = vunpack.c.h.b16 %v2153
  %v2705 = vunpack.c.l.b16 %v2154
  %v2706 = vunpack.c.h.b16 %v2154
  %v2707 = vunpack.c.l.b16 %v2155
  %v2708 = vunpack.c.l.b16 %v2156
  %v2709 = vunpack.c.h.b16 %v2156
  %v2710 = vunpack.c.l.b16 %v2157
  %v2711 = vunpack.c.h.b16 %v2157
  %v2712 = vunpack.c.l.b16 %v2158
  %v2713 = vunpack.c.h.b16 %v2158
  %v2714 = vunpack.c.l.b16 %v2159
  %v2715 = vunpack.c.l.b16 %v2160
  %v2716 = vunpack.c.h.b16 %v2160
  %v2717 = vunpack.c.l.b16 %v2161
  %v2718 = vunpack.c.h.b16 %v2161
  %v2719 = vunpack.c.l.b16 %v2162
  %v2720 = vunpack.c.h.b16 %v2162
  %v2721 = vunpack.c.l.b16 %v2163
  %v2722 = vunpack.c.l.b16 %v2164
  %v2723 = vunpack.c.h.b16 %v2164
  %v2724 = vunpack.c.l.b16 %v2165
  %v2725 = vunpack.c.h.b16 %v2165
  %v2726 = vunpack.c.l.b16 %v2166
  %v2727 = vunpack.c.h.b16 %v2166
  %v2728 = vunpack.c.l.b16 %v2167
  %v2729 = vunpack.c.l.b16 %v2168
  %v2730 = vunpack.c.h.b16 %v2168
  %v2731 = vunpack.c.l.b16 %v2169
  %v2732 = vunpack.c.h.b16 %v2169
  %v2733 = vunpack.c.l.b16 %v2170
  %v2734 = vunpack.c.h.b16 %v2170
  %v2735 = vunpack.c.l.b16 %v2171
  %v2736 = vunpack.c.l.b16 %v2172
  %v2737 = vunpack.c.h.b16 %v2172
  %v2738 = vunpack.c.l.b16 %v2173
  %v2739 = vunpack.c.h.b16 %v2173
  %v2740 = vunpack.c.l.b16 %v2174
  %v2741 = vunpack.c.h.b16 %v2174
  %v2742 = vunpack.c.l.b16 %v2175
  %v2743 = vunpack.c.l.b16 %v2176
  %v2744 = vunpack.c.h.b16 %v2176
  %v2745 = vunpack.c.l.b16 %v2177
  %v2746 = vunpack.c.h.b16 %v2177
  %v2747 = vunpack.c.l.b16 %v2178
  %v2748 = vunpack.c.h.b16 %v2178
  %v2749 = vunpack.c.l.b16 %v2179
  %v2750 = vunpack.c.l.b16 %v2180
  %v2751 = vunpack.c.h.b16 %v2180
  %v2752 = vunpack.c.l.b16 %v2181
  %v2753 = vunpack.c.h.b16 %v2181
  %v2754 = vunpack.c.l.b16 %v2182
  %v2755 = vunpack.c.h.b16 %v2182
  %v2756 = vunpack.c.l.b16 %v2183
  %v2757 = vunpack.c.l.b16 %v2184
  %v2758 = vunpack.c.h.b16 %v2184
  %v2759 = vunpack.c.l.b16 %v2185
  %v2760 = vunpack.c.h.b16 %v2185
  %v2761 = vunpack.c.l.b16 %v2186
  %v2762 = vunpack.c.h.b16 %v2186
  %v2763 = vunpack.c.l.b16 %v2187
  %v2764 = vunpack.c.l.b16 %v2188
  %v2765 = vunpack.c.h.b16 %v2188
  %v2766 = vunpack.c.l.b16 %v2189
  %v2767 = vunpack.c.h.b16 %v2189
  %v2768 = vunpack.c.l.b16 %v2190
  %v2769 = vunpack.c.h.b16 %v2190
  %v2770 = vunpack.c.l.b16 %v2191
  %v2771 = vunpack.c.l.b16 %v2192
  %v2772 = vunpack.c.h.b16 %v2192
  %v2773 = vunpack.c.l.b16 %v2193
  %v2774 = vunpack.c.h.b16 %v2193
  %v2775 = vunpack.c.l.b16 %v2194
  %v2776 = vunpack.c.h.b16 %v2194
  %v2777 = vunpack.c.l.b16 %v2195
  %v2778 = vunpack.c.l.b16 %v2196
  %v2779 = vunpack.c.h.b16 %v2196
  %v2780 = vunpack.c.l.b16 %v2197
  %v2781 = vunpack.c.h.b16 %v2197
  %v2782 = vunpack.c.l.b16 %v2198
  %v2783 = vunpack.c.h.b16 %v2198
  %v2784 = vunpack.c.l.b16 %v2199
  %v2785 = vunpack.c.l.b16 %v2200
  %v2786 = vunpack.c.h.b16 %v2200
  %v2787 = vunpack.c.l.b16 %v2201
  %v2788 = vunpack.c.h.b16 %v2201
  %v2789 = vunpack.c.l.b16 %v2202
  %v2790 = vunpack.c.h.b16 %v2202
  %v2791 = vunpack.c.l.b16 %v2203
  %v2792 = vunpack.c.l.b16 %v2204
  %v2793 = vunpack.c.h.b16 %v2204
  %v2794 = vunpack.c.l.b16 %v2205
  %v2795 = vunpack.c.h.b16 %v2205
  %v2796 = vunpack.c.l.b16 %v2206
  %v2797 = vunpack.c.h.b16 %v2206
  %v2798 = vunpack.c.l.b16 %v2207
  %v2799 = vunpack.c.l.b16 %v2208
  %v2800 = vunpack.c.h.b16 %v2208
  %v2801 = vunpack.c.l.b16 %v2209
  %v2802 = vunpack.c.h.b16 %v2209
  %v2803 = vunpack.c.l.b16 %v2210
  %v2804 = vunpack.c.h.b16 %v2210
  %v2805 = vunpack.c.l.b16 %v2211
  %v2806 = vunpack.c.l.b16 %v2212
  %v2807 = vunpack.c.h.b16 %v2212
  %v2808 = vunpack.c.l.b16 %v2213
  %v2809 = vunpack.c.h.b16 %v2213
  %v2810 = vunpack.c.l.b16 %v2214
  %v2811 = vunpack.c.h.b16 %v2214
  %v2812 = vunpack.c.l.b16 %v2215
  %v2813 = vunpack.c.l.b16 %v2216
  %v2814 = vunpack.c.h.b16 %v2216
  %v2815 = vunpack.c.l.b16 %v2217
  %v2816 = vunpack.c.h.b16 %v2217
  %v2817 = vunpack.c.l.b16 %v2218
  %v2818 = vunpack.c.h.b16 %v2218
  %v2819 = vunpack.c.l.b16 %v2219
  %v2820 = vunpack.c.l.b16 %v2220
  %v2821 = vunpack.c.h.b16 %v2220
  %v2822 = vunpack.c.l.b16 %v2221
  %v2823 = vunpack.c.h.b16 %v2221
  %v2824 = vunpack.c.l.b16 %v2222
  %v2825 = vunpack.c.h.b16 %v2222
  %v2826 = vunpack.c.l.b16 %v2223
  %v2827 = vunpack.c.l.b16 %v2224
  %v2828 = vunpack.c.h.b16 %v2224
  %v2829 = vunpack.c.l.b16 %v2225
  %v2830 = vunpack.c.h.b16 %v2225
  %v2831 = vunpack.c.l.b16 %v2226
  %v2832 = vunpack.c.h.b16 %v2226
  %v2833 = vunpack.c.l.b16 %v2227
  %v2834 = vunpack.c.l.b16 %v2228
  %v2835 = vunpack.c.h.b16 %v2228
  %v2836 = vunpack.c.l.b16 %v2229
  %v2837 = vunpack.c.h.b16 %v2229
  %v2838 = vunpack.c.l.b16 %v2230
  %v2839 = vunpack.c.h.b16 %v2230
  %v2840 = vunpack.c.l.b16 %v2231
  %v2841 = vunpack.c.l.b16 %v2232
  %v2842 = vunpack.c.h.b16 %v2232
  %v2843 = vunpack.c.l.b16 %v2233
  %v2844 = vunpack.c.h.b16 %v2233
  %v2845 = vunpack.c.l.b16 %v2234
  %v2846 = vunpack.c.h.b16 %v2234
  %v2847 = vunpack.c.l.b16 %v2235
  %v2848 = vunpack.c.l.b16 %v2236
  %v2849 = vunpack.c.h.b16 %v2236
  %v2850 = vunpack.c.l.b16 %v2237
  %v2851 = vunpack.c.h.b16 %v2237
  %v2852 = vunpack.c.l.b16 %v2238
  %v2853 = vunpack.c.h.b16 %v2238
  %v2854 = vunpack.c.l.b16 %v2239
  %v2855 = vunpack.c.l.b16 %v2240
  %v2856 = vunpack.c.h.b16 %v2240
  %v2857 = vunpack.c.l.b16 %v2241
  %v2858 = vunpack.c.h.b16 %v2241
  %v2859 = vunpack.c.l.b16 %v2242
  %v2860 = vunpack.c.h.b16 %v2242
  %v2861 = vunpack.c.l.b16 %v2243
  %v2862 = vunpack.c.l.b16 %v2244
  %v2863 = vunpack.c.h.b16 %v2244
  %v2864 = vunpack.c.l.b16 %v2245
  %v2865 = vunpack.c.h.b16 %v2245
  %v2866 = vunpack.c.l.b16 %v2246
  %v2867 = vunpack.c.h.b16 %v2246
  %v2868 = vunpack.c.l.b16 %v2247
  %v2869 = vunpack.c.l.b16 %v2248
  %v2870 = vunpack.c.h.b16 %v2248
  %v2871 = vunpack.c.l.b16 %v2249
  %v2872 = vunpack.c.h.b16 %v2249
  %v2873 = vunpack.c.l.b16 %v2250
  %v2874 = vunpack.c.h.b16 %v2250
  %v2875 = vunpack.c.l.b16 %v2251
  %v2876 = vunpack.c.l.b16 %v2252
  %v2877 = vunpack.c.h.b16 %v2252
  %v2878 = vunpack.c.l.b16 %v2253
  %v2879 = vunpack.c.h.b16 %v2253
  %v2880 = vunpack.c.l.b16 %v2254
  %v2881 = vunpack.c.h.b16 %v2254
  %v2882 = vunpack.c.l.b16 %v2255
  %v2883 = vunpack.c.l.b16 %v2256
  %v2884 = vunpack.c.h.b16 %v2256
  %v2885 = vunpack.c.l.b16 %v2257
  %v2886 = vunpack.c.h.b16 %v2257
  %v2887 = vunpack.c.l.b16 %v2258
  %v2888 = vunpack.c.h.b16 %v2258
  %v2889 = vunpack.c.l.b16 %v2259
  %v2890 = vunpack.c.l.b16 %v2260
  %v2891 = vunpack.c.h.b16 %v2260
  %v2892 = vunpack.c.l.b16 %v2261
  %v2893 = vunpack.c.h.b16 %v2261
  %v2894 = vunpack.c.l.b16 %v2262
  %v2895 = vunpack.c.h.b16 %v2262
  %v2896 = vunpack.c.l.b16 %v2263
  %v2897 = vunpack.c.l.b16 %v2264
  %v2898 = vunpack.c.h.b16 %v2264
  %v2899 = vunpack.c.l.b16 %v2265
  %v2900 = vunpack.c.h.b16 %v2265
  %v2901 = vunpack.c.l.b16 %v2266
  %v2902 = vunpack.c.h.b16 %v2266
  %v2903 = vunpack.c.l.b16 %v2267
  %v2904 = vunpack.c.l.b16 %v2268
  %v2905 = vunpack.c.h.b16 %v2268
  %v2906 = vunpack.c.l.b16 %v2269
  %v2907 = vunpack.c.h.b16 %v2269
  %v2908 = vunpack.c.l.b16 %v2270
  %v2909 = vunpack.c.h.b16 %v2270
  %v2910 = vunpack.c.l.b16 %v2271
  %v2911 = vunpack.c.l.b16 %v2272
  %v2912 = vunpack.c.h.b16 %v2272
  %v2913 = vunpack.c.l.b16 %v2273
  %v2914 = vunpack.c.h.b16 %v2273
  %v2915 = vunpack.c.l.b16 %v2274
  %v2916 = vunpack.c.h.b16 %v2274
  %v2917 = vunpack.c.l.b16 %v2275
  %v2918 = vunpack.c.l.b16 %v2276
  %v2919 = vunpack.c.h.b16 %v2276
  %v2920 = vunpack.c.l.b16 %v2277
  %v2921 = vunpack.c.h.b16 %v2277
  %v2922 = vunpack.c.l.b16 %v2278
  %v2923 = vunpack.c.h.b16 %v2278
  %v2924 = vunpack.c.l.b16 %v2279
  %v2925 = vunpack.c.l.b16 %v2280
  %v2926 = vunpack.c.h.b16 %v2280
  %v2927 = vunpack.c.l.b16 %v2281
  %v2928 = vunpack.c.h.b16 %v2281
  %v2929 = vunpack.c.l.b16 %v2282
  %v2930 = vunpack.c.h.b16 %v2282
  %v2931 = vunpack.c.l.b16 %v2283
  %v2932 = vunpack.c.l.b16 %v2284
  %v2933 = vunpack.c.h.b16 %v2284
  %v2934 = vunpack.c.l.b16 %v2285
  %v2935 = vunpack.c.h.b16 %v2285
  %v2936 = vunpack.c.l.b16 %v2286
  %v2937 = vunpack.c.h.b16 %v2286
  %v2938 = vunpack.c.l.b16 %v2287
  %v2939 = vunpack.c.l.b16 %v2288
  %v2940 = vunpack.c.h.b16 %v2288
  %v2941 = vunpack.c.l.b16 %v2289
  %v2942 = vunpack.c.h.b16 %v2289
  %v2943 = vunpack.c.l.b16 %v2290
  %v2944 = vunpack.c.h.b16 %v2290
  %v2945 = vunpack.c.l.b16 %v2291
  %v2946 = vunpack.c.l.b16 %v2292
  %v2947 = vunpack.c.h.b16 %v2292
  %v2948 = vunpack.c.l.b16 %v2293
  %v2949 = vunpack.c.h.b16 %v2293
  %v2950 = vunpack.c.l.b16 %v2294
  %v2951 = vunpack.c.h.b16 %v2294
  %v2952 = vunpack.c.l.b16 %v2295
  %v2953 = vunpack.c.l.b16 %v2296
  %v2954 = vunpack.c.h.b16 %v2296
  %v2955 = vunpack.c.l.b16 %v2297
  %v2956 = vunpack.c.h.b16 %v2297
  %v2957 = vunpack.c.l.b16 %v2298
  %v2958 = vunpack.c.h.b16 %v2298
  %v2959 = vunpack.c.l.b16 %v2299
  %v2960 = vunpack.c.l.b16 %v2300
  %v2961 = vunpack.c.h.b16 %v2300
  %v2962 = vunpack.c.l.b16 %v2301
  %v2963 = vunpack.c.h.b16 %v2301
  %v2964 = vunpack.c.l.b16 %v2302
  %v2965 = vunpack.c.h.b16 %v2302
  %v2966 = vunpack.c.l.b16 %v2303
  %v2967 = vunpack.c.l.b16 %v2304
  %v2968 = vunpack.c.h.b16 %v2304
  %v2969 = vunpack.c.l.b16 %v2305
  %v2970 = vunpack.c.h.b16 %v2305
  %v2971 = vunpack.c.l.b16 %v2306
  %v2972 = vunpack.c.h.b16 %v2306
  %v2973 = vunpack.c.l.b16 %v2307
  %v2974 = vunpack.c.l.b16 %v2308
  %v2975 = vunpack.c.h.b16 %v2308
  %v2976 = vunpack.c.l.b16 %v2309
  %v2977 = vunpack.c.h.b16 %v2309
  %v2978 = vunpack.c.l.b16 %v2310
  %v2979 = vunpack.c.h.b16 %v2310
  %v2980 = vunpack.c.l.b16 %v2311
  %v2981 = vunpack.c.l.b16 %v2312
  %v2982 = vunpack.c.h.b16 %v2312
  %v2983 = vunpack.c.l.b16 %v2313
  %v2984 = vunpack.c.h.b16 %v2313
  %v2985 = vunpack.c.l.b16 %v2314
  %v2986 = vunpack.c.h.b16 %v2314
  %v2987 = vunpack.c.l.b16 %v2315
  %v2988 = vunpack.c.l.b16 %v2316
  %v2989 = vunpack.c.h.b16 %v2316
  %v2990 = vunpack.c.l.b16 %v2317
  %v2991 = vunpack.c.h.b16 %v2317
  %v2992 = vunpack.c.l.b16 %v2318
  %v2993 = vunpack.c.h.b16 %v2318
  %v2994 = vunpack.c.l.b16 %v2319
  %v2995 = vunpack.c.l.b16 %v2320
  %v2996 = vunpack.c.h.b16 %v2320
  %v2997 = vunpack.c.l.b16 %v2321
  %v2998 = vunpack.c.h.b16 %v2321
  %v2999 = vunpack.c.l.b16 %v2322
  %v3000 = vunpack.c.h.b16 %v2322
  %v3001 = vunpack.c.l.b16 %v2323
  %v3002 = vunpack.c.l.b16 %v2324
  %v3003 = vunpack.c.h.b16 %v2324
  %v3004 = vunpack.c.l.b16 %v2325
  %v3005 = vunpack.c.h.b16 %v2325
  %v3006 = vunpack.c.l.b16 %v2326
  %v3007 = vunpack.c.h.b16 %v2326
  %v3008 = vunpack.c.l.b16 %v2327
  %v3009 = vunpack.c.l.b16 %v2328
  %v3010 = vunpack.c.h.b16 %v2328
  %v3011 = vunpack.c.l.b16 %v2329
  %v3012 = vunpack.c.h.b16 %v2329
  %v3013 = vunpack.c.l.b16 %v2330
  %v3014 = vunpack.c.h.b16 %v2330
  %v3015 = vunpack.c.l.b16 %v2331
  %v3016 = vunpack.c.l.b16 %v2332
  %v3017 = vunpack.c.h.b16 %v2332
  %v3018 = vunpack.c.l.b16 %v2333
  %v3019 = vunpack.c.h.b16 %v2333
  %v3020 = vunpack.c.l.b16 %v2334
  %v3021 = vunpack.c.h.b16 %v2334
  %v3022 = vunpack.c.l.b16 %v2335
  %v3023 = vunpack.c.l.b16 %v2336
  %v3024 = vunpack.c.h.b16 %v2336
  %v3025 = vunpack.c.l.b16 %v2337
  %v3026 = vunpack.c.h.b16 %v2337
  %v3027 = vunpack.c.l.b16 %v2338
  %v3028 = vunpack.c.h.b16 %v2338
  %v3029 = vunpack.c.l.b16 %v2339
  %v3030 = vunpack.c.l.b16 %v2340
  %v3031 = vunpack.c.h.b16 %v2340
  %v3032 = vunpack.c.l.b16 %v2341
  %v3033 = vunpack.c.h.b16 %v2341
  %v3034 = vunpack.c.l.b16 %v2342
  %v3035 = vunpack.c.h.b16 %v2342
  %v3036 = vunpack.c.l.b16 %v2343
  %v3037 = vunpack.c.l.b16 %v2344
  %v3038 = vunpack.c.h.b16 %v2344
  %v3039 = vunpack.c.l.b16 %v2345
  %v3040 = vunpack.c.h.b16 %v2345
  %v3041 = vunpack.c.l.b16 %v2346
  %v3042 = vunpack.c.h.b16 %v2346
  %v3043 = vunpack.c.l.b16 %v2347
  %v3044 = vunpack.c.l.b16 %v2348
  %v3045 = vunpack.c.h.b16 %v2348
  %v3046 = vunpack.c.l.b16 %v2349
  %v3047 = vunpack.c.h.b16 %v2349
  %v3048 = vunpack.c.l.b16 %v2350
  %v3049 = vunpack.c.h.b16 %v2350
  %v3050 = vunpack.c.l.b16 %v2351
  %v3051 = vunpack.c.l.b16 %v2352
  %v3052 = vunpack.c.h.b16 %v2352
  %v3053 = vunpack.c.l.b16 %v2353
  %v3054 = vunpack.c.h.b16 %v2353
  %v3055 = vunpack.c.l.b16 %v2354
  %v3056 = vunpack.c.h.b16 %v2354
  %v3057 = vunpack.c.l.b16 %v2355
  %v3058 = vunpack.c.l.b16 %v2356
  %v3059 = vunpack.c.h.b16 %v2356
  %v3060 = vunpack.c.l.b16 %v2357
  %v3061 = vunpack.c.h.b16 %v2357
  %v3062 = vunpack.c.l.b16 %v2358
  %v3063 = vunpack.c.h.b16 %v2358
  %v3064 = vunpack.c.l.b16 %v2359
  %v3065 = vunpack.c.l.b16 %v2360
  %v3066 = vunpack.c.h.b16 %v2360
  %v3067 = vunpack.c.l.b16 %v2361
  %v3068 = vunpack.c.h.b16 %v2361
  %v3069 = vunpack.c.l.b16 %v2362
  %v3070 = vunpack.c.h.b16 %v2362
  %v3071 = vunpack.c.l.b16 %v2363
  %v3072 = vunpack.c.l.b16 %v2364
  %v3073 = vunpack.c.h.b16 %v2364
  %v3074 = vunpack.c.l.b16 %v2365
  %v3075 = vunpack.c.h.b16 %v2365
  %v3076 = vunpack.c.l.b16 %v2366
  %v3077 = vunpack.c.h.b16 %v2366
  %v3078 = vunpack.c.l.b16 %v2367
  %v3079 = vunpack.c.l.b16 %v2368
  %v3080 = vunpack.c.h.b16 %v2368
  %v3081 = vunpack.c.l.b16 %v2369
  %v3082 = vunpack.c.h.b16 %v2369
  %v3083 = vunpack.c.l.b16 %v2370
  %v3084 = vunpack.c.h.b16 %v2370
  %v3085 = vunpack.c.l.b16 %v2371
  %v3086 = vunpack.c.l.b16 %v2372
  %v3087 = vunpack.c.h.b16 %v2372
  %v3088 = vunpack.c.l.b16 %v2373
  %v3089 = vunpack.c.h.b16 %v2373
  %v3090 = vunpack.c.l.b16 %v2374
  %v3091 = vunpack.c.h.b16 %v2374
  %v3092 = vunpack.c.l.b16 %v2375
  %v3093 = vunpack.c.l.b16 %v2376
  %v3094 = vunpack.c.h.b16 %v2376
  %v3095 = vunpack.c.l.b16 %v2377
  %v3096 = vunpack.c.h.b16 %v2377
  %v3097 = vunpack.c.l.b16 %v2378
  %v3098 = vunpack.c.h.b16 %v2378
  %v3099 = vunpack.c.l.b16 %v2379
  %v3100 = vunpack.c.l.b16 %v2380
  %v3101 = vunpack.c.h.b16 %v2380
  %v3102 = vunpack.c.l.b16 %v2381
  %v3103 = vunpack.c.h.b16 %v2381
  %v3104 = vunpack.c.l.b16 %v2382
  %v3105 = vunpack.c.h.b16 %v2382
  %v3106 = vunpack.c.l.b16 %v2383
  %v3107 = vunpack.c.l.b16 %v2384
  %v3108 = vunpack.c.h.b16 %v2384
  %v3109 = vunpack.c.l.b16 %v2385
  %v3110 = vunpack.c.h.b16 %v2385
  %v3111 = vunpack.c.l.b16 %v2386
  %v3112 = vunpack.c.h.b16 %v2386
  %v3113 = vunpack.c.l.b16 %v2387
  %v3114 = vunpack.c.l.b16 %v2388
  %v3115 = vunpack.c.h.b16 %v2388
  %v3116 = vunpack.c.l.b16 %v2389
  %v3117 = vunpack.c.h.b16 %v2389
  %v3118 = vunpack.c.l.b16 %v2390
  %v3119 = vunpack.c.h.b16 %v2390
  %v3120 = vunpack.c.l.b16 %v2391
  %v3121 = vunpack.c.l.b16 %v2392
  %v3122 = vunpack.c.h.b16 %v2392
  %v3123 = vunpack.c.l.b16 %v2393
  %v3124 = vunpack.c.h.b16 %v2393
  %v3125 = vunpack.c.l.b16 %v2394
  %v3126 = vunpack.c.h.b16 %v2394
  %v3127 = vunpack.c.l.b16 %v2395
  %v3128 = vunpack.c.l.b16 %v2396
  %v3129 = vunpack.c.h.b16 %v2396
  %v3130 = vunpack.c.l.b16 %v2397
  %v3131 = vunpack.c.h.b16 %v2397
  %v3132 = vunpack.c.l.b16 %v2398
  %v3133 = vunpack.c.h.b16 %v2398
  %v3134 = vunpack.c.l.b16 %v2399
  %v3135 = vunpack.c.l.b16 %v2400
  %v3136 = vunpack.c.h.b16 %v2400
  %v3137 = vunpack.c.l.b16 %v2401
  %v3138 = vunpack.c.h.b16 %v2401
  %v3139 = vunpack.c.l.b16 %v2402
  %v3140 = vunpack.c.h.b16 %v2402
  %v3141 = vunpack.c.l.b16 %v2403
  %v3142 = vunpack.c.l.b16 %v2404
  %v3143 = vunpack.c.h.b16 %v2404
  %v3144 = vunpack.c.l.b16 %v2405
  %v3145 = vunpack.c.h.b16 %v2405
  %v3146 = vunpack.c.l.b16 %v2406
  %v3147 = vunpack.c.h.b16 %v2406
  %v3148 = vunpack.c.l.b16 %v2407
  %v3149 = vpack.c.b16 %v2708, %v2701
  %v3150 = vpack.c.b16 %v2709, %v2702
  %v3151 = vpack.c.b16 %v2710, %v2703
  %v3152 = vpack.c.b16 %v2711, %v2704
  %v3153 = vpack.c.b16 %v2712, %v2705
  %v3154 = vpack.c.b16 %v2713, %v2706
  %v3155 = vpack.c.b16 %v2714, %v2707
  %v3156 = vpack.c.b16 %v2722, %v2715
  %v3157 = vpack.c.b16 %v2723, %v2716
  %v3158 = vpack.c.b16 %v2724, %v2717
  %v3159 = vpack.c.b16 %v2725, %v2718
  %v3160 = vpack.c.b16 %v2726, %v2719
  %v3161 = vpack.c.b16 %v2727, %v2720
  %v3162 = vpack.c.b16 %v2728, %v2721
  %v3163 = vpack.c.b16 %v2736, %v2729
  %v3164 = vpack.c.b16 %v2737, %v2730
  %v3165 = vpack.c.b16 %v2738, %v2731
  %v3166 = vpack.c.b16 %v2739, %v2732
  %v3167 = vpack.c.b16 %v2740, %v2733
  %v3168 = vpack.c.b16 %v2741, %v2734
  %v3169 = vpack.c.b16 %v2742, %v2735
  %v3170 = vpack.c.b16 %v2750, %v2743
  %v3171 = vpack.c.b16 %v2751, %v2744
  %v3172 = vpack.c.b16 %v2752, %v2745
  %v3173 = vpack.c.b16 %v2753, %v2746
  %v3174 = vpack.c.b16 %v2754, %v2747
  %v3175 = vpack.c.b16 %v2755, %v2748
  %v3176 = vpack.c.b16 %v2756, %v2749
  %v3177 = vpack.c.b16 %v2764, %v2757
  %v3178 = vpack.c.b16 %v2765, %v2758
  %v3179 = vpack.c.b16 %v2766, %v2759
  %v3180 = vpack.c.b16 %v2767, %v2760
  %v3181 = vpack.c.b16 %v2768, %v2761
  %v3182 = vpack.c.b16 %v2769, %v2762
  %v3183 = vpack.c.b16 %v2770, %v2763
  %v3184 = vpack.c.b16 %v2778, %v2771
  %v3185 = vpack.c.b16 %v2779, %v2772
  %v3186 = vpack.c.b16 %v2780, %v2773
  %v3187 = vpack.c.b16 %v2781, %v2774
  %v3188 = vpack.c.b16 %v2782, %v2775
  %v3189 = vpack.c.b16 %v2783, %v2776
  %v3190 = vpack.c.b16 %v2784, %v2777
  %v3191 = vpack.c.b16 %v2792, %v2785
  %v3192 = vpack.c.b16 %v2793, %v2786
  %v3193 = vpack.c.b16 %v2794, %v2787
  %v3194 = vpack.c.b16 %v2795, %v2788
  %v3195 = vpack.c.b16 %v2796, %v2789
  %v3196 = vpack.c.b16 %v2797, %v2790
  %v3197 = vpack.c.b16 %v2798, %v2791
  %v3198 = vpack.c.b16 %v2806, %v2799
  %v3199 = vpack.c.b16 %v2807, %v2800
  %v3200 = vpack.c.b16 %v2808, %v2801
  %v3201 = vpack.c.b16 %v2809, %v2802
  %v3202 = vpack.c.b16 %v2810, %v2803
  %v3203 = vpack.c.b16 %v2811, %v2804
  %v3204 = vpack.c.b16 %v2812, %v2805
  %v3205 = vpack.c.b16 %v2820, %v2813
  %v3206 = vpack.c.b16 %v2821, %v2814
  %v3207 = vpack.c.b16 %v2822, %v2815
  %v3208 = vpack.c.b16 %v2823, %v2816
  %v3209 = vpack.c.b16 %v2824, %v2817
  %v3210 = vpack.c.b16 %v2825, %v2818
  %v3211 = vpack.c.b16 %v2826, %v2819
  %v3212 = vpack.c.b16 %v2834, %v2827
  %v3213 = vpack.c.b16 %v2835, %v2828
  %v3214 = vpack.c.b16 %v2836, %v2829
  %v3215 = vpack.c.b16 %v2837, %v2830
  %v3216 = vpack.c.b16 %v2838, %v2831
  %v3217 = vpack.c.b16 %v2839, %v2832
  %v3218 = vpack.c.b16 %v2840, %v2833
  %v3219 = vpack.c.b16 %v2848, %v2841
  %v3220 = vpack.c.b16 %v2849, %v2842
  %v3221 = vpack.c.b16 %v2850, %v2843
  %v3222 = vpack.c.b16 %v2851, %v2844
  %v3223 = vpack.c.b16 %v2852, %v2845
  %v3224 = vpack.c.b16 %v2853, %v2846
  %v3225 = vpack.c.b16 %v2854, %v2847
  %v3226 = vpack.c.b16 %v2862, %v2855
  %v3227 = vpack.c.b16 %v2863, %v2856
  %v3228 = vpack.c.b16 %v2864, %v2857
  %v3229 = vpack.c.b16 %v2865, %v2858
  %v3230 = vpack.c.b16 %v2866, %v2859
  %v3231 = vpack.c.b16 %v2867, %v2860
  %v3232 = vpack.c.b16 %v2868, %v2861
  %v3233 = vpack.c.b16 %v2876, %v2869
  %v3234 = vpack.c.b16 %v2877, %v2870
  %v3235 = vpack.c.b16 %v2878, %v2871
  %v3236 = vpack.c.b16 %v2879, %v2872
  %v3237 = vpack.c.b16 %v2880, %v2873
  %v3238 = vpack.c.b16 %v2881, %v2874
  %v3239 = vpack.c.b16 %v2882, %v2875
  %v3240 = vpack.c.b16 %v2890, %v2883
  %v3241 = vpack.c.b16 %v2891, %v2884
  %v3242 = vpack.c.b16 %v2892, %v2885
  %v3243 = vpack.c.b16 %v2893, %v2886
  %v3244 = vpack.c.b16 %v2894, %v2887
  %v3245 = vpack.c.b16 %v2895, %v2888
  %v3246 = vpack.c.b16 %v2896, %v2889
  %v3247 = vpack.c.b16 %v2904, %v2897
  %v3248 = vpack.c.b16 %v2905, %v2898
  %v3249 = vpack.c.b16 %v2906, %v2899
  %v3250 = vpack.c.b16 %v2907, %v2900
  %v3251 = vpack.c.b16 %v2908, %v2901
  %v3252 = vpack.c.b16 %v2909, %v2902
  %v3253 = vpack.c.b16 %v2910, %v2903
  %v3254 = vpack.c.b16 %v2918, %v2911
  %v3255 = vpack.c.b16 %v2919, %v2912
  %v3256 = vpack.c.b16 %v2920, %v2913
  %v3257 = vpack.c.b16 %v2921, %v2914
  %v3258 = vpack.c.b16 %v2922, %v2915
  %v3259 = vpack.c.b16 %v2923, %v2916
  %v3260 = vpack.c.b16 %v2924, %v2917
  %v3261 = vpack.c.b16 %v2932, %v2925
  %v3262 = vpack.c.b16 %v2933, %v2926
  %v3263 = vpack.c.b16 %v2934, %v2927
  %v3264 = vpack.c.b16 %v2935, %v2928
  %v3265 = vpack.c.b16 %v2936, %v2929
  %v3266 = vpack.c.b16 %v2937, %v2930
  %v3267 = vpack.c.b16 %v2938, %v2931
  %v3268 = vpack.c.b16 %v2946, %v2939
  %v3269 = vpack.c.b16 %v2947, %v2940
  %v3270 = vpack.c.b16 %v2948, %v2941
  %v3271 = vpack.c.b16 %v2949, %v2942
  %v3272 = vpack.c.b16 %v2950, %v2943
  %v3273 = vpack.c.b16 %v2951, %v2944
  %v3274 = vpack.c.b16 %v2952, %v2945
  %v3275 = vpack.c.b16 %v2960, %v2953
  %v3276 = vpack.c.b16 %v2961, %v2954
  %v3277 = vpack.c.b16 %v2962, %v2955
  %v3278 = vpack.c.b16 %v2963, %v2956
  %v3279 = vpack.c.b16 %v2964, %v2957
  %v3280 = vpack.c.b16 %v2965, %v2958
  %v3281 = vpack.c.b16 %v2966, %v2959
  %v3282 = vpack.c.b16 %v2974, %v2967
  %v3283 = vpack.c.b16 %v2975, %v2968
  %v3284 = vpack.c.b16 %v2976, %v2969
  %v3285 = vpack.c.b16 %v2977, %v2970
  %v3286 = vpack.c.b16 %v2978, %v2971
  %v3287 = vpack.c.b16 %v2979, %v2972
  %v3288 = vpack.c.b16 %v2980, %v2973
  %v3289 = vpack.c.b16 %v2988, %v2981
  %v3290 = vpack.c.b16 %v2989, %v2982
  %v3291 = vpack.c.b16 %v2990, %v2983
  %v3292 = vpack.c.b16 %v2991, %v2984
  %v3293 = vpack.c.b16 %v2992, %v2985
  %v3294 = vpack.c.b16 %v2993, %v2986
  %v3295 = vpack.c.b16 %v2994, %v2987
  %v3296 = vpack.c.b16 %v3002, %v2995
  %v3297 = vpack.c.b16 %v3003, %v2996
  %v3298 = vpack.c.b16 %v3004, %v2997
  %v3299 = vpack.c.b16 %v3005, %v2998
  %v3300 = vpack.c.b16 %v3006, %v2999
  %v3301 = vpack.c.b16 %v3007, %v3000
  %v3302 = vpack.c.b16 %v3008, %v3001
  %v3303 = vpack.c.b16 %v3016, %v3009
  %v3304 = vpack.c.b16 %v3017, %v3010
  %v3305 = vpack.c.b16 %v3018, %v3011
  %v3306 = vpack.c.b16 %v3019, %v3012
  %v3307 = vpack.c.b16 %v3020, %v3013
  %v3308 = vpack.c.b16 %v3021, %v3014
  %v3309 = vpack.c.b16 %v3022, %v3015
  %v3310 = vpack.c.b16 %v3030, %v3023
  %v3311 = vpack.c.b16 %v3031, %v3024
  %v3312 = vpack.c.b16 %v3032, %v3025
  %v3313 = vpack.c.b16 %v3033, %v3026
  %v3314 = vpack.c.b16 %v3034, %v3027
  %v3315 = vpack.c.b16 %v3035, %v3028
  %v3316 = vpack.c.b16 %v3036, %v3029
  %v3317 = vpack.c.b16 %v3044, %v3037
  %v3318 = vpack.c.b16 %v3045, %v3038
  %v3319 = vpack.c.b16 %v3046, %v3039
  %v3320 = vpack.c.b16 %v3047, %v3040
  %v3321 = vpack.c.b16 %v3048, %v3041
  %v3322 = vpack.c.b16 %v3049, %v3042
  %v3323 = vpack.c.b16 %v3050, %v3043
  %v3324 = vpack.c.b16 %v3058, %v3051
  %v3325 = vpack.c.b16 %v3059, %v3052
  %v3326 = vpack.c.b16 %v3060, %v3053
  %v3327 = vpack.c.b16 %v3061, %v3054
  %v3328 = vpack.c.b16 %v3062, %v3055
  %v3329 = vpack.c.b16 %v3063, %v3056
  %v3330 = vpack.c.b16 %v3064, %v3057
  %v3331 = vpack.c.b16 %v3072, %v3065
  %v3332 = vpack.c.b16 %v3073, %v3066
  %v3333 = vpack.c.b16 %v3074, %v3067
  %v3334 = vpack.c.b16 %v3075, %v3068
  %v3335 = vpack.c.b16 %v3076, %v3069
  %v3336 = vpack.c.b16 %v3077, %v3070
  %v3337 = vpack.c.b16 %v3078, %v3071
  %v3338 = vpack.c.b16 %v3086, %v3079
  %v3339 = vpack.c.b16 %v3087, %v3080
  %v3340 = vpack.c.b16 %v3088, %v3081
  %v3341 = vpack.c.b16 %v3089, %v3082
  %v3342 = vpack.c.b16 %v3090, %v3083
  %v3343 = vpack.c.b16 %v3091, %v3084
  %v3344 = vpack.c.b16 %v3092, %v3085
  %v3345 = vpack.c.b16 %v3100, %v3093
  %v3346 = vpack.c.b16 %v3101, %v3094
  %v3347 = vpack.c.b16 %v3102, %v3095
  %v3348 = vpack.c.b16 %v3103, %v3096
  %v3349 = vpack.c.b16 %v3104, %v3097
  %v3350 = vpack.c.b16 %v3105, %v3098
  %v3351 = vpack.c.b16 %v3106, %v3099
  %v3352 = vpack.c.b16 %v3114, %v3107
  %v3353 = vpack.c.b16 %v3115, %v3108
  %v3354 = vpack.c.b16 %v3116, %v3109
  %v3355 = vpack.c.b16 %v3117, %v3110
  %v3356 = vpack.c.b16 %v3118, %v3111
  %v3357 = vpack.c.b16 %v3119, %v3112
  %v3358 = vpack.c.b16 %v3120, %v3113
  %v3359 = vpack.c.b16 %v3128, %v3121
  %v3360 = vpack.c.b16 %v3129, %v3122
  %v3361 = vpack.c.b16 %v3130, %v3123
  %v3362 = vpack.c.b16 %v3131, %v3124
  %v3363 = vpack.c.b16 %v3132, %v3125
  %v3364 = vpack.c.b16 %v3133, %v3126
  %v3365 = vpack.c.b16 %v3134, %v3127
  %v3366 = vpack.c.b16 %v3142, %v3135
  %v3367 = vpack.c.b16 %v3143, %v3136
  %v3368 = vpack.c.b16 %v3144, %v3137
  %v3369 = vpack.c.b16 %v3145, %v3138
  %v3370 = vpack.c.b16 %v3146, %v3139
  %v3371 = vpack.c.b16 %v3147, %v3140
  %v3372 = vpack.c.b16 %v3148, %v3141
  %3597 = vmatprep.subr.bf16.mxu0 %v3150
  %3598 = vmatpush1.bf16.msra.mxu0 %v3149
  %3599 = vmatprep.subr.bf16.mxu0 %v3157
  %3600 = vmatpush1.bf16.msra.mxu0 %v3156
  %3601 = vmatprep.subr.bf16.mxu0 %v3164
  %3602 = vmatpush1.bf16.msra.mxu0 %v3163
  %3603 = vmatprep.subr.bf16.mxu0 %v3171
  %3604 = vmatpush1.bf16.msra.mxu0 %v3170
  %3605 = vmatprep.subr.bf16.mxu0 %v3178
  %3606 = vmatpush1.bf16.msra.mxu0 %v3177
  %3607 = vmatprep.subr.bf16.mxu0 %v3185
  %3608 = vmatpush1.bf16.msra.mxu0 %v3184
  %3609 = vmatprep.subr.bf16.mxu0 %v3192
  %3610 = vmatpush1.bf16.msra.mxu0 %v3191
  %3611 = vmatprep.subr.bf16.mxu0 %v3199
  %3612 = vmatpush1.bf16.msra.mxu0 %v3198
  %3613 = vmatprep.subr.bf16.mxu0 %v3206
  %3614 = vmatpush1.bf16.msra.mxu0 %v3205
  %3615 = vmatprep.subr.bf16.mxu0 %v3213
  %3616 = vmatpush1.bf16.msra.mxu0 %v3212
  %3617 = vmatprep.subr.bf16.mxu0 %v3220
  %3618 = vmatpush1.bf16.msra.mxu0 %v3219
  %3619 = vmatprep.subr.bf16.mxu0 %v3227
  %3620 = vmatpush1.bf16.msra.mxu0 %v3226
  %3621 = vmatprep.subr.bf16.mxu0 %v3234
  %3622 = vmatpush1.bf16.msra.mxu0 %v3233
  %3623 = vmatprep.subr.bf16.mxu0 %v3241
  %3624 = vmatpush1.bf16.msra.mxu0 %v3240
  %3625 = vmatprep.subr.bf16.mxu0 %v3248
  %3626 = vmatpush1.bf16.msra.mxu0 %v3247
  %3627 = vmatprep.subr.bf16.mxu0 %v3255
  %3628 = vmatpush1.bf16.msra.mxu0 %v3254
  %3629 = vmatprep.mubr.bf16.mxu0 %v2149
  %3630 = vmatmul.mubr.bf16.gmra.mrb[0].mxu0 %v2148
  %v3631 = vpop.f32.mrb[0].mxu0
  %v3632 = vadd.f32 %v2413, %v3631
  %v3633 = vpop.f32.mrb[0].mxu0
  %v3634 = vadd.f32 %v2417, %v3633
  %v3635 = vpop.f32.mrb[0].mxu0
  %v3636 = vadd.f32 %v2413, %v3635
  %v3637 = vpop.f32.mrb[0].mxu0
  %v3638 = vadd.f32 %v2417, %v3637
  %3639 = vdwg.mxu0
  %3640 = vmatprep.subr.bf16.mxu0 %v3262
  %3641 = vmatpush1.bf16.msra.mxu0 %v3261
  %3642 = vmatprep.subr.bf16.mxu0 %v3269
  %3643 = vmatpush1.bf16.msra.mxu0 %v3268
  %3644 = vmatprep.subr.bf16.mxu0 %v3276
  %3645 = vmatpush1.bf16.msra.mxu0 %v3275
  %3646 = vmatprep.subr.bf16.mxu0 %v3283
  %3647 = vmatpush1.bf16.msra.mxu0 %v3282
  %3648 = vmatprep.subr.bf16.mxu0 %v3290
  %3649 = vmatpush1.bf16.msra.mxu0 %v3289
  %3650 = vmatprep.subr.bf16.mxu0 %v3297
  %3651 = vmatpush1.bf16.msra.mxu0 %v3296
  %3652 = vmatprep.subr.bf16.mxu0 %v3304
  %3653 = vmatpush1.bf16.msra.mxu0 %v3303
  %3654 = vmatprep.subr.bf16.mxu0 %v3311
  %3655 = vmatpush1.bf16.msra.mxu0 %v3310
  %3656 = vmatprep.subr.bf16.mxu0 %v3318
  %3657 = vmatpush1.bf16.msra.mxu0 %v3317
  %3658 = vmatprep.subr.bf16.mxu0 %v3325
  %3659 = vmatpush1.bf16.msra.mxu0 %v3324
  %3660 = vmatprep.subr.bf16.mxu0 %v3332
  %3661 = vmatpush1.bf16.msra.mxu0 %v3331
  %3662 = vmatprep.subr.bf16.mxu0 %v3339
  %3663 = vmatpush1.bf16.msra.mxu0 %v3338
  %3664 = vmatprep.subr.bf16.mxu0 %v3346
  %3665 = vmatpush1.bf16.msra.mxu0 %v3345
  %3666 = vmatprep.subr.bf16.mxu0 %v3353
  %3667 = vmatpush1.bf16.msra.mxu0 %v3352
  %3668 = vmatprep.subr.bf16.mxu0 %v3360
  %3669 = vmatpush1.bf16.msra.mxu0 %v3359
  %3670 = vmatprep.subr.bf16.mxu0 %v3367
  %3671 = vmatpush1.bf16.msra.mxu0 %v3366
  %3672 = vmatprep.mubr.bf16.mxu0 %v2151
  %3673 = vmatmul.mubr.bf16.gmra.mrb[0].mxu0 %v2150
  %v3674 = vpop.f32.mrb[0].mxu0
  %v3675 = vadd.f32 %v3632, %v3674
  %v3676 = vpop.f32.mrb[0].mxu0
  %v3677 = vadd.f32 %v3634, %v3676
  %v3678 = vpop.f32.mrb[0].mxu0
  %v3679 = vadd.f32 %v3636, %v3678
  %v3680 = vpop.f32.mrb[0].mxu0
  %v3681 = vadd.f32 %v3638, %v3680
  %3682 = vdwg.mxu0
  %3683 = vmatprep.subr.bf16.mxu0 %v3152
  %3684 = vmatpush1.bf16.msra.mxu0 %v3151
  %3685 = vmatprep.subr.bf16.mxu0 %v3159
  %3686 = vmatpush1.bf16.msra.mxu0 %v3158
  %3687 = vmatprep.subr.bf16.mxu0 %v3166
  %3688 = vmatpush1.bf16.msra.mxu0 %v3165
  %3689 = vmatprep.subr.bf16.mxu0 %v3173
  %3690 = vmatpush1.bf16.msra.mxu0 %v3172
  %3691 = vmatprep.subr.bf16.mxu0 %v3180
  %3692 = vmatpush1.bf16.msra.mxu0 %v3179
  %3693 = vmatprep.subr.bf16.mxu0 %v3187
  %3694 = vmatpush1.bf16.msra.mxu0 %v3186
  %3695 = vmatprep.subr.bf16.mxu0 %v3194
  %3696 = vmatpush1.bf16.msra.mxu0 %v3193
  %3697 = vmatprep.subr.bf16.mxu0 %v3201
  %3698 = vmatpush1.bf16.msra.mxu0 %v3200
  %3699 = vmatprep.subr.bf16.mxu0 %v3208
  %3700 = vmatpush1.bf16.msra.mxu0 %v3207
  %3701 = vmatprep.subr.bf16.mxu0 %v3215
  %3702 = vmatpush1.bf16.msra.mxu0 %v3214
  %3703 = vmatprep.subr.bf16.mxu0 %v3222
  %3704 = vmatpush1.bf16.msra.mxu0 %v3221
  %3705 = vmatprep.subr.bf16.mxu0 %v3229
  %3706 = vmatpush1.bf16.msra.mxu0 %v3228
  %3707 = vmatprep.subr.bf16.mxu0 %v3236
  %3708 = vmatpush1.bf16.msra.mxu0 %v3235
  %3709 = vmatprep.subr.bf16.mxu0 %v3243
  %3710 = vmatpush1.bf16.msra.mxu0 %v3242
  %3711 = vmatprep.subr.bf16.mxu0 %v3250
  %3712 = vmatpush1.bf16.msra.mxu0 %v3249
  %3713 = vmatprep.subr.bf16.mxu0 %v3257
  %3714 = vmatpush1.bf16.msra.mxu0 %v3256
  %3715 = vmatprep.mubr.bf16.mxu0 %v2149
  %3716 = vmatmul.mubr.bf16.gmra.mrb[0].mxu0 %v2148
  %v3717 = vpop.f32.mrb[0].mxu0
  %v3718 = vadd.f32 %v2421, %v3717
  %v3719 = vpop.f32.mrb[0].mxu0
  %v3720 = vadd.f32 %v2425, %v3719
  %v3721 = vpop.f32.mrb[0].mxu0
  %v3722 = vadd.f32 %v2421, %v3721
  %v3723 = vpop.f32.mrb[0].mxu0
  %v3724 = vadd.f32 %v2425, %v3723
  %3725 = vdwg.mxu0
  %3726 = vmatprep.subr.bf16.mxu0 %v3264
  %3727 = vmatpush1.bf16.msra.mxu0 %v3263
  %3728 = vmatprep.subr.bf16.mxu0 %v3271
  %3729 = vmatpush1.bf16.msra.mxu0 %v3270
  %3730 = vmatprep.subr.bf16.mxu0 %v3278
  %3731 = vmatpush1.bf16.msra.mxu0 %v3277
  %3732 = vmatprep.subr.bf16.mxu0 %v3285
  %3733 = vmatpush1.bf16.msra.mxu0 %v3284
  %3734 = vmatprep.subr.bf16.mxu0 %v3292
  %3735 = vmatpush1.bf16.msra.mxu0 %v3291
  %3736 = vmatprep.subr.bf16.mxu0 %v3299
  %3737 = vmatpush1.bf16.msra.mxu0 %v3298
  %3738 = vmatprep.subr.bf16.mxu0 %v3306
  %3739 = vmatpush1.bf16.msra.mxu0 %v3305
  %3740 = vmatprep.subr.bf16.mxu0 %v3313
  %3741 = vmatpush1.bf16.msra.mxu0 %v3312
  %3742 = vmatprep.subr.bf16.mxu0 %v3320
  %3743 = vmatpush1.bf16.msra.mxu0 %v3319
  %3744 = vmatprep.subr.bf16.mxu0 %v3327
  %3745 = vmatpush1.bf16.msra.mxu0 %v3326
  %3746 = vmatprep.subr.bf16.mxu0 %v3334
  %3747 = vmatpush1.bf16.msra.mxu0 %v3333
  %3748 = vmatprep.subr.bf16.mxu0 %v3341
  %3749 = vmatpush1.bf16.msra.mxu0 %v3340
  %3750 = vmatprep.subr.bf16.mxu0 %v3348
  %3751 = vmatpush1.bf16.msra.mxu0 %v3347
  %3752 = vmatprep.subr.bf16.mxu0 %v3355
  %3753 = vmatpush1.bf16.msra.mxu0 %v3354
  %3754 = vmatprep.subr.bf16.mxu0 %v3362
  %3755 = vmatpush1.bf16.msra.mxu0 %v3361
  %3756 = vmatprep.subr.bf16.mxu0 %v3369
  %3757 = vmatpush1.bf16.msra.mxu0 %v3368
  %3758 = vmatprep.mubr.bf16.mxu0 %v2151
  %3759 = vmatmul.mubr.bf16.gmra.mrb[0].mxu0 %v2150
  %v3760 = vpop.f32.mrb[0].mxu0
  %v3761 = vadd.f32 %v3718, %v3760
  %v3762 = vpop.f32.mrb[0].mxu0
  %v3763 = vadd.f32 %v3720, %v3762
  %v3764 = vpop.f32.mrb[0].mxu0
  %v3765 = vadd.f32 %v3722, %v3764
  %v3766 = vpop.f32.mrb[0].mxu0
  %v3767 = vadd.f32 %v3724, %v3766
  %3768 = vdwg.mxu0
  %3769 = vmatprep.subr.bf16.mxu0 %v3154
  %3770 = vmatpush1.bf16.msra.mxu0 %v3153
  %3771 = vmatprep.subr.bf16.mxu0 %v3161
  %3772 = vmatpush1.bf16.msra.mxu0 %v3160
  %3773 = vmatprep.subr.bf16.mxu0 %v3168
  %3774 = vmatpush1.bf16.msra.mxu0 %v3167
  %3775 = vmatprep.subr.bf16.mxu0 %v3175
  %3776 = vmatpush1.bf16.msra.mxu0 %v3174
  %3777 = vmatprep.subr.bf16.mxu0 %v3182
  %3778 = vmatpush1.bf16.msra.mxu0 %v3181
  %3779 = vmatprep.subr.bf16.mxu0 %v3189
  %3780 = vmatpush1.bf16.msra.mxu0 %v3188
  %3781 = vmatprep.subr.bf16.mxu0 %v3196
  %3782 = vmatpush1.bf16.msra.mxu0 %v3195
  %3783 = vmatprep.subr.bf16.mxu0 %v3203
  %3784 = vmatpush1.bf16.msra.mxu0 %v3202
  %3785 = vmatprep.subr.bf16.mxu0 %v3210
  %3786 = vmatpush1.bf16.msra.mxu0 %v3209
  %3787 = vmatprep.subr.bf16.mxu0 %v3217
  %3788 = vmatpush1.bf16.msra.mxu0 %v3216
  %3789 = vmatprep.subr.bf16.mxu0 %v3224
  %3790 = vmatpush1.bf16.msra.mxu0 %v3223
  %3791 = vmatprep.subr.bf16.mxu0 %v3231
  %3792 = vmatpush1.bf16.msra.mxu0 %v3230
  %3793 = vmatprep.subr.bf16.mxu0 %v3238
  %3794 = vmatpush1.bf16.msra.mxu0 %v3237
  %3795 = vmatprep.subr.bf16.mxu0 %v3245
  %3796 = vmatpush1.bf16.msra.mxu0 %v3244
  %3797 = vmatprep.subr.bf16.mxu0 %v3252
  %3798 = vmatpush1.bf16.msra.mxu0 %v3251
  %3799 = vmatprep.subr.bf16.mxu0 %v3259
  %3800 = vmatpush1.bf16.msra.mxu0 %v3258
  %3801 = vmatprep.mubr.bf16.mxu0 %v2149
  %3802 = vmatmul.mubr.bf16.gmra.mrb[0].mxu0 %v2148
  %v3803 = vpop.f32.mrb[0].mxu0
  %v3804 = vadd.f32 %v2429, %v3803
  %v3805 = vpop.f32.mrb[0].mxu0
  %v3806 = vadd.f32 %v2433, %v3805
  %v3807 = vpop.f32.mrb[0].mxu0
  %v3808 = vadd.f32 %v2429, %v3807
  %v3809 = vpop.f32.mrb[0].mxu0
  %v3810 = vadd.f32 %v2433, %v3809
  %3811 = vdwg.mxu0
  %3812 = vmatprep.subr.bf16.mxu0 %v3266
  %3813 = vmatpush1.bf16.msra.mxu0 %v3265
  %3814 = vmatprep.subr.bf16.mxu0 %v3273
  %3815 = vmatpush1.bf16.msra.mxu0 %v3272
  %3816 = vmatprep.subr.bf16.mxu0 %v3280
  %3817 = vmatpush1.bf16.msra.mxu0 %v3279
  %3818 = vmatprep.subr.bf16.mxu0 %v3287
  %3819 = vmatpush1.bf16.msra.mxu0 %v3286
  %3820 = vmatprep.subr.bf16.mxu0 %v3294
  %3821 = vmatpush1.bf16.msra.mxu0 %v3293
  %3822 = vmatprep.subr.bf16.mxu0 %v3301
  %3823 = vmatpush1.bf16.msra.mxu0 %v3300
  %3824 = vmatprep.subr.bf16.mxu0 %v3308
  %3825 = vmatpush1.bf16.msra.mxu0 %v3307
  %3826 = vmatprep.subr.bf16.mxu0 %v3315
  %3827 = vmatpush1.bf16.msra.mxu0 %v3314
  %3828 = vmatprep.subr.bf16.mxu0 %v3322
  %3829 = vmatpush1.bf16.msra.mxu0 %v3321
  %3830 = vmatprep.subr.bf16.mxu0 %v3329
  %3831 = vmatpush1.bf16.msra.mxu0 %v3328
  %3832 = vmatprep.subr.bf16.mxu0 %v3336
  %3833 = vmatpush1.bf16.msra.mxu0 %v3335
  %3834 = vmatprep.subr.bf16.mxu0 %v3343
  %3835 = vmatpush1.bf16.msra.mxu0 %v3342
  %3836 = vmatprep.subr.bf16.mxu0 %v3350
  %3837 = vmatpush1.bf16.msra.mxu0 %v3349
  %3838 = vmatprep.subr.bf16.mxu0 %v3357
  %3839 = vmatpush1.bf16.msra.mxu0 %v3356
  %3840 = vmatprep.subr.bf16.mxu0 %v3364
  %3841 = vmatpush1.bf16.msra.mxu0 %v3363
  %3842 = vmatprep.subr.bf16.mxu0 %v3371
  %3843 = vmatpush1.bf16.msra.mxu0 %v3370
  %3844 = vmatprep.mubr.bf16.mxu0 %v2151
  %3845 = vmatmul.mubr.bf16.gmra.mrb[0].mxu0 %v2150
  %v3846 = vpop.f32.mrb[0].mxu0
  %v3847 = vadd.f32 %v3804, %v3846
  %v3848 = vpop.f32.mrb[0].mxu0
  %v3849 = vadd.f32 %v3806, %v3848
  %v3850 = vpop.f32.mrb[0].mxu0
  %v3851 = vadd.f32 %v3808, %v3850
  %v3852 = vpop.f32.mrb[0].mxu0
  %v3853 = vadd.f32 %v3810, %v3852
  %3854 = vdwg.mxu0
  %3855 = vmatprep.subr.bf16.mxu0 0
  %3856 = vmatpush1.bf16.msra.mxu0 %v3155
  %3857 = vmatprep.subr.bf16.mxu0 0
  %3858 = vmatpush1.bf16.msra.mxu0 %v3162
  %3859 = vmatprep.subr.bf16.mxu0 0
  %3860 = vmatpush1.bf16.msra.mxu0 %v3169
  %3861 = vmatprep.subr.bf16.mxu0 0
  %3862 = vmatpush1.bf16.msra.mxu0 %v3176
  %3863 = vmatprep.subr.bf16.mxu0 0
  %3864 = vmatpush1.bf16.msra.mxu0 %v3183
  %3865 = vmatprep.subr.bf16.mxu0 0
  %3866 = vmatpush1.bf16.msra.mxu0 %v3190
  %3867 = vmatprep.subr.bf16.mxu0 0
  %3868 = vmatpush1.bf16.msra.mxu0 %v3197
  %3869 = vmatprep.subr.bf16.mxu0 0
  %3870 = vmatpush1.bf16.msra.mxu0 %v3204
  %3871 = vmatprep.subr.bf16.mxu0 0
  %3872 = vmatpush1.bf16.msra.mxu0 %v3211
  %3873 = vmatprep.subr.bf16.mxu0 0
  %3874 = vmatpush1.bf16.msra.mxu0 %v3218
  %3875 = vmatprep.subr.bf16.mxu0 0
  %3876 = vmatpush1.bf16.msra.mxu0 %v3225
  %3877 = vmatprep.subr.bf16.mxu0 0
  %3878 = vmatpush1.bf16.msra.mxu0 %v3232
  %3879 = vmatprep.subr.bf16.mxu0 0
  %3880 = vmatpush1.bf16.msra.mxu0 %v3239
  %3881 = vmatprep.subr.bf16.mxu0 0
  %3882 = vmatpush1.bf16.msra.mxu0 %v3246
  %3883 = vmatprep.subr.bf16.mxu0 0
  %3884 = vmatpush1.bf16.msra.mxu0 %v3253
  %3885 = vmatprep.subr.bf16.mxu0 0
  %3886 = vmatpush1.bf16.msra.mxu0 %v3260
  %3887 = vmatprep.mubr.bf16.mxu0 %v2149
  %3888 = vmatmul.mubr.bf16.gmra.mrb[0].mxu0 %v2148
  %v3889 = vpop.f32.mrb[0].mxu0
  %v3890 = vadd.f32 %v2437, %v3889
  %v3891 = vpop.f32.mrb[0].mxu0
  %v3892 = vpop.f32.mrb[0].mxu0
  %v3893 = vadd.f32 %v2437, %v3892
  %v3894 = vpop.f32.mrb[0].mxu0
  %3895 = vdwg.mxu0
  %3896 = vmatprep.subr.bf16.mxu0 0
  %3897 = vmatpush1.bf16.msra.mxu0 %v3267
  %3898 = vmatprep.subr.bf16.mxu0 0
  %3899 = vmatpush1.bf16.msra.mxu0 %v3274
  %3900 = vmatprep.subr.bf16.mxu0 0
  %3901 = vmatpush1.bf16.msra.mxu0 %v3281
  %3902 = vmatprep.subr.bf16.mxu0 0
  %3903 = vmatpush1.bf16.msra.mxu0 %v3288
  %3904 = vmatprep.subr.bf16.mxu0 0
  %3905 = vmatpush1.bf16.msra.mxu0 %v3295
  %3906 = vmatprep.subr.bf16.mxu0 0
  %3907 = vmatpush1.bf16.msra.mxu0 %v3302
  %3908 = vmatprep.subr.bf16.mxu0 0
  %3909 = vmatpush1.bf16.msra.mxu0 %v3309
  %3910 = vmatprep.subr.bf16.mxu0 0
  %3911 = vmatpush1.bf16.msra.mxu0 %v3316
  %3912 = vmatprep.subr.bf16.mxu0 0
  %3913 = vmatpush1.bf16.msra.mxu0 %v3323
  %3914 = vmatprep.subr.bf16.mxu0 0
  %3915 = vmatpush1.bf16.msra.mxu0 %v3330
  %3916 = vmatprep.subr.bf16.mxu0 0
  %3917 = vmatpush1.bf16.msra.mxu0 %v3337
  %3918 = vmatprep.subr.bf16.mxu0 0
  %3919 = vmatpush1.bf16.msra.mxu0 %v3344
  %3920 = vmatprep.subr.bf16.mxu0 0
  %3921 = vmatpush1.bf16.msra.mxu0 %v3351
  %3922 = vmatprep.subr.bf16.mxu0 0
  %3923 = vmatpush1.bf16.msra.mxu0 %v3358
  %3924 = vmatprep.subr.bf16.mxu0 0
  %3925 = vmatpush1.bf16.msra.mxu0 %v3365
  %3926 = vmatprep.subr.bf16.mxu0 0
  %3927 = vmatpush1.bf16.msra.mxu0 %v3372
  %3928 = vmatprep.mubr.bf16.mxu0 %v2151
  %3929 = vmatmul.mubr.bf16.gmra.mrb[0].mxu0 %v2150
  %v3930 = vpop.f32.mrb[0].mxu0
  %v3931 = vadd.f32 %v3890, %v3930
  %v3932 = vpop.f32.mrb[0].mxu0
  %v3933 = vpop.f32.mrb[0].mxu0
  %v3934 = vadd.f32 %v3893, %v3933
  %v3935 = vpop.f32.mrb[0].mxu0
  %3936 = vdwg.mxu0
  %v3937 = vsub.f32 0.0, %v3675
  %v3938 = vsub.f32 0.0, %v3677
  %v3939 = vsub.f32 0.0, %v3761
  %v3940 = vsub.f32 0.0, %v3763
  %v3941 = vsub.f32 0.0, %v3847
  %v3942 = vsub.f32 0.0, %v3849
  %v3943 = vsub.f32 0.0, %v3931
  %v3944 = vsub.f32 0.0, %v3679
  %v3945 = vsub.f32 0.0, %v3681
  %v3946 = vsub.f32 0.0, %v3765
  %v3947 = vsub.f32 0.0, %v3767
  %v3948 = vsub.f32 0.0, %v3851
  %v3949 = vsub.f32 0.0, %v3853
  %v3950 = vsub.f32 0.0, %v3934
  %v3951 = vmul.f32 %v3937, 1.442695
  %v3952 = vpow.pop %v3951
  %v3953 = vmul.f32 %v3938, 1.442695
  %v3954 = vpow.pop %v3953
  %v3955 = vmul.f32 %v3939, 1.442695
  %v3956 = vpow.pop %v3955
  %v3957 = vmul.f32 %v3940, 1.442695
  %v3958 = vpow.pop %v3957
  %v3959 = vmul.f32 %v3941, 1.442695
  %v3960 = vpow.pop %v3959
  %v3961 = vmul.f32 %v3942, 1.442695
  %v3962 = vpow.pop %v3961
  %v3963 = vmul.f32 %v3943, 1.442695
  %v3964 = vpow.pop %v3963
  %v3965 = vmul.f32 %v3944, 1.442695
  %v3966 = vpow.pop %v3965
  %v3967 = vmul.f32 %v3945, 1.442695
  %v3968 = vpow.pop %v3967
  %v3969 = vmul.f32 %v3946, 1.442695
  %v3970 = vpow.pop %v3969
  %v3971 = vmul.f32 %v3947, 1.442695
  %v3972 = vpow.pop %v3971
  %v3973 = vmul.f32 %v3948, 1.442695
  %v3974 = vpow.pop %v3973
  %v3975 = vmul.f32 %v3949, 1.442695
  %v3976 = vpow.pop %v3975
  %v3977 = vmul.f32 %v3950, 1.442695
  %v3978 = vpow.pop %v3977
  %v3979 = vadd.f32 %v3952, 1.0
  %v3980 = vadd.f32 %v3954, 1.0
  %v3981 = vadd.f32 %v3956, 1.0
  %v3982 = vadd.f32 %v3958, 1.0
  %v3983 = vadd.f32 %v3960, 1.0
  %v3984 = vadd.f32 %v3962, 1.0
  %v3985 = vadd.f32 %v3964, 1.0
  %v3986 = vadd.f32 %v3966, 1.0
  %v3987 = vadd.f32 %v3968, 1.0
  %v3988 = vadd.f32 %v3970, 1.0
  %v3989 = vadd.f32 %v3972, 1.0
  %v3990 = vadd.f32 %v3974, 1.0
  %v3991 = vadd.f32 %v3976, 1.0
  %v3992 = vadd.f32 %v3978, 1.0
  %v3993 = vrcp.pop %v3979
  %v3994 = vrcp.pop %v3980
  %v3995 = vrcp.pop %v3981
  %v3996 = vrcp.pop %v3982
  %v3997 = vrcp.pop %v3983
  %v3998 = vrcp.pop %v3984
  %v3999 = vrcp.pop %v3985
  %v4000 = vrcp.pop %v3986
  %v4001 = vrcp.pop %v3987
  %v4002 = vrcp.pop %v3988
  %v4003 = vrcp.pop %v3989
  %v4004 = vrcp.pop %v3990
  %v4005 = vrcp.pop %v3991
  %v4006 = vrcp.pop %v3992
  %v4007 = vpack.c.bf16 %v4000, %v3993
  %v4008 = vpack.c.bf16 %v4001, %v3994
  %v4009 = vpack.c.bf16 %v4002, %v3995
  %v4010 = vpack.c.bf16 %v4003, %v3996
  %v4011 = vpack.c.bf16 %v4004, %v3997
  %v4012 = vpack.c.bf16 %v4005, %v3998
  %v4013 = vpack.c.bf16 %v4006, %v3999
  %v4021 = vunpack.c.l.b16 %v4007
  %v4022 = vunpack.c.l.b16 %v4008
  %v4023 = vunpack.c.l.b16 %v4009
  %v4024 = vunpack.c.l.b16 %v4010
  %v4025 = vunpack.c.l.b16 %v4011
  %v4026 = vunpack.c.l.b16 %v4012
  %v4027 = vunpack.c.l.b16 %v4013
  %v4028 = vunpack.c.h.b16 %v4007
  %v4029 = vunpack.c.h.b16 %v4008
  %v4030 = vunpack.c.h.b16 %v4009
  %v4031 = vunpack.c.h.b16 %v4010
  %v4032 = vunpack.c.h.b16 %v4011
  %v4033 = vunpack.c.h.b16 %v4012
  %v4034 = vunpack.c.h.b16 %v4013
  %v4035 = vpack.c.b16 %v4022, %v4021
  %v4036 = vpack.c.b16 %v4024, %v4023
  %v4037 = vpack.c.b16 %v4026, %v4025
  %v4038 = vpack.c.b16 %v4027, %v4027
  %v4039 = vpack.c.b16 %v4029, %v4028
  %v4040 = vpack.c.b16 %v4031, %v4030
  %v4041 = vpack.c.b16 %v4033, %v4032
  %v4042 = vpack.c.b16 %v4034, %v4034
  %4051 = vst [vmem:[%s9] sm:$0xff] %v4035
  %4052 = vst [vmem:[%s9 + $0x8] sm:$0xff] %v4036
  %4053 = vst [vmem:[%s9 + $0x10] sm:$0xff] %v4037
  %vm4054 = vcmask 125952
  %4055 = vst.msk [vmem:[%s9 + $0x18] sm:$0xf] %vm4054, %v4038
  %4056 = vst [vmem:[%s9 + $0x1c] sm:$0xff] %v4039
  %4057 = vst [vmem:[%s9 + $0x24] sm:$0xff] %v4040
  %4058 = vst [vmem:[%s9 + $0x2c] sm:$0xff] %v4041
  %4059 = vst.msk [vmem:[%s9 + $0x34] sm:$0xf] %vm4054, %v4042
  // Predicated region
  $region38: #{autoencoder_forward.1} parent=0 // pred_check
    _
  $region39: #{autoencoder_forward.1} parent=0 // pred_check_branch
    %4061 = sbr.rel (0) target = $region41
  $region40: #{autoencoder_forward.1} parent=0 // pred_region
    _
  $region41: #{autoencoder_forward.1} parent=0 // pred_fallthru
    _
  // Predicated region
  $region42: #{autoencoder_forward.1} parent=0 // pred_check
    _
  $region43: #{autoencoder_forward.1} parent=0 // pred_check_branch
    %4063 = sbr.rel (0) target = $region45
  $region44: #{autoencoder_forward.1} parent=0 // pred_region
    _
  $region45: #{autoencoder_forward.1} parent=0 // pred_fallthru
    _

</llo_original>
